<compile_context>
chip_gen: v7x
topology: tpu7x:2x2x1
jax: 0.10.0
libtpu: 0.0.40
codegen_flags: <defaults>
</compile_context>

<pallas_src>
import functools

import jax
import jax.numpy as jnp
import numpy as np
from jax import lax
from jax.experimental import pallas as pl
from jax.experimental.pallas import tpu as pltpu


# ----------------------------- hyper-parameters -----------------------------
class HParams:
    enc_rnn_size = 32           # H
    z_size = 16                 # Z
    input_dropout_prob = 0.1    # no-op for single-layer LSTM (as in PyTorch)
    max_seq_len = 7             # -> T = max_seq_len + 1 = 8


# ------------------------------ fused kernel ---------------------------------
def _encoder_kernel(x_ref, mask_ref,
                    wih_f_ref, whh_f_ref, bf_ref,
                    wih_r_ref, whh_r_ref, br_ref,
                    wh_ref, bh_ref,
                    out_ref,
                    gxf_sc, gxr_sc,
                    *, T, B, H, Z, Din):
    """Single-invocation fused encoder.

    x_ref    : [T, B, Din]   (B already padded to a multiple of 8)
    mask_ref : [T, B, H]     1.0 where t < seq_len[b] else 0.0
    w*_ref   : LSTM weights per direction (input proj [Din,4H], recurrent [H,4H],
               folded bias [1,4H]) in PyTorch gate order i, f, g, o.
    wh_ref   : [2H, 2Z] combined fc_mu | fc_sigma weight, bh_ref: [1, 2Z] bias.
    out_ref  : [B, 2Z]  columns [0:Z] = mean, [Z:2Z] = std = exp(0.5 * log_var).
    gx*_sc   : [T, B, 4H] VMEM scratch holding the hoisted input projections.
    """
    # ---- hoisted input projections: one MXU pass per direction ----
    x2 = x_ref[...].reshape(T * B, Din)                       # layout-trivial (B == 8k)
    gxf = jnp.dot(x2, wih_f_ref[...], preferred_element_type=jnp.float32) + bf_ref[...]
    gxr = jnp.dot(x2, wih_r_ref[...], preferred_element_type=jnp.float32) + br_ref[...]
    gxf_sc[...] = gxf.reshape(T, B, 4 * H)
    gxr_sc[...] = gxr.reshape(T, B, 4 * H)

    whh_f = whh_f_ref[...]
    whh_r = whh_r_ref[...]

    def lstm_cell(gx_t, h, c, whh):
        # gx_t already contains x_t @ W_ih + (b_ih + b_hh)
        g = gx_t + jnp.dot(h, whh, preferred_element_type=jnp.float32)    # [B, 4H]
        i_g = jax.nn.sigmoid(g[:, 0 * H:1 * H])
        f_g = jax.nn.sigmoid(g[:, 1 * H:2 * H])
        g_g = jnp.tanh(g[:, 2 * H:3 * H])
        o_g = jax.nn.sigmoid(g[:, 3 * H:4 * H])
        c_new = f_g * c + i_g * g_g
        h_new = o_g * jnp.tanh(c_new)
        return h_new, c_new

    zeros = jnp.zeros((B, H), jnp.float32)   # nn.LSTM default initial state

    # forward direction: t = 0 .. T-1, update only while t < seq_len[b]
    def fwd_step(t, carry):
        h, c = carry
        h_new, c_new = lstm_cell(gxf_sc[t], h, c, whh_f)
        m = mask_ref[t]                                   # [B, H]
        return jnp.where(m > 0, h_new, h), jnp.where(m > 0, c_new, c)

    h_fwd, _ = lax.fori_loop(0, T, fwd_step, (zeros, zeros), unroll=True)

    # reverse direction: t = T-1 .. 0, masked identically (== packed reverse pass)
    def bwd_step(k, carry):
        t = T - 1 - k
        h, c = carry
        h_new, c_new = lstm_cell(gxr_sc[t], h, c, whh_r)
        m = mask_ref[t]
        return jnp.where(m > 0, h_new, h), jnp.where(m > 0, c_new, c)

    h_bwd, _ = lax.fori_loop(0, T, bwd_step, (zeros, zeros), unroll=True)

    # ---- heads: concat([h_fwd, h_bwd]) @ W_head done as two matmuls (no lane concat)
    y = (jnp.dot(h_fwd, wh_ref[0:H, :], preferred_element_type=jnp.float32)
         + jnp.dot(h_bwd, wh_ref[H:2 * H, :], preferred_element_type=jnp.float32)
         + bh_ref[...])                                   # [B, 2Z] = [mean | log_var]

    # single output slab: keep mean lanes, turn log_var lanes into std = exp(0.5 lv)
    col = lax.broadcasted_iota(jnp.int32, (B, 2 * Z), 1)
    out_ref[...] = jnp.where(col < Z, y, jnp.exp(0.5 * y))


# ------------------------------- wrapper --------------------------------------
def encoder_rnn_forward(params, x, seq_len, hp):
    """x: [T, B, 5] float32, seq_len: [B] int32. Returns (mean, std), each [B, Z]."""
    T, B, Din = x.shape
    H = hp.enc_rnn_size
    Z = hp.z_size

    # pad batch (sublane dim) to a multiple of 8 for full vreg/MXU row utilization
    BP = max(8, ((B + 7) // 8) * 8)
    if BP != B:
        x_p = jnp.zeros((T, BP, Din), x.dtype).at[:, :B, :].set(x)
        len_p = jnp.zeros((BP,), seq_len.dtype).at[:B].set(seq_len)
    else:
        x_p, len_p = x, seq_len

    mask = (jnp.arange(T)[:, None] < len_p[None, :]).astype(jnp.float32)   # [T, BP]
    mask = jnp.broadcast_to(mask[:, :, None], (T, BP, H))

    kernel = functools.partial(_encoder_kernel, T=T, B=BP, H=H, Z=Z, Din=Din)
    out = pl.pallas_call(
        kernel,
        out_shape=jax.ShapeDtypeStruct((BP, 2 * Z), jnp.float32),
        scratch_shapes=[
            pltpu.VMEM((T, BP, 4 * H), jnp.float32),
            pltpu.VMEM((T, BP, 4 * H), jnp.float32),
        ],
    )(x_p, mask,
      params["w_ih_f"], params["w_hh_f"], params["b_f"],
      params["w_ih_r"], params["w_hh_r"], params["b_r"],
      params["w_head"], params["b_head"])

    mean = out[:B, :Z]
    std = out[:B, Z:]
    return mean, std


# ---------------------------- pure-JAX reference ------------------------------
def encoder_rnn_reference(params, x, seq_len, hp):
    H = hp.enc_rnn_size
    Z = hp.z_size
    T, B, _ = x.shape
    mask = (jnp.arange(T)[:, None] < seq_len[None, :]).astype(jnp.float32)[:, :, None]

    def make_step(w_ih, w_hh, b):
        def step(carry, inp):
            x_t, m_t = inp
            h, c = carry
            g = x_t @ w_ih + h @ w_hh + b
            i = jax.nn.sigmoid(g[:, 0 * H:1 * H])
            f = jax.nn.sigmoid(g[:, 1 * H:2 * H])
            gg = jnp.tanh(g[:, 2 * H:3 * H])
            o = jax.nn.sigmoid(g[:, 3 * H:4 * H])
            c_new = f * c + i * gg
            h_new = o * jnp.tanh(c_new)
            h = m_t * h_new + (1.0 - m_t) * h
            c = m_t * c_new + (1.0 - m_t) * c
            return (h, c), None
        return step

    zeros = jnp.zeros((B, H), jnp.float32)
    (h_f, _), _ = lax.scan(make_step(params["w_ih_f"], params["w_hh_f"], params["b_f"]),
                           (zeros, zeros), (x, mask))
    (h_r, _), _ = lax.scan(make_step(params["w_ih_r"], params["w_hh_r"], params["b_r"]),
                           (zeros, zeros), (x[::-1], mask[::-1]))
    h_cat = jnp.concatenate([h_f, h_r], axis=-1)
    y = h_cat @ params["w_head"] + params["b_head"]
    return y[:, :Z], jnp.exp(0.5 * y[:, Z:])


# ----------------------------------- main --------------------------------------
if __name__ == "__main__":
    hp = HParams()
    B = 2
    T = hp.max_seq_len + 1          # 8
    H = hp.enc_rnn_size             # 32
    Z = hp.z_size                   # 16
    Din = 5                         # stroke-5 input features

    key = jax.random.PRNGKey(0)
    ks = jax.random.split(key, 10)
    scale = 0.1
    params = {
        # forward-direction LSTM weights (stored transposed, bias_ih+bias_hh folded)
        "w_ih_f": scale * jax.random.normal(ks[0], (Din, 4 * H), jnp.float32),
        "w_hh_f": scale * jax.random.normal(ks[1], (H, 4 * H), jnp.float32),
        "b_f":    scale * jax.random.normal(ks[2], (1, 4 * H), jnp.float32),
        # reverse-direction LSTM weights
        "w_ih_r": scale * jax.random.normal(ks[3], (Din, 4 * H), jnp.float32),
        "w_hh_r": scale * jax.random.normal(ks[4], (H, 4 * H), jnp.float32),
        "b_r":    scale * jax.random.normal(ks[5], (1, 4 * H), jnp.float32),
        # fc_mu and fc_sigma folded into one Linear(2H, 2Z): cols [0:Z]=mu, [Z:2Z]=log_var
        "w_head": scale * jax.random.normal(ks[6], (2 * H, 2 * Z), jnp.float32),
        "b_head": scale * jax.random.normal(ks[7], (1, 2 * Z), jnp.float32),
    }

    x = jax.random.normal(ks[8], (T, B, Din), jnp.float32)
    seq_len = jnp.array([T, T - 2], dtype=jnp.int32)    # variable lengths (packed semantics)

    fwd = jax.jit(lambda p, xx, sl: encoder_rnn_forward(p, xx, sl, hp))
    mean, std = fwd(params, x, seq_len)
    mean = jax.block_until_ready(mean)
    std = jax.block_until_ready(std)

    assert mean.shape == (B, Z) and std.shape == (B, Z)

    ref_mean, ref_std = encoder_rnn_reference(params, x, seq_len, hp)
    np.testing.assert_allclose(np.asarray(mean), np.asarray(ref_mean), rtol=1e-2, atol=1e-2)
    np.testing.assert_allclose(np.asarray(std), np.asarray(ref_std), rtol=1e-2, atol=1e-2)

    print("KERNEL_OK")
</pallas_src>

<mosaic_0001>
module attributes {stable_mosaic.version = 11 : i64} {
  func.func @_encoder_kernel(%arg0: memref<8x8x5xf32, #tpu.memory_space<vmem>>, %arg1: memref<8x8x32xf32, #tpu.memory_space<vmem>>, %arg2: memref<5x128xf32, #tpu.memory_space<vmem>>, %arg3: memref<32x128xf32, #tpu.memory_space<vmem>>, %arg4: memref<1x128xf32, #tpu.memory_space<vmem>>, %arg5: memref<5x128xf32, #tpu.memory_space<vmem>>, %arg6: memref<32x128xf32, #tpu.memory_space<vmem>>, %arg7: memref<1x128xf32, #tpu.memory_space<vmem>>, %arg8: memref<64x32xf32, #tpu.memory_space<vmem>>, %arg9: memref<1x32xf32, #tpu.memory_space<vmem>>, %arg10: memref<8x32xf32, #tpu.memory_space<vmem>>, %arg11: memref<8x8x128xf32, #tpu.memory_space<vmem>>, %arg12: memref<8x8x128xf32, #tpu.memory_space<vmem>>) attributes {dimension_semantics = [], scalar_prefetch = 0 : i64, scratch_operands = 2 : i64, tpu.core_type = #tpu.core_type<tc>} {
    %c0 = arith.constant 0 : index
    %c0_0 = arith.constant 0 : index
    %c0_1 = arith.constant 0 : index
    %0 = vector.load %arg0[%c0, %c0_0, %c0_1] : memref<8x8x5xf32, #tpu.memory_space<vmem>>, vector<8x8x5xf32>
    %1 = vector.shape_cast %0 : vector<8x8x5xf32> to vector<64x5xf32>
    %c0_2 = arith.constant 0 : index
    %c0_3 = arith.constant 0 : index
    %2 = vector.load %arg2[%c0_2, %c0_3] : memref<5x128xf32, #tpu.memory_space<vmem>>, vector<5x128xf32>
    %cst = arith.constant dense<0.000000e+00> : vector<64x128xf32>
    %3 = tpu.matmul %1, %2, %cst {dimension_numbers = #tpu.dot_dimension_numbers<[1], [0], [0], [1], [0, 0, 1, 1], [], []>} : vector<64x5xf32>, vector<5x128xf32>, vector<64x128xf32> -> vector<64x128xf32>
    %c0_4 = arith.constant 0 : index
    %c0_5 = arith.constant 0 : index
    %4 = vector.load %arg4[%c0_4, %c0_5] : memref<1x128xf32, #tpu.memory_space<vmem>>, vector<1x128xf32>
    %5 = vector.broadcast %4 : vector<1x128xf32> to vector<64x128xf32>
    %6 = arith.addf %3, %5 : vector<64x128xf32>
    %c0_6 = arith.constant 0 : index
    %c0_7 = arith.constant 0 : index
    %7 = vector.load %arg5[%c0_6, %c0_7] : memref<5x128xf32, #tpu.memory_space<vmem>>, vector<5x128xf32>
    %cst_8 = arith.constant dense<0.000000e+00> : vector<64x128xf32>
    %8 = tpu.matmul %1, %7, %cst_8 {dimension_numbers = #tpu.dot_dimension_numbers<[1], [0], [0], [1], [0, 0, 1, 1], [], []>} : vector<64x5xf32>, vector<5x128xf32>, vector<64x128xf32> -> vector<64x128xf32>
    %c0_9 = arith.constant 0 : index
    %c0_10 = arith.constant 0 : index
    %9 = vector.load %arg7[%c0_9, %c0_10] : memref<1x128xf32, #tpu.memory_space<vmem>>, vector<1x128xf32>
    %10 = vector.broadcast %9 : vector<1x128xf32> to vector<64x128xf32>
    %11 = arith.addf %8, %10 : vector<64x128xf32>
    %12 = vector.shape_cast %6 : vector<64x128xf32> to vector<8x8x128xf32>
    %c0_11 = arith.constant 0 : index
    %c0_12 = arith.constant 0 : index
    %c0_13 = arith.constant 0 : index
    %13 = vector.load %arg11[%c0_11, %c0_12, %c0_13] : memref<8x8x128xf32, #tpu.memory_space<vmem>>, vector<8x8x128xf32>
    tpu.vector_store %arg11[%c0_11, %c0_12, %c0_13], %12 {strides = array<i32>} : memref<8x8x128xf32, #tpu.memory_space<vmem>>, vector<8x8x128xf32>,
    %14 = vector.shape_cast %11 : vector<64x128xf32> to vector<8x8x128xf32>
    %c0_14 = arith.constant 0 : index
    %c0_15 = arith.constant 0 : index
    %c0_16 = arith.constant 0 : index
    %15 = vector.load %arg12[%c0_14, %c0_15, %c0_16] : memref<8x8x128xf32, #tpu.memory_space<vmem>>, vector<8x8x128xf32>
    tpu.vector_store %arg12[%c0_14, %c0_15, %c0_16], %14 {strides = array<i32>} : memref<8x8x128xf32, #tpu.memory_space<vmem>>, vector<8x8x128xf32>,
    %c0_17 = arith.constant 0 : index
    %c0_18 = arith.constant 0 : index
    %16 = vector.load %arg3[%c0_17, %c0_18] : memref<32x128xf32, #tpu.memory_space<vmem>>, vector<32x128xf32>
    %c0_19 = arith.constant 0 : index
    %c0_20 = arith.constant 0 : index
    %17 = vector.load %arg6[%c0_19, %c0_20] : memref<32x128xf32, #tpu.memory_space<vmem>>, vector<32x128xf32>
    %cst_21 = arith.constant 0.000000e+00 : f32
    %18 = vector.broadcast %cst_21 : f32 to vector<8x32xf32>
    %c0_i32 = arith.constant 0 : i32
    %19 = arith.index_cast %c0_i32 : i32 to index
    %c0_22 = arith.constant 0 : index
    %c0_23 = arith.constant 0 : index
    %20 = vector.load %arg11[%19, %c0_22, %c0_23] : memref<8x8x128xf32, #tpu.memory_space<vmem>>, vector<1x8x128xf32>
    %21 = vector.shape_cast %20 : vector<1x8x128xf32> to vector<8x128xf32>
    %cst_24 = arith.constant dense<0.000000e+00> : vector<8x128xf32>
    %22 = tpu.matmul %18, %16, %cst_24 {dimension_numbers = #tpu.dot_dimension_numbers<[1], [0], [0], [1], [0, 0, 1, 1], [], []>} : vector<8x32xf32>, vector<32x128xf32>, vector<8x128xf32> -> vector<8x128xf32>
    %23 = arith.addf %21, %22 : vector<8x128xf32>
    %24 = vector.extract_strided_slice %23 {offsets = [0, 0], sizes = [8, 32], strides = [1, 1]} : vector<8x128xf32> to vector<8x32xf32>
    %25 = arith.negf %24 : vector<8x32xf32>
    %26 = math.exp %25 : vector<8x32xf32>
    %cst_25 = arith.constant 1.000000e+00 : f32
    %27 = vector.broadcast %cst_25 : f32 to vector<8x32xf32>
    %28 = arith.addf %27, %26 : vector<8x32xf32>
    %29 = arith.divf %27, %28 : vector<8x32xf32>
    %30 = vector.extract_strided_slice %23 {offsets = [0, 32], sizes = [8, 32], strides = [1, 1]} : vector<8x128xf32> to vector<8x32xf32>
    %31 = arith.negf %30 : vector<8x32xf32>
    %32 = math.exp %31 : vector<8x32xf32>
    %cst_26 = arith.constant 1.000000e+00 : f32
    %33 = vector.broadcast %cst_26 : f32 to vector<8x32xf32>
    %34 = arith.addf %33, %32 : vector<8x32xf32>
    %35 = arith.divf %33, %34 : vector<8x32xf32>
    %36 = vector.extract_strided_slice %23 {offsets = [0, 64], sizes = [8, 32], strides = [1, 1]} : vector<8x128xf32> to vector<8x32xf32>
    %37 = math.tanh %36 : vector<8x32xf32>
    %38 = vector.extract_strided_slice %23 {offsets = [0, 96], sizes = [8, 32], strides = [1, 1]} : vector<8x128xf32> to vector<8x32xf32>
    %39 = arith.negf %38 : vector<8x32xf32>
    %40 = math.exp %39 : vector<8x32xf32>
    %cst_27 = arith.constant 1.000000e+00 : f32
    %41 = vector.broadcast %cst_27 : f32 to vector<8x32xf32>
    %42 = arith.addf %41, %40 : vector<8x32xf32>
    %43 = arith.divf %41, %42 : vector<8x32xf32>
    %44 = arith.mulf %35, %18 : vector<8x32xf32>
    %45 = arith.mulf %29, %37 : vector<8x32xf32>
    %46 = arith.addf %44, %45 : vector<8x32xf32>
    %47 = math.tanh %46 : vector<8x32xf32>
    %48 = arith.mulf %43, %47 : vector<8x32xf32>
    %49 = arith.index_cast %c0_i32 : i32 to index
    %c0_28 = arith.constant 0 : index
    %c0_29 = arith.constant 0 : index
    %50 = vector.load %arg1[%49, %c0_28, %c0_29] : memref<8x8x32xf32, #tpu.memory_space<vmem>>, vector<1x8x32xf32>
    %51 = vector.shape_cast %50 : vector<1x8x32xf32> to vector<8x32xf32>
    %cst_30 = arith.constant 0.000000e+00 : f32
    %52 = vector.broadcast %cst_30 : f32 to vector<8x32xf32>
    %53 = arith.cmpf ogt, %51, %52 : vector<8x32xf32>
    %54 = arith.select %53, %48, %18 : vector<8x32xi1>, vector<8x32xf32>
    %cst_31 = arith.constant 0.000000e+00 : f32
    %55 = vector.broadcast %cst_31 : f32 to vector<8x32xf32>
    %56 = arith.cmpf ogt, %51, %55 : vector<8x32xf32>
    %57 = arith.select %56, %46, %18 : vector<8x32xi1>, vector<8x32xf32>
    %c1_i32 = arith.constant 1 : i32
    %58 = arith.index_cast %c1_i32 : i32 to index
    %c0_32 = arith.constant 0 : index
    %c0_33 = arith.constant 0 : index
    %59 = vector.load %arg11[%58, %c0_32, %c0_33] : memref<8x8x128xf32, #tpu.memory_space<vmem>>, vector<1x8x128xf32>
    %60 = vector.shape_cast %59 : vector<1x8x128xf32> to vector<8x128xf32>
    %cst_34 = arith.constant dense<0.000000e+00> : vector<8x128xf32>
    %61 = tpu.matmul %54, %16, %cst_34 {dimension_numbers = #tpu.dot_dimension_numbers<[1], [0], [0], [1], [0, 0, 1, 1], [], []>} : vector<8x32xf32>, vector<32x128xf32>, vector<8x128xf32> -> vector<8x128xf32>
    %62 = arith.addf %60, %61 : vector<8x128xf32>
    %63 = vector.extract_strided_slice %62 {offsets = [0, 0], sizes = [8, 32], strides = [1, 1]} : vector<8x128xf32> to vector<8x32xf32>
    %64 = arith.negf %63 : vector<8x32xf32>
    %65 = math.exp %64 : vector<8x32xf32>
    %cst_35 = arith.constant 1.000000e+00 : f32
    %66 = vector.broadcast %cst_35 : f32 to vector<8x32xf32>
    %67 = arith.addf %66, %65 : vector<8x32xf32>
    %68 = arith.divf %66, %67 : vector<8x32xf32>
    %69 = vector.extract_strided_slice %62 {offsets = [0, 32], sizes = [8, 32], strides = [1, 1]} : vector<8x128xf32> to vector<8x32xf32>
    %70 = arith.negf %69 : vector<8x32xf32>
    %71 = math.exp %70 : vector<8x32xf32>
    %cst_36 = arith.constant 1.000000e+00 : f32
    %72 = vector.broadcast %cst_36 : f32 to vector<8x32xf32>
    %73 = arith.addf %72, %71 : vector<8x32xf32>
    %74 = arith.divf %72, %73 : vector<8x32xf32>
    %75 = vector.extract_strided_slice %62 {offsets = [0, 64], sizes = [8, 32], strides = [1, 1]} : vector<8x128xf32> to vector<8x32xf32>
    %76 = math.tanh %75 : vector<8x32xf32>
    %77 = vector.extract_strided_slice %62 {offsets = [0, 96], sizes = [8, 32], strides = [1, 1]} : vector<8x128xf32> to vector<8x32xf32>
    %78 = arith.negf %77 : vector<8x32xf32>
    %79 = math.exp %78 : vector<8x32xf32>
    %cst_37 = arith.constant 1.000000e+00 : f32
    %80 = vector.broadcast %cst_37 : f32 to vector<8x32xf32>
    %81 = arith.addf %80, %79 : vector<8x32xf32>
    %82 = arith.divf %80, %81 : vector<8x32xf32>
    %83 = arith.mulf %74, %57 : vector<8x32xf32>
    %84 = arith.mulf %68, %76 : vector<8x32xf32>
    %85 = arith.addf %83, %84 : vector<8x32xf32>
    %86 = math.tanh %85 : vector<8x32xf32>
    %87 = arith.mulf %82, %86 : vector<8x32xf32>
    %88 = arith.index_cast %c1_i32 : i32 to index
    %c0_38 = arith.constant 0 : index
    %c0_39 = arith.constant 0 : index
    %89 = vector.load %arg1[%88, %c0_38, %c0_39] : memref<8x8x32xf32, #tpu.memory_space<vmem>>, vector<1x8x32xf32>
    %90 = vector.shape_cast %89 : vector<1x8x32xf32> to vector<8x32xf32>
    %cst_40 = arith.constant 0.000000e+00 : f32
    %91 = vector.broadcast %cst_40 : f32 to vector<8x32xf32>
    %92 = arith.cmpf ogt, %90, %91 : vector<8x32xf32>
    %93 = arith.select %92, %87, %54 : vector<8x32xi1>, vector<8x32xf32>
    %cst_41 = arith.constant 0.000000e+00 : f32
    %94 = vector.broadcast %cst_41 : f32 to vector<8x32xf32>
    %95 = arith.cmpf ogt, %90, %94 : vector<8x32xf32>
    %96 = arith.select %95, %85, %57 : vector<8x32xi1>, vector<8x32xf32>
    %c2_i32 = arith.constant 2 : i32
    %97 = arith.index_cast %c2_i32 : i32 to index
    %c0_42 = arith.constant 0 : index
    %c0_43 = arith.constant 0 : index
    %98 = vector.load %arg11[%97, %c0_42, %c0_43] : memref<8x8x128xf32, #tpu.memory_space<vmem>>, vector<1x8x128xf32>
    %99 = vector.shape_cast %98 : vector<1x8x128xf32> to vector<8x128xf32>
    %cst_44 = arith.constant dense<0.000000e+00> : vector<8x128xf32>
    %100 = tpu.matmul %93, %16, %cst_44 {dimension_numbers = #tpu.dot_dimension_numbers<[1], [0], [0], [1], [0, 0, 1, 1], [], []>} : vector<8x32xf32>, vector<32x128xf32>, vector<8x128xf32> -> vector<8x128xf32>
    %101 = arith.addf %99, %100 : vector<8x128xf32>
    %102 = vector.extract_strided_slice %101 {offsets = [0, 0], sizes = [8, 32], strides = [1, 1]} : vector<8x128xf32> to vector<8x32xf32>
    %103 = arith.negf %102 : vector<8x32xf32>
    %104 = math.exp %103 : vector<8x32xf32>
    %cst_45 = arith.constant 1.000000e+00 : f32
    %105 = vector.broadcast %cst_45 : f32 to vector<8x32xf32>
    %106 = arith.addf %105, %104 : vector<8x32xf32>
    %107 = arith.divf %105, %106 : vector<8x32xf32>
    %108 = vector.extract_strided_slice %101 {offsets = [0, 32], sizes = [8, 32], strides = [1, 1]} : vector<8x128xf32> to vector<8x32xf32>
    %109 = arith.negf %108 : vector<8x32xf32>
    %110 = math.exp %109 : vector<8x32xf32>
    %cst_46 = arith.constant 1.000000e+00 : f32
    %111 = vector.broadcast %cst_46 : f32 to vector<8x32xf32>
    %112 = arith.addf %111, %110 : vector<8x32xf32>
    %113 = arith.divf %111, %112 : vector<8x32xf32>
    %114 = vector.extract_strided_slice %101 {offsets = [0, 64], sizes = [8, 32], strides = [1, 1]} : vector<8x128xf32> to vector<8x32xf32>
    %115 = math.tanh %114 : vector<8x32xf32>
    %116 = vector.extract_strided_slice %101 {offsets = [0, 96], sizes = [8, 32], strides = [1, 1]} : vector<8x128xf32> to vector<8x32xf32>
    %117 = arith.negf %116 : vector<8x32xf32>
    %118 = math.exp %117 : vector<8x32xf32>
    %cst_47 = arith.constant 1.000000e+00 : f32
    %119 = vector.broadcast %cst_47 : f32 to vector<8x32xf32>
    %120 = arith.addf %119, %118 : vector<8x32xf32>
    %121 = arith.divf %119, %120 : vector<8x32xf32>
    %122 = arith.mulf %113, %96 : vector<8x32xf32>
    %123 = arith.mulf %107, %115 : vector<8x32xf32>
    %124 = arith.addf %122, %123 : vector<8x32xf32>
    %125 = math.tanh %124 : vector<8x32xf32>
    %126 = arith.mulf %121, %125 : vector<8x32xf32>
    %127 = arith.index_cast %c2_i32 : i32 to index
    %c0_48 = arith.constant 0 : index
    %c0_49 = arith.constant 0 : index
    %128 = vector.load %arg1[%127, %c0_48, %c0_49] : memref<8x8x32xf32, #tpu.memory_space<vmem>>, vector<1x8x32xf32>
    %129 = vector.shape_cast %128 : vector<1x8x32xf32> to vector<8x32xf32>
    %cst_50 = arith.constant 0.000000e+00 : f32
    %130 = vector.broadcast %cst_50 : f32 to vector<8x32xf32>
    %131 = arith.cmpf ogt, %129, %130 : vector<8x32xf32>
    %132 = arith.select %131, %126, %93 : vector<8x32xi1>, vector<8x32xf32>
    %cst_51 = arith.constant 0.000000e+00 : f32
    %133 = vector.broadcast %cst_51 : f32 to vector<8x32xf32>
    %134 = arith.cmpf ogt, %129, %133 : vector<8x32xf32>
    %135 = arith.select %134, %124, %96 : vector<8x32xi1>, vector<8x32xf32>
    %c3_i32 = arith.constant 3 : i32
    %136 = arith.index_cast %c3_i32 : i32 to index
    %c0_52 = arith.constant 0 : index
    %c0_53 = arith.constant 0 : index
    %137 = vector.load %arg11[%136, %c0_52, %c0_53] : memref<8x8x128xf32, #tpu.memory_space<vmem>>, vector<1x8x128xf32>
    %138 = vector.shape_cast %137 : vector<1x8x128xf32> to vector<8x128xf32>
    %cst_54 = arith.constant dense<0.000000e+00> : vector<8x128xf32>
    %139 = tpu.matmul %132, %16, %cst_54 {dimension_numbers = #tpu.dot_dimension_numbers<[1], [0], [0], [1], [0, 0, 1, 1], [], []>} : vector<8x32xf32>, vector<32x128xf32>, vector<8x128xf32> -> vector<8x128xf32>
    %140 = arith.addf %138, %139 : vector<8x128xf32>
    %141 = vector.extract_strided_slice %140 {offsets = [0, 0], sizes = [8, 32], strides = [1, 1]} : vector<8x128xf32> to vector<8x32xf32>
    %142 = arith.negf %141 : vector<8x32xf32>
    %143 = math.exp %142 : vector<8x32xf32>
    %cst_55 = arith.constant 1.000000e+00 : f32
    %144 = vector.broadcast %cst_55 : f32 to vector<8x32xf32>
    %145 = arith.addf %144, %143 : vector<8x32xf32>
    %146 = arith.divf %144, %145 : vector<8x32xf32>
    %147 = vector.extract_strided_slice %140 {offsets = [0, 32], sizes = [8, 32], strides = [1, 1]} : vector<8x128xf32> to vector<8x32xf32>
    %148 = arith.negf %147 : vector<8x32xf32>
    %149 = math.exp %148 : vector<8x32xf32>
    %cst_56 = arith.constant 1.000000e+00 : f32
    %150 = vector.broadcast %cst_56 : f32 to vector<8x32xf32>
    %151 = arith.addf %150, %149 : vector<8x32xf32>
    %152 = arith.divf %150, %151 : vector<8x32xf32>
    %153 = vector.extract_strided_slice %140 {offsets = [0, 64], sizes = [8, 32], strides = [1, 1]} : vector<8x128xf32> to vector<8x32xf32>
    %154 = math.tanh %153 : vector<8x32xf32>
    %155 = vector.extract_strided_slice %140 {offsets = [0, 96], sizes = [8, 32], strides = [1, 1]} : vector<8x128xf32> to vector<8x32xf32>
    %156 = arith.negf %155 : vector<8x32xf32>
    %157 = math.exp %156 : vector<8x32xf32>
    %cst_57 = arith.constant 1.000000e+00 : f32
    %158 = vector.broadcast %cst_57 : f32 to vector<8x32xf32>
    %159 = arith.addf %158, %157 : vector<8x32xf32>
    %160 = arith.divf %158, %159 : vector<8x32xf32>
    %161 = arith.mulf %152, %135 : vector<8x32xf32>
    %162 = arith.mulf %146, %154 : vector<8x32xf32>
    %163 = arith.addf %161, %162 : vector<8x32xf32>
    %164 = math.tanh %163 : vector<8x32xf32>
    %165 = arith.mulf %160, %164 : vector<8x32xf32>
    %166 = arith.index_cast %c3_i32 : i32 to index
    %c0_58 = arith.constant 0 : index
    %c0_59 = arith.constant 0 : index
    %167 = vector.load %arg1[%166, %c0_58, %c0_59] : memref<8x8x32xf32, #tpu.memory_space<vmem>>, vector<1x8x32xf32>
    %168 = vector.shape_cast %167 : vector<1x8x32xf32> to vector<8x32xf32>
    %cst_60 = arith.constant 0.000000e+00 : f32
    %169 = vector.broadcast %cst_60 : f32 to vector<8x32xf32>
    %170 = arith.cmpf ogt, %168, %169 : vector<8x32xf32>
    %171 = arith.select %170, %165, %132 : vector<8x32xi1>, vector<8x32xf32>
    %cst_61 = arith.constant 0.000000e+00 : f32
    %172 = vector.broadcast %cst_61 : f32 to vector<8x32xf32>
    %173 = arith.cmpf ogt, %168, %172 : vector<8x32xf32>
    %174 = arith.select %173, %163, %135 : vector<8x32xi1>, vector<8x32xf32>
    %c4_i32 = arith.constant 4 : i32
    %175 = arith.index_cast %c4_i32 : i32 to index
    %c0_62 = arith.constant 0 : index
    %c0_63 = arith.constant 0 : index
    %176 = vector.load %arg11[%175, %c0_62, %c0_63] : memref<8x8x128xf32, #tpu.memory_space<vmem>>, vector<1x8x128xf32>
    %177 = vector.shape_cast %176 : vector<1x8x128xf32> to vector<8x128xf32>
    %cst_64 = arith.constant dense<0.000000e+00> : vector<8x128xf32>
    %178 = tpu.matmul %171, %16, %cst_64 {dimension_numbers = #tpu.dot_dimension_numbers<[1], [0], [0], [1], [0, 0, 1, 1], [], []>} : vector<8x32xf32>, vector<32x128xf32>, vector<8x128xf32> -> vector<8x128xf32>
    %179 = arith.addf %177, %178 : vector<8x128xf32>
    %180 = vector.extract_strided_slice %179 {offsets = [0, 0], sizes = [8, 32], strides = [1, 1]} : vector<8x128xf32> to vector<8x32xf32>
    %181 = arith.negf %180 : vector<8x32xf32>
    %182 = math.exp %181 : vector<8x32xf32>
    %cst_65 = arith.constant 1.000000e+00 : f32
    %183 = vector.broadcast %cst_65 : f32 to vector<8x32xf32>
    %184 = arith.addf %183, %182 : vector<8x32xf32>
    %185 = arith.divf %183, %184 : vector<8x32xf32>
    %186 = vector.extract_strided_slice %179 {offsets = [0, 32], sizes = [8, 32], strides = [1, 1]} : vector<8x128xf32> to vector<8x32xf32>
    %187 = arith.negf %186 : vector<8x32xf32>
    %188 = math.exp %187 : vector<8x32xf32>
    %cst_66 = arith.constant 1.000000e+00 : f32
    %189 = vector.broadcast %cst_66 : f32 to vector<8x32xf32>
    %190 = arith.addf %189, %188 : vector<8x32xf32>
    %191 = arith.divf %189, %190 : vector<8x32xf32>
    %192 = vector.extract_strided_slice %179 {offsets = [0, 64], sizes = [8, 32], strides = [1, 1]} : vector<8x128xf32> to vector<8x32xf32>
    %193 = math.tanh %192 : vector<8x32xf32>
    %194 = vector.extract_strided_slice %179 {offsets = [0, 96], sizes = [8, 32], strides = [1, 1]} : vector<8x128xf32> to vector<8x32xf32>
    %195 = arith.negf %194 : vector<8x32xf32>
    %196 = math.exp %195 : vector<8x32xf32>
    %cst_67 = arith.constant 1.000000e+00 : f32
    %197 = vector.broadcast %cst_67 : f32 to vector<8x32xf32>
    %198 = arith.addf %197, %196 : vector<8x32xf32>
    %199 = arith.divf %197, %198 : vector<8x32xf32>
    %200 = arith.mulf %191, %174 : vector<8x32xf32>
    %201 = arith.mulf %185, %193 : vector<8x32xf32>
    %202 = arith.addf %200, %201 : vector<8x32xf32>
    %203 = math.tanh %202 : vector<8x32xf32>
    %204 = arith.mulf %199, %203 : vector<8x32xf32>
    %205 = arith.index_cast %c4_i32 : i32 to index
    %c0_68 = arith.constant 0 : index
    %c0_69 = arith.constant 0 : index
    %206 = vector.load %arg1[%205, %c0_68, %c0_69] : memref<8x8x32xf32, #tpu.memory_space<vmem>>, vector<1x8x32xf32>
    %207 = vector.shape_cast %206 : vector<1x8x32xf32> to vector<8x32xf32>
    %cst_70 = arith.constant 0.000000e+00 : f32
    %208 = vector.broadcast %cst_70 : f32 to vector<8x32xf32>
    %209 = arith.cmpf ogt, %207, %208 : vector<8x32xf32>
    %210 = arith.select %209, %204, %171 : vector<8x32xi1>, vector<8x32xf32>
    %cst_71 = arith.constant 0.000000e+00 : f32
    %211 = vector.broadcast %cst_71 : f32 to vector<8x32xf32>
    %212 = arith.cmpf ogt, %207, %211 : vector<8x32xf32>
    %213 = arith.select %212, %202, %174 : vector<8x32xi1>, vector<8x32xf32>
    %c5_i32 = arith.constant 5 : i32
    %214 = arith.index_cast %c5_i32 : i32 to index
    %c0_72 = arith.constant 0 : index
    %c0_73 = arith.constant 0 : index
    %215 = vector.load %arg11[%214, %c0_72, %c0_73] : memref<8x8x128xf32, #tpu.memory_space<vmem>>, vector<1x8x128xf32>
    %216 = vector.shape_cast %215 : vector<1x8x128xf32> to vector<8x128xf32>
    %cst_74 = arith.constant dense<0.000000e+00> : vector<8x128xf32>
    %217 = tpu.matmul %210, %16, %cst_74 {dimension_numbers = #tpu.dot_dimension_numbers<[1], [0], [0], [1], [0, 0, 1, 1], [], []>} : vector<8x32xf32>, vector<32x128xf32>, vector<8x128xf32> -> vector<8x128xf32>
    %218 = arith.addf %216, %217 : vector<8x128xf32>
    %219 = vector.extract_strided_slice %218 {offsets = [0, 0], sizes = [8, 32], strides = [1, 1]} : vector<8x128xf32> to vector<8x32xf32>
    %220 = arith.negf %219 : vector<8x32xf32>
    %221 = math.exp %220 : vector<8x32xf32>
    %cst_75 = arith.constant 1.000000e+00 : f32
    %222 = vector.broadcast %cst_75 : f32 to vector<8x32xf32>
    %223 = arith.addf %222, %221 : vector<8x32xf32>
    %224 = arith.divf %222, %223 : vector<8x32xf32>
    %225 = vector.extract_strided_slice %218 {offsets = [0, 32], sizes = [8, 32], strides = [1, 1]} : vector<8x128xf32> to vector<8x32xf32>
    %226 = arith.negf %225 : vector<8x32xf32>
    %227 = math.exp %226 : vector<8x32xf32>
    %cst_76 = arith.constant 1.000000e+00 : f32
    %228 = vector.broadcast %cst_76 : f32 to vector<8x32xf32>
    %229 = arith.addf %228, %227 : vector<8x32xf32>
    %230 = arith.divf %228, %229 : vector<8x32xf32>
    %231 = vector.extract_strided_slice %218 {offsets = [0, 64], sizes = [8, 32], strides = [1, 1]} : vector<8x128xf32> to vector<8x32xf32>
    %232 = math.tanh %231 : vector<8x32xf32>
    %233 = vector.extract_strided_slice %218 {offsets = [0, 96], sizes = [8, 32], strides = [1, 1]} : vector<8x128xf32> to vector<8x32xf32>
    %234 = arith.negf %233 : vector<8x32xf32>
    %235 = math.exp %234 : vector<8x32xf32>
    %cst_77 = arith.constant 1.000000e+00 : f32
    %236 = vector.broadcast %cst_77 : f32 to vector<8x32xf32>
    %237 = arith.addf %236, %235 : vector<8x32xf32>
    %238 = arith.divf %236, %237 : vector<8x32xf32>
    %239 = arith.mulf %230, %213 : vector<8x32xf32>
    %240 = arith.mulf %224, %232 : vector<8x32xf32>
    %241 = arith.addf %239, %240 : vector<8x32xf32>
    %242 = math.tanh %241 : vector<8x32xf32>
    %243 = arith.mulf %238, %242 : vector<8x32xf32>
    %244 = arith.index_cast %c5_i32 : i32 to index
    %c0_78 = arith.constant 0 : index
    %c0_79 = arith.constant 0 : index
    %245 = vector.load %arg1[%244, %c0_78, %c0_79] : memref<8x8x32xf32, #tpu.memory_space<vmem>>, vector<1x8x32xf32>
    %246 = vector.shape_cast %245 : vector<1x8x32xf32> to vector<8x32xf32>
    %cst_80 = arith.constant 0.000000e+00 : f32
    %247 = vector.broadcast %cst_80 : f32 to vector<8x32xf32>
    %248 = arith.cmpf ogt, %246, %247 : vector<8x32xf32>
    %249 = arith.select %248, %243, %210 : vector<8x32xi1>, vector<8x32xf32>
    %cst_81 = arith.constant 0.000000e+00 : f32
    %250 = vector.broadcast %cst_81 : f32 to vector<8x32xf32>
    %251 = arith.cmpf ogt, %246, %250 : vector<8x32xf32>
    %252 = arith.select %251, %241, %213 : vector<8x32xi1>, vector<8x32xf32>
    %c6_i32 = arith.constant 6 : i32
    %253 = arith.index_cast %c6_i32 : i32 to index
    %c0_82 = arith.constant 0 : index
    %c0_83 = arith.constant 0 : index
    %254 = vector.load %arg11[%253, %c0_82, %c0_83] : memref<8x8x128xf32, #tpu.memory_space<vmem>>, vector<1x8x128xf32>
    %255 = vector.shape_cast %254 : vector<1x8x128xf32> to vector<8x128xf32>
    %cst_84 = arith.constant dense<0.000000e+00> : vector<8x128xf32>
    %256 = tpu.matmul %249, %16, %cst_84 {dimension_numbers = #tpu.dot_dimension_numbers<[1], [0], [0], [1], [0, 0, 1, 1], [], []>} : vector<8x32xf32>, vector<32x128xf32>, vector<8x128xf32> -> vector<8x128xf32>
    %257 = arith.addf %255, %256 : vector<8x128xf32>
    %258 = vector.extract_strided_slice %257 {offsets = [0, 0], sizes = [8, 32], strides = [1, 1]} : vector<8x128xf32> to vector<8x32xf32>
    %259 = arith.negf %258 : vector<8x32xf32>
    %260 = math.exp %259 : vector<8x32xf32>
    %cst_85 = arith.constant 1.000000e+00 : f32
    %261 = vector.broadcast %cst_85 : f32 to vector<8x32xf32>
    %262 = arith.addf %261, %260 : vector<8x32xf32>
    %263 = arith.divf %261, %262 : vector<8x32xf32>
    %264 = vector.extract_strided_slice %257 {offsets = [0, 32], sizes = [8, 32], strides = [1, 1]} : vector<8x128xf32> to vector<8x32xf32>
    %265 = arith.negf %264 : vector<8x32xf32>
    %266 = math.exp %265 : vector<8x32xf32>
    %cst_86 = arith.constant 1.000000e+00 : f32
    %267 = vector.broadcast %cst_86 : f32 to vector<8x32xf32>
    %268 = arith.addf %267, %266 : vector<8x32xf32>
    %269 = arith.divf %267, %268 : vector<8x32xf32>
    %270 = vector.extract_strided_slice %257 {offsets = [0, 64], sizes = [8, 32], strides = [1, 1]} : vector<8x128xf32> to vector<8x32xf32>
    %271 = math.tanh %270 : vector<8x32xf32>
    %272 = vector.extract_strided_slice %257 {offsets = [0, 96], sizes = [8, 32], strides = [1, 1]} : vector<8x128xf32> to vector<8x32xf32>
    %273 = arith.negf %272 : vector<8x32xf32>
    %274 = math.exp %273 : vector<8x32xf32>
    %cst_87 = arith.constant 1.000000e+00 : f32
    %275 = vector.broadcast %cst_87 : f32 to vector<8x32xf32>
    %276 = arith.addf %275, %274 : vector<8x32xf32>
    %277 = arith.divf %275, %276 : vector<8x32xf32>
    %278 = arith.mulf %269, %252 : vector<8x32xf32>
    %279 = arith.mulf %263, %271 : vector<8x32xf32>
    %280 = arith.addf %278, %279 : vector<8x32xf32>
    %281 = math.tanh %280 : vector<8x32xf32>
    %282 = arith.mulf %277, %281 : vector<8x32xf32>
    %283 = arith.index_cast %c6_i32 : i32 to index
    %c0_88 = arith.constant 0 : index
    %c0_89 = arith.constant 0 : index
    %284 = vector.load %arg1[%283, %c0_88, %c0_89] : memref<8x8x32xf32, #tpu.memory_space<vmem>>, vector<1x8x32xf32>
    %285 = vector.shape_cast %284 : vector<1x8x32xf32> to vector<8x32xf32>
    %cst_90 = arith.constant 0.000000e+00 : f32
    %286 = vector.broadcast %cst_90 : f32 to vector<8x32xf32>
    %287 = arith.cmpf ogt, %285, %286 : vector<8x32xf32>
    %288 = arith.select %287, %282, %249 : vector<8x32xi1>, vector<8x32xf32>
    %cst_91 = arith.constant 0.000000e+00 : f32
    %289 = vector.broadcast %cst_91 : f32 to vector<8x32xf32>
    %290 = arith.cmpf ogt, %285, %289 : vector<8x32xf32>
    %291 = arith.select %290, %280, %252 : vector<8x32xi1>, vector<8x32xf32>
    %c7_i32 = arith.constant 7 : i32
    %292 = arith.index_cast %c7_i32 : i32 to index
    %c0_92 = arith.constant 0 : index
    %c0_93 = arith.constant 0 : index
    %293 = vector.load %arg11[%292, %c0_92, %c0_93] : memref<8x8x128xf32, #tpu.memory_space<vmem>>, vector<1x8x128xf32>
    %294 = vector.shape_cast %293 : vector<1x8x128xf32> to vector<8x128xf32>
    %cst_94 = arith.constant dense<0.000000e+00> : vector<8x128xf32>
    %295 = tpu.matmul %288, %16, %cst_94 {dimension_numbers = #tpu.dot_dimension_numbers<[1], [0], [0], [1], [0, 0, 1, 1], [], []>} : vector<8x32xf32>, vector<32x128xf32>, vector<8x128xf32> -> vector<8x128xf32>
    %296 = arith.addf %294, %295 : vector<8x128xf32>
    %297 = vector.extract_strided_slice %296 {offsets = [0, 0], sizes = [8, 32], strides = [1, 1]} : vector<8x128xf32> to vector<8x32xf32>
    %298 = arith.negf %297 : vector<8x32xf32>
    %299 = math.exp %298 : vector<8x32xf32>
    %cst_95 = arith.constant 1.000000e+00 : f32
    %300 = vector.broadcast %cst_95 : f32 to vector<8x32xf32>
    %301 = arith.addf %300, %299 : vector<8x32xf32>
    %302 = arith.divf %300, %301 : vector<8x32xf32>
    %303 = vector.extract_strided_slice %296 {offsets = [0, 32], sizes = [8, 32], strides = [1, 1]} : vector<8x128xf32> to vector<8x32xf32>
    %304 = arith.negf %303 : vector<8x32xf32>
    %305 = math.exp %304 : vector<8x32xf32>
    %cst_96 = arith.constant 1.000000e+00 : f32
    %306 = vector.broadcast %cst_96 : f32 to vector<8x32xf32>
    %307 = arith.addf %306, %305 : vector<8x32xf32>
    %308 = arith.divf %306, %307 : vector<8x32xf32>
    %309 = vector.extract_strided_slice %296 {offsets = [0, 64], sizes = [8, 32], strides = [1, 1]} : vector<8x128xf32> to vector<8x32xf32>
    %310 = math.tanh %309 : vector<8x32xf32>
    %311 = vector.extract_strided_slice %296 {offsets = [0, 96], sizes = [8, 32], strides = [1, 1]} : vector<8x128xf32> to vector<8x32xf32>
    %312 = arith.negf %311 : vector<8x32xf32>
    %313 = math.exp %312 : vector<8x32xf32>
    %cst_97 = arith.constant 1.000000e+00 : f32
    %314 = vector.broadcast %cst_97 : f32 to vector<8x32xf32>
    %315 = arith.addf %314, %313 : vector<8x32xf32>
    %316 = arith.divf %314, %315 : vector<8x32xf32>
    %317 = arith.mulf %308, %291 : vector<8x32xf32>
    %318 = arith.mulf %302, %310 : vector<8x32xf32>
    %319 = arith.addf %317, %318 : vector<8x32xf32>
    %320 = math.tanh %319 : vector<8x32xf32>
    %321 = arith.mulf %316, %320 : vector<8x32xf32>
    %322 = arith.index_cast %c7_i32 : i32 to index
    %c0_98 = arith.constant 0 : index
    %c0_99 = arith.constant 0 : index
    %323 = vector.load %arg1[%322, %c0_98, %c0_99] : memref<8x8x32xf32, #tpu.memory_space<vmem>>, vector<1x8x32xf32>
    %324 = vector.shape_cast %323 : vector<1x8x32xf32> to vector<8x32xf32>
    %cst_100 = arith.constant 0.000000e+00 : f32
    %325 = vector.broadcast %cst_100 : f32 to vector<8x32xf32>
    %326 = arith.cmpf ogt, %324, %325 : vector<8x32xf32>
    %327 = arith.select %326, %321, %288 : vector<8x32xi1>, vector<8x32xf32>
    %cst_101 = arith.constant 0.000000e+00 : f32
    %328 = vector.broadcast %cst_101 : f32 to vector<8x32xf32>
    %329 = arith.cmpf ogt, %324, %328 : vector<8x32xf32>
    %330 = arith.select %329, %319, %291 : vector<8x32xi1>, vector<8x32xf32>
    %c8_i32 = arith.constant 8 : i32
    %c0_i32_102 = arith.constant 0 : i32
    %c7_i32_103 = arith.constant 7 : i32
    %331 = arith.subi %c7_i32_103, %c0_i32_102 : i32
    %332 = arith.index_cast %331 : i32 to index
    %c0_104 = arith.constant 0 : index
    %c0_105 = arith.constant 0 : index
    %333 = vector.load %arg12[%332, %c0_104, %c0_105] : memref<8x8x128xf32, #tpu.memory_space<vmem>>, vector<1x8x128xf32>
    %334 = vector.shape_cast %333 : vector<1x8x128xf32> to vector<8x128xf32>
    %cst_106 = arith.constant dense<0.000000e+00> : vector<8x128xf32>
    %335 = tpu.matmul %18, %17, %cst_106 {dimension_numbers = #tpu.dot_dimension_numbers<[1], [0], [0], [1], [0, 0, 1, 1], [], []>} : vector<8x32xf32>, vector<32x128xf32>, vector<8x128xf32> -> vector<8x128xf32>
    %336 = arith.addf %334, %335 : vector<8x128xf32>
    %337 = vector.extract_strided_slice %336 {offsets = [0, 0], sizes = [8, 32], strides = [1, 1]} : vector<8x128xf32> to vector<8x32xf32>
    %338 = arith.negf %337 : vector<8x32xf32>
    %339 = math.exp %338 : vector<8x32xf32>
    %cst_107 = arith.constant 1.000000e+00 : f32
    %340 = vector.broadcast %cst_107 : f32 to vector<8x32xf32>
    %341 = arith.addf %340, %339 : vector<8x32xf32>
    %342 = arith.divf %340, %341 : vector<8x32xf32>
    %343 = vector.extract_strided_slice %336 {offsets = [0, 32], sizes = [8, 32], strides = [1, 1]} : vector<8x128xf32> to vector<8x32xf32>
    %344 = arith.negf %343 : vector<8x32xf32>
    %345 = math.exp %344 : vector<8x32xf32>
    %cst_108 = arith.constant 1.000000e+00 : f32
    %346 = vector.broadcast %cst_108 : f32 to vector<8x32xf32>
    %347 = arith.addf %346, %345 : vector<8x32xf32>
    %348 = arith.divf %346, %347 : vector<8x32xf32>
    %349 = vector.extract_strided_slice %336 {offsets = [0, 64], sizes = [8, 32], strides = [1, 1]} : vector<8x128xf32> to vector<8x32xf32>
    %350 = math.tanh %349 : vector<8x32xf32>
    %351 = vector.extract_strided_slice %336 {offsets = [0, 96], sizes = [8, 32], strides = [1, 1]} : vector<8x128xf32> to vector<8x32xf32>
    %352 = arith.negf %351 : vector<8x32xf32>
    %353 = math.exp %352 : vector<8x32xf32>
    %cst_109 = arith.constant 1.000000e+00 : f32
    %354 = vector.broadcast %cst_109 : f32 to vector<8x32xf32>
    %355 = arith.addf %354, %353 : vector<8x32xf32>
    %356 = arith.divf %354, %355 : vector<8x32xf32>
    %357 = arith.mulf %348, %18 : vector<8x32xf32>
    %358 = arith.mulf %342, %350 : vector<8x32xf32>
    %359 = arith.addf %357, %358 : vector<8x32xf32>
    %360 = math.tanh %359 : vector<8x32xf32>
    %361 = arith.mulf %356, %360 : vector<8x32xf32>
    %362 = arith.index_cast %331 : i32 to index
    %c0_110 = arith.constant 0 : index
    %c0_111 = arith.constant 0 : index
    %363 = vector.load %arg1[%362, %c0_110, %c0_111] : memref<8x8x32xf32, #tpu.memory_space<vmem>>, vector<1x8x32xf32>
    %364 = vector.shape_cast %363 : vector<1x8x32xf32> to vector<8x32xf32>
    %cst_112 = arith.constant 0.000000e+00 : f32
    %365 = vector.broadcast %cst_112 : f32 to vector<8x32xf32>
    %366 = arith.cmpf ogt, %364, %365 : vector<8x32xf32>
    %367 = arith.select %366, %361, %18 : vector<8x32xi1>, vector<8x32xf32>
    %cst_113 = arith.constant 0.000000e+00 : f32
    %368 = vector.broadcast %cst_113 : f32 to vector<8x32xf32>
    %369 = arith.cmpf ogt, %364, %368 : vector<8x32xf32>
    %370 = arith.select %369, %359, %18 : vector<8x32xi1>, vector<8x32xf32>
    %c1_i32_114 = arith.constant 1 : i32
    %c7_i32_115 = arith.constant 7 : i32
    %371 = arith.subi %c7_i32_115, %c1_i32_114 : i32
    %372 = arith.index_cast %371 : i32 to index
    %c0_116 = arith.constant 0 : index
    %c0_117 = arith.constant 0 : index
    %373 = vector.load %arg12[%372, %c0_116, %c0_117] : memref<8x8x128xf32, #tpu.memory_space<vmem>>, vector<1x8x128xf32>
    %374 = vector.shape_cast %373 : vector<1x8x128xf32> to vector<8x128xf32>
    %cst_118 = arith.constant dense<0.000000e+00> : vector<8x128xf32>
    %375 = tpu.matmul %367, %17, %cst_118 {dimension_numbers = #tpu.dot_dimension_numbers<[1], [0], [0], [1], [0, 0, 1, 1], [], []>} : vector<8x32xf32>, vector<32x128xf32>, vector<8x128xf32> -> vector<8x128xf32>
    %376 = arith.addf %374, %375 : vector<8x128xf32>
    %377 = vector.extract_strided_slice %376 {offsets = [0, 0], sizes = [8, 32], strides = [1, 1]} : vector<8x128xf32> to vector<8x32xf32>
    %378 = arith.negf %377 : vector<8x32xf32>
    %379 = math.exp %378 : vector<8x32xf32>
    %cst_119 = arith.constant 1.000000e+00 : f32
    %380 = vector.broadcast %cst_119 : f32 to vector<8x32xf32>
    %381 = arith.addf %380, %379 : vector<8x32xf32>
    %382 = arith.divf %380, %381 : vector<8x32xf32>
    %383 = vector.extract_strided_slice %376 {offsets = [0, 32], sizes = [8, 32], strides = [1, 1]} : vector<8x128xf32> to vector<8x32xf32>
    %384 = arith.negf %383 : vector<8x32xf32>
    %385 = math.exp %384 : vector<8x32xf32>
    %cst_120 = arith.constant 1.000000e+00 : f32
    %386 = vector.broadcast %cst_120 : f32 to vector<8x32xf32>
    %387 = arith.addf %386, %385 : vector<8x32xf32>
    %388 = arith.divf %386, %387 : vector<8x32xf32>
    %389 = vector.extract_strided_slice %376 {offsets = [0, 64], sizes = [8, 32], strides = [1, 1]} : vector<8x128xf32> to vector<8x32xf32>
    %390 = math.tanh %389 : vector<8x32xf32>
    %391 = vector.extract_strided_slice %376 {offsets = [0, 96], sizes = [8, 32], strides = [1, 1]} : vector<8x128xf32> to vector<8x32xf32>
    %392 = arith.negf %391 : vector<8x32xf32>
    %393 = math.exp %392 : vector<8x32xf32>
    %cst_121 = arith.constant 1.000000e+00 : f32
    %394 = vector.broadcast %cst_121 : f32 to vector<8x32xf32>
    %395 = arith.addf %394, %393 : vector<8x32xf32>
    %396 = arith.divf %394, %395 : vector<8x32xf32>
    %397 = arith.mulf %388, %370 : vector<8x32xf32>
    %398 = arith.mulf %382, %390 : vector<8x32xf32>
    %399 = arith.addf %397, %398 : vector<8x32xf32>
    %400 = math.tanh %399 : vector<8x32xf32>
    %401 = arith.mulf %396, %400 : vector<8x32xf32>
    %402 = arith.index_cast %371 : i32 to index
    %c0_122 = arith.constant 0 : index
    %c0_123 = arith.constant 0 : index
    %403 = vector.load %arg1[%402, %c0_122, %c0_123] : memref<8x8x32xf32, #tpu.memory_space<vmem>>, vector<1x8x32xf32>
    %404 = vector.shape_cast %403 : vector<1x8x32xf32> to vector<8x32xf32>
    %cst_124 = arith.constant 0.000000e+00 : f32
    %405 = vector.broadcast %cst_124 : f32 to vector<8x32xf32>
    %406 = arith.cmpf ogt, %404, %405 : vector<8x32xf32>
    %407 = arith.select %406, %401, %367 : vector<8x32xi1>, vector<8x32xf32>
    %cst_125 = arith.constant 0.000000e+00 : f32
    %408 = vector.broadcast %cst_125 : f32 to vector<8x32xf32>
    %409 = arith.cmpf ogt, %404, %408 : vector<8x32xf32>
    %410 = arith.select %409, %399, %370 : vector<8x32xi1>, vector<8x32xf32>
    %c2_i32_126 = arith.constant 2 : i32
    %c7_i32_127 = arith.constant 7 : i32
    %411 = arith.subi %c7_i32_127, %c2_i32_126 : i32
    %412 = arith.index_cast %411 : i32 to index
    %c0_128 = arith.constant 0 : index
    %c0_129 = arith.constant 0 : index
    %413 = vector.load %arg12[%412, %c0_128, %c0_129] : memref<8x8x128xf32, #tpu.memory_space<vmem>>, vector<1x8x128xf32>
    %414 = vector.shape_cast %413 : vector<1x8x128xf32> to vector<8x128xf32>
    %cst_130 = arith.constant dense<0.000000e+00> : vector<8x128xf32>
    %415 = tpu.matmul %407, %17, %cst_130 {dimension_numbers = #tpu.dot_dimension_numbers<[1], [0], [0], [1], [0, 0, 1, 1], [], []>} : vector<8x32xf32>, vector<32x128xf32>, vector<8x128xf32> -> vector<8x128xf32>
    %416 = arith.addf %414, %415 : vector<8x128xf32>
    %417 = vector.extract_strided_slice %416 {offsets = [0, 0], sizes = [8, 32], strides = [1, 1]} : vector<8x128xf32> to vector<8x32xf32>
    %418 = arith.negf %417 : vector<8x32xf32>
    %419 = math.exp %418 : vector<8x32xf32>
    %cst_131 = arith.constant 1.000000e+00 : f32
    %420 = vector.broadcast %cst_131 : f32 to vector<8x32xf32>
    %421 = arith.addf %420, %419 : vector<8x32xf32>
    %422 = arith.divf %420, %421 : vector<8x32xf32>
    %423 = vector.extract_strided_slice %416 {offsets = [0, 32], sizes = [8, 32], strides = [1, 1]} : vector<8x128xf32> to vector<8x32xf32>
    %424 = arith.negf %423 : vector<8x32xf32>
    %425 = math.exp %424 : vector<8x32xf32>
    %cst_132 = arith.constant 1.000000e+00 : f32
    %426 = vector.broadcast %cst_132 : f32 to vector<8x32xf32>
    %427 = arith.addf %426, %425 : vector<8x32xf32>
    %428 = arith.divf %426, %427 : vector<8x32xf32>
    %429 = vector.extract_strided_slice %416 {offsets = [0, 64], sizes = [8, 32], strides = [1, 1]} : vector<8x128xf32> to vector<8x32xf32>
    %430 = math.tanh %429 : vector<8x32xf32>
    %431 = vector.extract_strided_slice %416 {offsets = [0, 96], sizes = [8, 32], strides = [1, 1]} : vector<8x128xf32> to vector<8x32xf32>
    %432 = arith.negf %431 : vector<8x32xf32>
    %433 = math.exp %432 : vector<8x32xf32>
    %cst_133 = arith.constant 1.000000e+00 : f32
    %434 = vector.broadcast %cst_133 : f32 to vector<8x32xf32>
    %435 = arith.addf %434, %433 : vector<8x32xf32>
    %436 = arith.divf %434, %435 : vector<8x32xf32>
    %437 = arith.mulf %428, %410 : vector<8x32xf32>
    %438 = arith.mulf %422, %430 : vector<8x32xf32>
    %439 = arith.addf %437, %438 : vector<8x32xf32>
    %440 = math.tanh %439 : vector<8x32xf32>
    %441 = arith.mulf %436, %440 : vector<8x32xf32>
    %442 = arith.index_cast %411 : i32 to index
    %c0_134 = arith.constant 0 : index
    %c0_135 = arith.constant 0 : index
    %443 = vector.load %arg1[%442, %c0_134, %c0_135] : memref<8x8x32xf32, #tpu.memory_space<vmem>>, vector<1x8x32xf32>
    %444 = vector.shape_cast %443 : vector<1x8x32xf32> to vector<8x32xf32>
    %cst_136 = arith.constant 0.000000e+00 : f32
    %445 = vector.broadcast %cst_136 : f32 to vector<8x32xf32>
    %446 = arith.cmpf ogt, %444, %445 : vector<8x32xf32>
    %447 = arith.select %446, %441, %407 : vector<8x32xi1>, vector<8x32xf32>
    %cst_137 = arith.constant 0.000000e+00 : f32
    %448 = vector.broadcast %cst_137 : f32 to vector<8x32xf32>
    %449 = arith.cmpf ogt, %444, %448 : vector<8x32xf32>
    %450 = arith.select %449, %439, %410 : vector<8x32xi1>, vector<8x32xf32>
    %c3_i32_138 = arith.constant 3 : i32
    %c7_i32_139 = arith.constant 7 : i32
    %451 = arith.subi %c7_i32_139, %c3_i32_138 : i32
    %452 = arith.index_cast %451 : i32 to index
    %c0_140 = arith.constant 0 : index
    %c0_141 = arith.constant 0 : index
    %453 = vector.load %arg12[%452, %c0_140, %c0_141] : memref<8x8x128xf32, #tpu.memory_space<vmem>>, vector<1x8x128xf32>
    %454 = vector.shape_cast %453 : vector<1x8x128xf32> to vector<8x128xf32>
    %cst_142 = arith.constant dense<0.000000e+00> : vector<8x128xf32>
    %455 = tpu.matmul %447, %17, %cst_142 {dimension_numbers = #tpu.dot_dimension_numbers<[1], [0], [0], [1], [0, 0, 1, 1], [], []>} : vector<8x32xf32>, vector<32x128xf32>, vector<8x128xf32> -> vector<8x128xf32>
    %456 = arith.addf %454, %455 : vector<8x128xf32>
    %457 = vector.extract_strided_slice %456 {offsets = [0, 0], sizes = [8, 32], strides = [1, 1]} : vector<8x128xf32> to vector<8x32xf32>
    %458 = arith.negf %457 : vector<8x32xf32>
    %459 = math.exp %458 : vector<8x32xf32>
    %cst_143 = arith.constant 1.000000e+00 : f32
    %460 = vector.broadcast %cst_143 : f32 to vector<8x32xf32>
    %461 = arith.addf %460, %459 : vector<8x32xf32>
    %462 = arith.divf %460, %461 : vector<8x32xf32>
    %463 = vector.extract_strided_slice %456 {offsets = [0, 32], sizes = [8, 32], strides = [1, 1]} : vector<8x128xf32> to vector<8x32xf32>
    %464 = arith.negf %463 : vector<8x32xf32>
    %465 = math.exp %464 : vector<8x32xf32>
    %cst_144 = arith.constant 1.000000e+00 : f32
    %466 = vector.broadcast %cst_144 : f32 to vector<8x32xf32>
    %467 = arith.addf %466, %465 : vector<8x32xf32>
    %468 = arith.divf %466, %467 : vector<8x32xf32>
    %469 = vector.extract_strided_slice %456 {offsets = [0, 64], sizes = [8, 32], strides = [1, 1]} : vector<8x128xf32> to vector<8x32xf32>
    %470 = math.tanh %469 : vector<8x32xf32>
    %471 = vector.extract_strided_slice %456 {offsets = [0, 96], sizes = [8, 32], strides = [1, 1]} : vector<8x128xf32> to vector<8x32xf32>
    %472 = arith.negf %471 : vector<8x32xf32>
    %473 = math.exp %472 : vector<8x32xf32>
    %cst_145 = arith.constant 1.000000e+00 : f32
    %474 = vector.broadcast %cst_145 : f32 to vector<8x32xf32>
    %475 = arith.addf %474, %473 : vector<8x32xf32>
    %476 = arith.divf %474, %475 : vector<8x32xf32>
    %477 = arith.mulf %468, %450 : vector<8x32xf32>
    %478 = arith.mulf %462, %470 : vector<8x32xf32>
    %479 = arith.addf %477, %478 : vector<8x32xf32>
    %480 = math.tanh %479 : vector<8x32xf32>
    %481 = arith.mulf %476, %480 : vector<8x32xf32>
    %482 = arith.index_cast %451 : i32 to index
    %c0_146 = arith.constant 0 : index
    %c0_147 = arith.constant 0 : index
    %483 = vector.load %arg1[%482, %c0_146, %c0_147] : memref<8x8x32xf32, #tpu.memory_space<vmem>>, vector<1x8x32xf32>
    %484 = vector.shape_cast %483 : vector<1x8x32xf32> to vector<8x32xf32>
    %cst_148 = arith.constant 0.000000e+00 : f32
    %485 = vector.broadcast %cst_148 : f32 to vector<8x32xf32>
    %486 = arith.cmpf ogt, %484, %485 : vector<8x32xf32>
    %487 = arith.select %486, %481, %447 : vector<8x32xi1>, vector<8x32xf32>
    %cst_149 = arith.constant 0.000000e+00 : f32
    %488 = vector.broadcast %cst_149 : f32 to vector<8x32xf32>
    %489 = arith.cmpf ogt, %484, %488 : vector<8x32xf32>
    %490 = arith.select %489, %479, %450 : vector<8x32xi1>, vector<8x32xf32>
    %c4_i32_150 = arith.constant 4 : i32
    %c7_i32_151 = arith.constant 7 : i32
    %491 = arith.subi %c7_i32_151, %c4_i32_150 : i32
    %492 = arith.index_cast %491 : i32 to index
    %c0_152 = arith.constant 0 : index
    %c0_153 = arith.constant 0 : index
    %493 = vector.load %arg12[%492, %c0_152, %c0_153] : memref<8x8x128xf32, #tpu.memory_space<vmem>>, vector<1x8x128xf32>
    %494 = vector.shape_cast %493 : vector<1x8x128xf32> to vector<8x128xf32>
    %cst_154 = arith.constant dense<0.000000e+00> : vector<8x128xf32>
    %495 = tpu.matmul %487, %17, %cst_154 {dimension_numbers = #tpu.dot_dimension_numbers<[1], [0], [0], [1], [0, 0, 1, 1], [], []>} : vector<8x32xf32>, vector<32x128xf32>, vector<8x128xf32> -> vector<8x128xf32>
    %496 = arith.addf %494, %495 : vector<8x128xf32>
    %497 = vector.extract_strided_slice %496 {offsets = [0, 0], sizes = [8, 32], strides = [1, 1]} : vector<8x128xf32> to vector<8x32xf32>
    %498 = arith.negf %497 : vector<8x32xf32>
    %499 = math.exp %498 : vector<8x32xf32>
    %cst_155 = arith.constant 1.000000e+00 : f32
    %500 = vector.broadcast %cst_155 : f32 to vector<8x32xf32>
    %501 = arith.addf %500, %499 : vector<8x32xf32>
    %502 = arith.divf %500, %501 : vector<8x32xf32>
    %503 = vector.extract_strided_slice %496 {offsets = [0, 32], sizes = [8, 32], strides = [1, 1]} : vector<8x128xf32> to vector<8x32xf32>
    %504 = arith.negf %503 : vector<8x32xf32>
    %505 = math.exp %504 : vector<8x32xf32>
    %cst_156 = arith.constant 1.000000e+00 : f32
    %506 = vector.broadcast %cst_156 : f32 to vector<8x32xf32>
    %507 = arith.addf %506, %505 : vector<8x32xf32>
    %508 = arith.divf %506, %507 : vector<8x32xf32>
    %509 = vector.extract_strided_slice %496 {offsets = [0, 64], sizes = [8, 32], strides = [1, 1]} : vector<8x128xf32> to vector<8x32xf32>
    %510 = math.tanh %509 : vector<8x32xf32>
    %511 = vector.extract_strided_slice %496 {offsets = [0, 96], sizes = [8, 32], strides = [1, 1]} : vector<8x128xf32> to vector<8x32xf32>
    %512 = arith.negf %511 : vector<8x32xf32>
    %513 = math.exp %512 : vector<8x32xf32>
    %cst_157 = arith.constant 1.000000e+00 : f32
    %514 = vector.broadcast %cst_157 : f32 to vector<8x32xf32>
    %515 = arith.addf %514, %513 : vector<8x32xf32>
    %516 = arith.divf %514, %515 : vector<8x32xf32>
    %517 = arith.mulf %508, %490 : vector<8x32xf32>
    %518 = arith.mulf %502, %510 : vector<8x32xf32>
    %519 = arith.addf %517, %518 : vector<8x32xf32>
    %520 = math.tanh %519 : vector<8x32xf32>
    %521 = arith.mulf %516, %520 : vector<8x32xf32>
    %522 = arith.index_cast %491 : i32 to index
    %c0_158 = arith.constant 0 : index
    %c0_159 = arith.constant 0 : index
    %523 = vector.load %arg1[%522, %c0_158, %c0_159] : memref<8x8x32xf32, #tpu.memory_space<vmem>>, vector<1x8x32xf32>
    %524 = vector.shape_cast %523 : vector<1x8x32xf32> to vector<8x32xf32>
    %cst_160 = arith.constant 0.000000e+00 : f32
    %525 = vector.broadcast %cst_160 : f32 to vector<8x32xf32>
    %526 = arith.cmpf ogt, %524, %525 : vector<8x32xf32>
    %527 = arith.select %526, %521, %487 : vector<8x32xi1>, vector<8x32xf32>
    %cst_161 = arith.constant 0.000000e+00 : f32
    %528 = vector.broadcast %cst_161 : f32 to vector<8x32xf32>
    %529 = arith.cmpf ogt, %524, %528 : vector<8x32xf32>
    %530 = arith.select %529, %519, %490 : vector<8x32xi1>, vector<8x32xf32>
    %c5_i32_162 = arith.constant 5 : i32
    %c7_i32_163 = arith.constant 7 : i32
    %531 = arith.subi %c7_i32_163, %c5_i32_162 : i32
    %532 = arith.index_cast %531 : i32 to index
    %c0_164 = arith.constant 0 : index
    %c0_165 = arith.constant 0 : index
    %533 = vector.load %arg12[%532, %c0_164, %c0_165] : memref<8x8x128xf32, #tpu.memory_space<vmem>>, vector<1x8x128xf32>
    %534 = vector.shape_cast %533 : vector<1x8x128xf32> to vector<8x128xf32>
    %cst_166 = arith.constant dense<0.000000e+00> : vector<8x128xf32>
    %535 = tpu.matmul %527, %17, %cst_166 {dimension_numbers = #tpu.dot_dimension_numbers<[1], [0], [0], [1], [0, 0, 1, 1], [], []>} : vector<8x32xf32>, vector<32x128xf32>, vector<8x128xf32> -> vector<8x128xf32>
    %536 = arith.addf %534, %535 : vector<8x128xf32>
    %537 = vector.extract_strided_slice %536 {offsets = [0, 0], sizes = [8, 32], strides = [1, 1]} : vector<8x128xf32> to vector<8x32xf32>
    %538 = arith.negf %537 : vector<8x32xf32>
    %539 = math.exp %538 : vector<8x32xf32>
    %cst_167 = arith.constant 1.000000e+00 : f32
    %540 = vector.broadcast %cst_167 : f32 to vector<8x32xf32>
    %541 = arith.addf %540, %539 : vector<8x32xf32>
    %542 = arith.divf %540, %541 : vector<8x32xf32>
    %543 = vector.extract_strided_slice %536 {offsets = [0, 32], sizes = [8, 32], strides = [1, 1]} : vector<8x128xf32> to vector<8x32xf32>
    %544 = arith.negf %543 : vector<8x32xf32>
    %545 = math.exp %544 : vector<8x32xf32>
    %cst_168 = arith.constant 1.000000e+00 : f32
    %546 = vector.broadcast %cst_168 : f32 to vector<8x32xf32>
    %547 = arith.addf %546, %545 : vector<8x32xf32>
    %548 = arith.divf %546, %547 : vector<8x32xf32>
    %549 = vector.extract_strided_slice %536 {offsets = [0, 64], sizes = [8, 32], strides = [1, 1]} : vector<8x128xf32> to vector<8x32xf32>
    %550 = math.tanh %549 : vector<8x32xf32>
    %551 = vector.extract_strided_slice %536 {offsets = [0, 96], sizes = [8, 32], strides = [1, 1]} : vector<8x128xf32> to vector<8x32xf32>
    %552 = arith.negf %551 : vector<8x32xf32>
    %553 = math.exp %552 : vector<8x32xf32>
    %cst_169 = arith.constant 1.000000e+00 : f32
    %554 = vector.broadcast %cst_169 : f32 to vector<8x32xf32>
    %555 = arith.addf %554, %553 : vector<8x32xf32>
    %556 = arith.divf %554, %555 : vector<8x32xf32>
    %557 = arith.mulf %548, %530 : vector<8x32xf32>
    %558 = arith.mulf %542, %550 : vector<8x32xf32>
    %559 = arith.addf %557, %558 : vector<8x32xf32>
    %560 = math.tanh %559 : vector<8x32xf32>
    %561 = arith.mulf %556, %560 : vector<8x32xf32>
    %562 = arith.index_cast %531 : i32 to index
    %c0_170 = arith.constant 0 : index
    %c0_171 = arith.constant 0 : index
    %563 = vector.load %arg1[%562, %c0_170, %c0_171] : memref<8x8x32xf32, #tpu.memory_space<vmem>>, vector<1x8x32xf32>
    %564 = vector.shape_cast %563 : vector<1x8x32xf32> to vector<8x32xf32>
    %cst_172 = arith.constant 0.000000e+00 : f32
    %565 = vector.broadcast %cst_172 : f32 to vector<8x32xf32>
    %566 = arith.cmpf ogt, %564, %565 : vector<8x32xf32>
    %567 = arith.select %566, %561, %527 : vector<8x32xi1>, vector<8x32xf32>
    %cst_173 = arith.constant 0.000000e+00 : f32
    %568 = vector.broadcast %cst_173 : f32 to vector<8x32xf32>
    %569 = arith.cmpf ogt, %564, %568 : vector<8x32xf32>
    %570 = arith.select %569, %559, %530 : vector<8x32xi1>, vector<8x32xf32>
    %c6_i32_174 = arith.constant 6 : i32
    %c7_i32_175 = arith.constant 7 : i32
    %571 = arith.subi %c7_i32_175, %c6_i32_174 : i32
    %572 = arith.index_cast %571 : i32 to index
    %c0_176 = arith.constant 0 : index
    %c0_177 = arith.constant 0 : index
    %573 = vector.load %arg12[%572, %c0_176, %c0_177] : memref<8x8x128xf32, #tpu.memory_space<vmem>>, vector<1x8x128xf32>
    %574 = vector.shape_cast %573 : vector<1x8x128xf32> to vector<8x128xf32>
    %cst_178 = arith.constant dense<0.000000e+00> : vector<8x128xf32>
    %575 = tpu.matmul %567, %17, %cst_178 {dimension_numbers = #tpu.dot_dimension_numbers<[1], [0], [0], [1], [0, 0, 1, 1], [], []>} : vector<8x32xf32>, vector<32x128xf32>, vector<8x128xf32> -> vector<8x128xf32>
    %576 = arith.addf %574, %575 : vector<8x128xf32>
    %577 = vector.extract_strided_slice %576 {offsets = [0, 0], sizes = [8, 32], strides = [1, 1]} : vector<8x128xf32> to vector<8x32xf32>
    %578 = arith.negf %577 : vector<8x32xf32>
    %579 = math.exp %578 : vector<8x32xf32>
    %cst_179 = arith.constant 1.000000e+00 : f32
    %580 = vector.broadcast %cst_179 : f32 to vector<8x32xf32>
    %581 = arith.addf %580, %579 : vector<8x32xf32>
    %582 = arith.divf %580, %581 : vector<8x32xf32>
    %583 = vector.extract_strided_slice %576 {offsets = [0, 32], sizes = [8, 32], strides = [1, 1]} : vector<8x128xf32> to vector<8x32xf32>
    %584 = arith.negf %583 : vector<8x32xf32>
    %585 = math.exp %584 : vector<8x32xf32>
    %cst_180 = arith.constant 1.000000e+00 : f32
    %586 = vector.broadcast %cst_180 : f32 to vector<8x32xf32>
    %587 = arith.addf %586, %585 : vector<8x32xf32>
    %588 = arith.divf %586, %587 : vector<8x32xf32>
    %589 = vector.extract_strided_slice %576 {offsets = [0, 64], sizes = [8, 32], strides = [1, 1]} : vector<8x128xf32> to vector<8x32xf32>
    %590 = math.tanh %589 : vector<8x32xf32>
    %591 = vector.extract_strided_slice %576 {offsets = [0, 96], sizes = [8, 32], strides = [1, 1]} : vector<8x128xf32> to vector<8x32xf32>
    %592 = arith.negf %591 : vector<8x32xf32>
    %593 = math.exp %592 : vector<8x32xf32>
    %cst_181 = arith.constant 1.000000e+00 : f32
    %594 = vector.broadcast %cst_181 : f32 to vector<8x32xf32>
    %595 = arith.addf %594, %593 : vector<8x32xf32>
    %596 = arith.divf %594, %595 : vector<8x32xf32>
    %597 = arith.mulf %588, %570 : vector<8x32xf32>
    %598 = arith.mulf %582, %590 : vector<8x32xf32>
    %599 = arith.addf %597, %598 : vector<8x32xf32>
    %600 = math.tanh %599 : vector<8x32xf32>
    %601 = arith.mulf %596, %600 : vector<8x32xf32>
    %602 = arith.index_cast %571 : i32 to index
    %c0_182 = arith.constant 0 : index
    %c0_183 = arith.constant 0 : index
    %603 = vector.load %arg1[%602, %c0_182, %c0_183] : memref<8x8x32xf32, #tpu.memory_space<vmem>>, vector<1x8x32xf32>
    %604 = vector.shape_cast %603 : vector<1x8x32xf32> to vector<8x32xf32>
    %cst_184 = arith.constant 0.000000e+00 : f32
    %605 = vector.broadcast %cst_184 : f32 to vector<8x32xf32>
    %606 = arith.cmpf ogt, %604, %605 : vector<8x32xf32>
    %607 = arith.select %606, %601, %567 : vector<8x32xi1>, vector<8x32xf32>
    %cst_185 = arith.constant 0.000000e+00 : f32
    %608 = vector.broadcast %cst_185 : f32 to vector<8x32xf32>
    %609 = arith.cmpf ogt, %604, %608 : vector<8x32xf32>
    %610 = arith.select %609, %599, %570 : vector<8x32xi1>, vector<8x32xf32>
    %c7_i32_186 = arith.constant 7 : i32
    %c7_i32_187 = arith.constant 7 : i32
    %611 = arith.subi %c7_i32_187, %c7_i32_186 : i32
    %612 = arith.index_cast %611 : i32 to index
    %c0_188 = arith.constant 0 : index
    %c0_189 = arith.constant 0 : index
    %613 = vector.load %arg12[%612, %c0_188, %c0_189] : memref<8x8x128xf32, #tpu.memory_space<vmem>>, vector<1x8x128xf32>
    %614 = vector.shape_cast %613 : vector<1x8x128xf32> to vector<8x128xf32>
    %cst_190 = arith.constant dense<0.000000e+00> : vector<8x128xf32>
    %615 = tpu.matmul %607, %17, %cst_190 {dimension_numbers = #tpu.dot_dimension_numbers<[1], [0], [0], [1], [0, 0, 1, 1], [], []>} : vector<8x32xf32>, vector<32x128xf32>, vector<8x128xf32> -> vector<8x128xf32>
    %616 = arith.addf %614, %615 : vector<8x128xf32>
    %617 = vector.extract_strided_slice %616 {offsets = [0, 0], sizes = [8, 32], strides = [1, 1]} : vector<8x128xf32> to vector<8x32xf32>
    %618 = arith.negf %617 : vector<8x32xf32>
    %619 = math.exp %618 : vector<8x32xf32>
    %cst_191 = arith.constant 1.000000e+00 : f32
    %620 = vector.broadcast %cst_191 : f32 to vector<8x32xf32>
    %621 = arith.addf %620, %619 : vector<8x32xf32>
    %622 = arith.divf %620, %621 : vector<8x32xf32>
    %623 = vector.extract_strided_slice %616 {offsets = [0, 32], sizes = [8, 32], strides = [1, 1]} : vector<8x128xf32> to vector<8x32xf32>
    %624 = arith.negf %623 : vector<8x32xf32>
    %625 = math.exp %624 : vector<8x32xf32>
    %cst_192 = arith.constant 1.000000e+00 : f32
    %626 = vector.broadcast %cst_192 : f32 to vector<8x32xf32>
    %627 = arith.addf %626, %625 : vector<8x32xf32>
    %628 = arith.divf %626, %627 : vector<8x32xf32>
    %629 = vector.extract_strided_slice %616 {offsets = [0, 64], sizes = [8, 32], strides = [1, 1]} : vector<8x128xf32> to vector<8x32xf32>
    %630 = math.tanh %629 : vector<8x32xf32>
    %631 = vector.extract_strided_slice %616 {offsets = [0, 96], sizes = [8, 32], strides = [1, 1]} : vector<8x128xf32> to vector<8x32xf32>
    %632 = arith.negf %631 : vector<8x32xf32>
    %633 = math.exp %632 : vector<8x32xf32>
    %cst_193 = arith.constant 1.000000e+00 : f32
    %634 = vector.broadcast %cst_193 : f32 to vector<8x32xf32>
    %635 = arith.addf %634, %633 : vector<8x32xf32>
    %636 = arith.divf %634, %635 : vector<8x32xf32>
    %637 = arith.mulf %628, %610 : vector<8x32xf32>
    %638 = arith.mulf %622, %630 : vector<8x32xf32>
    %639 = arith.addf %637, %638 : vector<8x32xf32>
    %640 = math.tanh %639 : vector<8x32xf32>
    %641 = arith.mulf %636, %640 : vector<8x32xf32>
    %642 = arith.index_cast %611 : i32 to index
    %c0_194 = arith.constant 0 : index
    %c0_195 = arith.constant 0 : index
    %643 = vector.load %arg1[%642, %c0_194, %c0_195] : memref<8x8x32xf32, #tpu.memory_space<vmem>>, vector<1x8x32xf32>
    %644 = vector.shape_cast %643 : vector<1x8x32xf32> to vector<8x32xf32>
    %cst_196 = arith.constant 0.000000e+00 : f32
    %645 = vector.broadcast %cst_196 : f32 to vector<8x32xf32>
    %646 = arith.cmpf ogt, %644, %645 : vector<8x32xf32>
    %647 = arith.select %646, %641, %607 : vector<8x32xi1>, vector<8x32xf32>
    %cst_197 = arith.constant 0.000000e+00 : f32
    %648 = vector.broadcast %cst_197 : f32 to vector<8x32xf32>
    %649 = arith.cmpf ogt, %644, %648 : vector<8x32xf32>
    %650 = arith.select %649, %639, %610 : vector<8x32xi1>, vector<8x32xf32>
    %c8_i32_198 = arith.constant 8 : i32
    %c0_199 = arith.constant 0 : index
    %c0_200 = arith.constant 0 : index
    %651 = vector.load %arg8[%c0_199, %c0_200] : memref<64x32xf32, #tpu.memory_space<vmem>>, vector<32x32xf32>
    %cst_201 = arith.constant dense<0.000000e+00> : vector<8x32xf32>
    %652 = tpu.matmul %327, %651, %cst_201 {dimension_numbers = #tpu.dot_dimension_numbers<[1], [0], [0], [1], [0, 0, 1, 1], [], []>} : vector<8x32xf32>, vector<32x32xf32>, vector<8x32xf32> -> vector<8x32xf32>
    %c32 = arith.constant 32 : index
    %c0_202 = arith.constant 0 : index
    %653 = vector.load %arg8[%c32, %c0_202] : memref<64x32xf32, #tpu.memory_space<vmem>>, vector<32x32xf32>
    %cst_203 = arith.constant dense<0.000000e+00> : vector<8x32xf32>
    %654 = tpu.matmul %647, %653, %cst_203 {dimension_numbers = #tpu.dot_dimension_numbers<[1], [0], [0], [1], [0, 0, 1, 1], [], []>} : vector<8x32xf32>, vector<32x32xf32>, vector<8x32xf32> -> vector<8x32xf32>
    %655 = arith.addf %652, %654 : vector<8x32xf32>
    %c0_204 = arith.constant 0 : index
    %c0_205 = arith.constant 0 : index
    %656 = vector.load %arg9[%c0_204, %c0_205] : memref<1x32xf32, #tpu.memory_space<vmem>>, vector<1x32xf32>
    %657 = vector.broadcast %656 : vector<1x32xf32> to vector<8x32xf32>
    %658 = arith.addf %655, %657 : vector<8x32xf32>
    %659 = tpu.iota {dimensions = array<i32: 1>} : vector<8x32xi32>
    %c16_i32 = arith.constant 16 : i32
    %660 = vector.broadcast %c16_i32 : i32 to vector<8x32xi32>
    %661 = arith.cmpi slt, %659, %660 : vector<8x32xi32>
    %cst_206 = arith.constant 5.000000e-01 : f32
    %662 = vector.broadcast %cst_206 : f32 to vector<8x32xf32>
    %663 = arith.mulf %662, %658 : vector<8x32xf32>
    %664 = math.exp %663 : vector<8x32xf32>
    %665 = arith.select %661, %658, %664 : vector<8x32xi1>, vector<8x32xf32>
    %c0_207 = arith.constant 0 : index
    %c0_208 = arith.constant 0 : index
    %666 = vector.load %arg10[%c0_207, %c0_208] : memref<8x32xf32, #tpu.memory_space<vmem>>, vector<8x32xf32>
    tpu.vector_store %arg10[%c0_207, %c0_208], %665 {strides = array<i32>} : memref<8x32xf32, #tpu.memory_space<vmem>>, vector<8x32xf32>,
    return
  }
}

</mosaic_0001>

<llo_original>
// kernel: _lambda_.1
$region0: #{_lambda_.1}
  #allocation0 [shape = 'u32[]', space=smem, size = 0x4, offset = 0x4, fixed_abs, tag = 'smem constant byte address 0x4 - core index']
  #allocation1 [shape = 'u32[144,128]{1,0:T(1,128)}', space=vmem, size = 0x12000, scoped, tag = 'internal scratch']
  #allocation2 [shape = 'f32[8,8,128]{2,1,0:T(8,128)}', space=vmem, size = 0x8000, scoped, tag = 'scratch operand']
  #allocation3 [shape = 'f32[8,8,128]{2,1,0:T(8,128)}', space=vmem, size = 0x8000, scoped, tag = 'scratch operand']
  %s0 = inlined_call_operand.vmem [shape: f32[8,8,5], index: 0, kind: input, shape index: {}]
  %s1 = inlined_call_operand.vmem [shape: f32[8,8,32], index: 1, kind: input, shape index: {}]
  %s2 = inlined_call_operand.vmem [shape: f32[5,128], index: 2, kind: input, shape index: {}]
  %s3 = inlined_call_operand.vmem [shape: f32[32,128], index: 3, kind: input, shape index: {}]
  %s4 = inlined_call_operand.vmem [shape: f32[1,128], index: 4, kind: input, shape index: {}]
  %s5 = inlined_call_operand.vmem [shape: f32[5,128], index: 5, kind: input, shape index: {}]
  %s6 = inlined_call_operand.vmem [shape: f32[32,128], index: 6, kind: input, shape index: {}]
  %s7 = inlined_call_operand.vmem [shape: f32[1,128], index: 7, kind: input, shape index: {}]
  %s8 = inlined_call_operand.vmem [shape: f32[64,32], index: 8, kind: input, shape index: {}]
  %s9 = inlined_call_operand.vmem [shape: f32[1,32], index: 9, kind: input, shape index: {}]
  %s10 = inlined_call_operand.vmem [shape: f32[8,32], index: 10, kind: output, shape index: {}]
  %s11 = sld [smem:[#allocation0]]
  $region50: #{_lambda_.1} parent=0
    _
  %s13 = ssub.s32 1, %s11
  %s14 = scalar_select 0, %s13, %s11
  // Predicated region
  $region2: #{_lambda_.1} parent=0 // pred_check
    _
  $region3: #{_lambda_.1} parent=0 // pred_check_branch
    %16 = sbr.rel (0) target = $region5
  $region4: #{_lambda_.1} parent=0 // pred_region
    _
  $region5: #{_lambda_.1} parent=0 // pred_fallthru
    _
  // Predicated region
  $region6: #{_lambda_.1} parent=0 // pred_check
    _
  $region7: #{_lambda_.1} parent=0 // pred_check_branch
    %18 = sbr.rel (0) target = $region9
  $region8: #{_lambda_.1} parent=0 // pred_region
    _
  $region9: #{_lambda_.1} parent=0 // pred_fallthru
    _
  // Predicated region
  $region10: #{_lambda_.1} parent=0 // pred_check
    _
  $region11: #{_lambda_.1} parent=0 // pred_check_branch
    %20 = sbr.rel (0) target = $region13
  $region12: #{_lambda_.1} parent=0 // pred_region
    _
  $region13: #{_lambda_.1} parent=0 // pred_fallthru
    _
  // Predicated region
  $region14: #{_lambda_.1} parent=0 // pred_check
    _
  $region15: #{_lambda_.1} parent=0 // pred_check_branch
    %22 = sbr.rel (0) target = $region17
  $region16: #{_lambda_.1} parent=0 // pred_region
    _
  $region17: #{_lambda_.1} parent=0 // pred_fallthru
    _
  // Predicated region
  $region18: #{_lambda_.1} parent=0 // pred_check
    _
  $region19: #{_lambda_.1} parent=0 // pred_check_branch
    %24 = sbr.rel (0) target = $region21
  $region20: #{_lambda_.1} parent=0 // pred_region
    _
  $region21: #{_lambda_.1} parent=0 // pred_fallthru
    _
  // Predicated region
  $region22: #{_lambda_.1} parent=0 // pred_check
    _
  $region23: #{_lambda_.1} parent=0 // pred_check_branch
    %26 = sbr.rel (0) target = $region25
  $region24: #{_lambda_.1} parent=0 // pred_region
    _
  $region25: #{_lambda_.1} parent=0 // pred_fallthru
    _
  // Predicated region
  $region26: #{_lambda_.1} parent=0 // pred_check
    _
  $region27: #{_lambda_.1} parent=0 // pred_check_branch
    %28 = sbr.rel (0) target = $region29
  $region28: #{_lambda_.1} parent=0 // pred_region
    _
  $region29: #{_lambda_.1} parent=0 // pred_fallthru
    _
  // Predicated region
  $region30: #{_lambda_.1} parent=0 // pred_check
    _
  $region31: #{_lambda_.1} parent=0 // pred_check_branch
    %30 = sbr.rel (0) target = $region33
  $region32: #{_lambda_.1} parent=0 // pred_region
    _
  $region33: #{_lambda_.1} parent=0 // pred_fallthru
    _
  // Predicated region
  $region34: #{_lambda_.1} parent=0 // pred_check
    _
  $region35: #{_lambda_.1} parent=0 // pred_check_branch
    %32 = sbr.rel (0) target = $region37
  $region36: #{_lambda_.1} parent=0 // pred_region
    _
  $region37: #{_lambda_.1} parent=0 // pred_fallthru
    _
  // Predicated region
  $region38: #{_lambda_.1} parent=0 // pred_check
    _
  $region39: #{_lambda_.1} parent=0 // pred_check_branch
    %34 = sbr.rel (0) target = $region41
  $region40: #{_lambda_.1} parent=0 // pred_region
    _
  $region41: #{_lambda_.1} parent=0 // pred_fallthru
    _
  %v35 = vld [vmem:[%s0] sm:$0xff]
  %v36 = vld [vmem:[%s0 + $0x8] sm:$0xff]
  %v37 = vld [vmem:[%s0 + $0x10] sm:$0xff]
  %v38 = vld [vmem:[%s0 + $0x18] sm:$0xff]
  %v39 = vld [vmem:[%s0 + $0x20] sm:$0xff]
  %v40 = vld [vmem:[%s0 + $0x28] sm:$0xff]
  %v41 = vld [vmem:[%s0 + $0x30] sm:$0xff]
  %v42 = vld [vmem:[%s0 + $0x38] sm:$0xff]
  %v43 = vld [vmem:[%s2] sm:$0x1f]
  %v44 = vld [vmem:[%s4] sm:$0x1]
  %v46 = vlaneseq
  %v47 = vshrl.u32 %v46, 7
  %v48 = vsub.s32 0, %v47
  %v49 = vrot.slane %v44, %v48
  %vm51 = vcmask 39936
  %v53 = vsel %vm51, %v35, 0
  %v56 = vsel %vm51, %v36, 0
  %v59 = vsel %vm51, %v37, 0
  %v62 = vsel %vm51, %v38, 0
  %v65 = vsel %vm51, %v39, 0
  %v68 = vsel %vm51, %v40, 0
  %v71 = vsel %vm51, %v41, 0
  %v74 = vsel %vm51, %v42, 0
  %vm76 = vcmask 1044480
  %v78 = vsel %vm76, %v43, 0
  %80 = vmatprep.subr.mxu0 0.0
  %81 = vmatpush1.msra.mxu0 %v78
  %82 = vmatprep.subr.mxu0 0.0
  %83 = vmatpush1.msra.mxu0 0.0
  %84 = vmatprep.subr.mxu0 0.0
  %85 = vmatpush1.msra.mxu0 0.0
  %86 = vmatprep.subr.mxu0 0.0
  %87 = vmatpush1.msra.mxu0 0.0
  %88 = vmatprep.subr.mxu0 0.0
  %89 = vmatpush1.msra.mxu0 0.0
  %90 = vmatprep.subr.mxu0 0.0
  %91 = vmatpush1.msra.mxu0 0.0
  %92 = vmatprep.subr.mxu0 0.0
  %93 = vmatpush1.msra.mxu0 0.0
  %94 = vmatprep.subr.mxu0 0.0
  %95 = vmatpush1.msra.mxu0 0.0
  %96 = vmatprep.subr.mxu0 0.0
  %97 = vmatpush1.msra.mxu0 0.0
  %98 = vmatprep.subr.mxu0 0.0
  %99 = vmatpush1.msra.mxu0 0.0
  %100 = vmatprep.subr.mxu0 0.0
  %101 = vmatpush1.msra.mxu0 0.0
  %102 = vmatprep.subr.mxu0 0.0
  %103 = vmatpush1.msra.mxu0 0.0
  %104 = vmatprep.subr.mxu0 0.0
  %105 = vmatpush1.msra.mxu0 0.0
  %106 = vmatprep.subr.mxu0 0.0
  %107 = vmatpush1.msra.mxu0 0.0
  %108 = vmatprep.subr.mxu0 0.0
  %109 = vmatpush1.msra.mxu0 0.0
  %110 = vmatprep.subr.mxu0 0.0
  %111 = vmatpush1.msra.mxu0 0.0
  %112 = vmatprep.subr.mxu0 0.0
  %113 = vmatpush1.msra.mxu0 0.0
  %114 = vmatprep.subr.mxu0 0.0
  %115 = vmatpush1.msra.mxu0 0.0
  %116 = vmatprep.subr.mxu0 0.0
  %117 = vmatpush1.msra.mxu0 0.0
  %118 = vmatprep.subr.mxu0 0.0
  %119 = vmatpush1.msra.mxu0 0.0
  %120 = vmatprep.subr.mxu0 0.0
  %121 = vmatpush1.msra.mxu0 0.0
  %122 = vmatprep.subr.mxu0 0.0
  %123 = vmatpush1.msra.mxu0 0.0
  %124 = vmatprep.subr.mxu0 0.0
  %125 = vmatpush1.msra.mxu0 0.0
  %126 = vmatprep.subr.mxu0 0.0
  %127 = vmatpush1.msra.mxu0 0.0
  %128 = vmatprep.subr.mxu0 0.0
  %129 = vmatpush1.msra.mxu0 0.0
  %130 = vmatprep.subr.mxu0 0.0
  %131 = vmatpush1.msra.mxu0 0.0
  %132 = vmatprep.subr.mxu0 0.0
  %133 = vmatpush1.msra.mxu0 0.0
  %134 = vmatprep.subr.mxu0 0.0
  %135 = vmatpush1.msra.mxu0 0.0
  %136 = vmatprep.subr.mxu0 0.0
  %137 = vmatpush1.msra.mxu0 0.0
  %138 = vmatprep.subr.mxu0 0.0
  %139 = vmatpush1.msra.mxu0 0.0
  %140 = vmatprep.subr.mxu0 0.0
  %141 = vmatpush1.msra.mxu0 0.0
  %142 = vmatprep.subr.mxu0 0.0
  %143 = vmatpush1.msra.mxu0 0.0
  %144 = vmatprep.mubr.f32.mxu0 0.0
  %145 = vmatmul.mubr.f32.gmra.mrb[0].mxu0 %v53
  %v146 = vpop.f32.mrb[0].mxu0
  %v147 = vadd.f32 %v49, %v146
  %v148 = vpop.f32.mrb[0].mxu0
  %149 = vmatprep.mubr.f32.mxu0 0.0
  %150 = vmatmul.mubr.f32.gmra.mrb[0].mxu0 %v56
  %v151 = vpop.f32.mrb[0].mxu0
  %v152 = vadd.f32 %v49, %v151
  %v153 = vpop.f32.mrb[0].mxu0
  %154 = vmatprep.mubr.f32.mxu0 0.0
  %155 = vmatmul.mubr.f32.gmra.mrb[0].mxu0 %v59
  %v156 = vpop.f32.mrb[0].mxu0
  %v157 = vadd.f32 %v49, %v156
  %v158 = vpop.f32.mrb[0].mxu0
  %159 = vmatprep.mubr.f32.mxu0 0.0
  %160 = vmatmul.mubr.f32.gmra.mrb[0].mxu0 %v62
  %v161 = vpop.f32.mrb[0].mxu0
  %v162 = vadd.f32 %v49, %v161
  %v163 = vpop.f32.mrb[0].mxu0
  %164 = vmatprep.mubr.f32.mxu0 0.0
  %165 = vmatmul.mubr.f32.gmra.mrb[0].mxu0 %v65
  %v166 = vpop.f32.mrb[0].mxu0
  %v167 = vadd.f32 %v49, %v166
  %v168 = vpop.f32.mrb[0].mxu0
  %169 = vmatprep.mubr.f32.mxu0 0.0
  %170 = vmatmul.mubr.f32.gmra.mrb[0].mxu0 %v68
  %v171 = vpop.f32.mrb[0].mxu0
  %v172 = vadd.f32 %v49, %v171
  %v173 = vpop.f32.mrb[0].mxu0
  %174 = vmatprep.mubr.f32.mxu0 0.0
  %175 = vmatmul.mubr.f32.gmra.mrb[0].mxu0 %v71
  %v176 = vpop.f32.mrb[0].mxu0
  %v177 = vadd.f32 %v49, %v176
  %v178 = vpop.f32.mrb[0].mxu0
  %179 = vmatprep.mubr.f32.mxu0 0.0
  %180 = vmatmul.mubr.f32.gmra.mrb[0].mxu0 %v74
  %v181 = vpop.f32.mrb[0].mxu0
  %v182 = vadd.f32 %v49, %v181
  %v183 = vpop.f32.mrb[0].mxu0
  %184 = vdwg.mxu0
  %v185 = vld [vmem:[%s5] sm:$0x1f]
  %v186 = vld [vmem:[%s7] sm:$0x1]
  %v188 = vlaneseq
  %v189 = vshrl.u32 %v188, 7
  %v190 = vsub.s32 0, %v189
  %v191 = vrot.slane %v186, %v190
  %v194 = vsel %vm76, %v185, 0
  %196 = vmatprep.subr.mxu0 0.0
  %197 = vmatpush1.msra.mxu0 %v194
  %198 = vmatprep.subr.mxu0 0.0
  %199 = vmatpush1.msra.mxu0 0.0
  %200 = vmatprep.subr.mxu0 0.0
  %201 = vmatpush1.msra.mxu0 0.0
  %202 = vmatprep.subr.mxu0 0.0
  %203 = vmatpush1.msra.mxu0 0.0
  %204 = vmatprep.subr.mxu0 0.0
  %205 = vmatpush1.msra.mxu0 0.0
  %206 = vmatprep.subr.mxu0 0.0
  %207 = vmatpush1.msra.mxu0 0.0
  %208 = vmatprep.subr.mxu0 0.0
  %209 = vmatpush1.msra.mxu0 0.0
  %210 = vmatprep.subr.mxu0 0.0
  %211 = vmatpush1.msra.mxu0 0.0
  %212 = vmatprep.subr.mxu0 0.0
  %213 = vmatpush1.msra.mxu0 0.0
  %214 = vmatprep.subr.mxu0 0.0
  %215 = vmatpush1.msra.mxu0 0.0
  %216 = vmatprep.subr.mxu0 0.0
  %217 = vmatpush1.msra.mxu0 0.0
  %218 = vmatprep.subr.mxu0 0.0
  %219 = vmatpush1.msra.mxu0 0.0
  %220 = vmatprep.subr.mxu0 0.0
  %221 = vmatpush1.msra.mxu0 0.0
  %222 = vmatprep.subr.mxu0 0.0
  %223 = vmatpush1.msra.mxu0 0.0
  %224 = vmatprep.subr.mxu0 0.0
  %225 = vmatpush1.msra.mxu0 0.0
  %226 = vmatprep.subr.mxu0 0.0
  %227 = vmatpush1.msra.mxu0 0.0
  %228 = vmatprep.subr.mxu0 0.0
  %229 = vmatpush1.msra.mxu0 0.0
  %230 = vmatprep.subr.mxu0 0.0
  %231 = vmatpush1.msra.mxu0 0.0
  %232 = vmatprep.subr.mxu0 0.0
  %233 = vmatpush1.msra.mxu0 0.0
  %234 = vmatprep.subr.mxu0 0.0
  %235 = vmatpush1.msra.mxu0 0.0
  %236 = vmatprep.subr.mxu0 0.0
  %237 = vmatpush1.msra.mxu0 0.0
  %238 = vmatprep.subr.mxu0 0.0
  %239 = vmatpush1.msra.mxu0 0.0
  %240 = vmatprep.subr.mxu0 0.0
  %241 = vmatpush1.msra.mxu0 0.0
  %242 = vmatprep.subr.mxu0 0.0
  %243 = vmatpush1.msra.mxu0 0.0
  %244 = vmatprep.subr.mxu0 0.0
  %245 = vmatpush1.msra.mxu0 0.0
  %246 = vmatprep.subr.mxu0 0.0
  %247 = vmatpush1.msra.mxu0 0.0
  %248 = vmatprep.subr.mxu0 0.0
  %249 = vmatpush1.msra.mxu0 0.0
  %250 = vmatprep.subr.mxu0 0.0
  %251 = vmatpush1.msra.mxu0 0.0
  %252 = vmatprep.subr.mxu0 0.0
  %253 = vmatpush1.msra.mxu0 0.0
  %254 = vmatprep.subr.mxu0 0.0
  %255 = vmatpush1.msra.mxu0 0.0
  %256 = vmatprep.subr.mxu0 0.0
  %257 = vmatpush1.msra.mxu0 0.0
  %258 = vmatprep.subr.mxu0 0.0
  %259 = vmatpush1.msra.mxu0 0.0
  %260 = vmatprep.mubr.f32.mxu0 0.0
  %261 = vmatmul.mubr.f32.gmra.mrb[0].mxu0 %v53
  %v262 = vpop.f32.mrb[0].mxu0
  %v263 = vadd.f32 %v191, %v262
  %v264 = vpop.f32.mrb[0].mxu0
  %265 = vmatprep.mubr.f32.mxu0 0.0
  %266 = vmatmul.mubr.f32.gmra.mrb[0].mxu0 %v56
  %v267 = vpop.f32.mrb[0].mxu0
  %v268 = vadd.f32 %v191, %v267
  %v269 = vpop.f32.mrb[0].mxu0
  %270 = vmatprep.mubr.f32.mxu0 0.0
  %271 = vmatmul.mubr.f32.gmra.mrb[0].mxu0 %v59
  %v272 = vpop.f32.mrb[0].mxu0
  %v273 = vadd.f32 %v191, %v272
  %v274 = vpop.f32.mrb[0].mxu0
  %275 = vmatprep.mubr.f32.mxu0 0.0
  %276 = vmatmul.mubr.f32.gmra.mrb[0].mxu0 %v62
  %v277 = vpop.f32.mrb[0].mxu0
  %v278 = vadd.f32 %v191, %v277
  %v279 = vpop.f32.mrb[0].mxu0
  %280 = vmatprep.mubr.f32.mxu0 0.0
  %281 = vmatmul.mubr.f32.gmra.mrb[0].mxu0 %v65
  %v282 = vpop.f32.mrb[0].mxu0
  %v283 = vadd.f32 %v191, %v282
  %v284 = vpop.f32.mrb[0].mxu0
  %285 = vmatprep.mubr.f32.mxu0 0.0
  %286 = vmatmul.mubr.f32.gmra.mrb[0].mxu0 %v68
  %v287 = vpop.f32.mrb[0].mxu0
  %v288 = vadd.f32 %v191, %v287
  %v289 = vpop.f32.mrb[0].mxu0
  %290 = vmatprep.mubr.f32.mxu0 0.0
  %291 = vmatmul.mubr.f32.gmra.mrb[0].mxu0 %v71
  %v292 = vpop.f32.mrb[0].mxu0
  %v293 = vadd.f32 %v191, %v292
  %v294 = vpop.f32.mrb[0].mxu0
  %295 = vmatprep.mubr.f32.mxu0 0.0
  %296 = vmatmul.mubr.f32.gmra.mrb[0].mxu0 %v74
  %v297 = vpop.f32.mrb[0].mxu0
  %v298 = vadd.f32 %v191, %v297
  %v299 = vpop.f32.mrb[0].mxu0
  %300 = vdwg.mxu0
  %301 = vst [vmem:[#allocation2] sm:$0xff] %v147
  %302 = vst [vmem:[#allocation2 + $0x8] sm:$0xff] %v152
  %303 = vst [vmem:[#allocation2 + $0x10] sm:$0xff] %v157
  %304 = vst [vmem:[#allocation2 + $0x18] sm:$0xff] %v162
  %305 = vst [vmem:[#allocation2 + $0x20] sm:$0xff] %v167
  %306 = vst [vmem:[#allocation2 + $0x28] sm:$0xff] %v172
  %307 = vst [vmem:[#allocation2 + $0x30] sm:$0xff] %v177
  %308 = vst [vmem:[#allocation2 + $0x38] sm:$0xff] %v182
  %309 = vst [vmem:[#allocation3] sm:$0xff] %v263
  %310 = vst [vmem:[#allocation3 + $0x8] sm:$0xff] %v268
  %311 = vst [vmem:[#allocation3 + $0x10] sm:$0xff] %v273
  %312 = vst [vmem:[#allocation3 + $0x18] sm:$0xff] %v278
  %313 = vst [vmem:[#allocation3 + $0x20] sm:$0xff] %v283
  %314 = vst [vmem:[#allocation3 + $0x28] sm:$0xff] %v288
  %315 = vst [vmem:[#allocation3 + $0x30] sm:$0xff] %v293
  %316 = vst [vmem:[#allocation3 + $0x38] sm:$0xff] %v298
  %v317 = vld [vmem:[%s3] sm:$0xff]
  %v318 = vld [vmem:[%s3 + $0x8] sm:$0xff]
  %v319 = vld [vmem:[%s3 + $0x10] sm:$0xff]
  %v320 = vld [vmem:[%s3 + $0x18] sm:$0xff]
  %v321 = vld [vmem:[%s6] sm:$0xff]
  %v322 = vld [vmem:[%s6 + $0x8] sm:$0xff]
  %v323 = vld [vmem:[%s6 + $0x10] sm:$0xff]
  %v324 = vld [vmem:[%s6 + $0x18] sm:$0xff]
  %v325 = vld [vmem:[#allocation2] sm:$0xff]
  %vm326 = vcmask 261120
  %v328 = vsel %vm326, 0.0, 0
  %330 = vmatprep.subr.mxu0 0.0
  %331 = vmatpush1.msra.mxu0 %v317
  %332 = vmatprep.subr.mxu0 0.0
  %333 = vmatpush1.msra.mxu0 %v318
  %334 = vmatprep.subr.mxu0 0.0
  %335 = vmatpush1.msra.mxu0 %v319
  %336 = vmatprep.subr.mxu0 0.0
  %337 = vmatpush1.msra.mxu0 %v320
  %338 = vmatprep.subr.mxu0 0.0
  %339 = vmatpush1.msra.mxu0 0.0
  %340 = vmatprep.subr.mxu0 0.0
  %341 = vmatpush1.msra.mxu0 0.0
  %342 = vmatprep.subr.mxu0 0.0
  %343 = vmatpush1.msra.mxu0 0.0
  %344 = vmatprep.subr.mxu0 0.0
  %345 = vmatpush1.msra.mxu0 0.0
  %346 = vmatprep.subr.mxu0 0.0
  %347 = vmatpush1.msra.mxu0 0.0
  %348 = vmatprep.subr.mxu0 0.0
  %349 = vmatpush1.msra.mxu0 0.0
  %350 = vmatprep.subr.mxu0 0.0
  %351 = vmatpush1.msra.mxu0 0.0
  %352 = vmatprep.subr.mxu0 0.0
  %353 = vmatpush1.msra.mxu0 0.0
  %354 = vmatprep.subr.mxu0 0.0
  %355 = vmatpush1.msra.mxu0 0.0
  %356 = vmatprep.subr.mxu0 0.0
  %357 = vmatpush1.msra.mxu0 0.0
  %358 = vmatprep.subr.mxu0 0.0
  %359 = vmatpush1.msra.mxu0 0.0
  %360 = vmatprep.subr.mxu0 0.0
  %361 = vmatpush1.msra.mxu0 0.0
  %362 = vmatprep.subr.mxu0 0.0
  %363 = vmatpush1.msra.mxu0 0.0
  %364 = vmatprep.subr.mxu0 0.0
  %365 = vmatpush1.msra.mxu0 0.0
  %366 = vmatprep.subr.mxu0 0.0
  %367 = vmatpush1.msra.mxu0 0.0
  %368 = vmatprep.subr.mxu0 0.0
  %369 = vmatpush1.msra.mxu0 0.0
  %370 = vmatprep.subr.mxu0 0.0
  %371 = vmatpush1.msra.mxu0 0.0
  %372 = vmatprep.subr.mxu0 0.0
  %373 = vmatpush1.msra.mxu0 0.0
  %374 = vmatprep.subr.mxu0 0.0
  %375 = vmatpush1.msra.mxu0 0.0
  %376 = vmatprep.subr.mxu0 0.0
  %377 = vmatpush1.msra.mxu0 0.0
  %378 = vmatprep.subr.mxu0 0.0
  %379 = vmatpush1.msra.mxu0 0.0
  %380 = vmatprep.subr.mxu0 0.0
  %381 = vmatpush1.msra.mxu0 0.0
  %382 = vmatprep.subr.mxu0 0.0
  %383 = vmatpush1.msra.mxu0 0.0
  %384 = vmatprep.subr.mxu0 0.0
  %385 = vmatpush1.msra.mxu0 0.0
  %386 = vmatprep.subr.mxu0 0.0
  %387 = vmatpush1.msra.mxu0 0.0
  %388 = vmatprep.subr.mxu0 0.0
  %389 = vmatpush1.msra.mxu0 0.0
  %390 = vmatprep.subr.mxu0 0.0
  %391 = vmatpush1.msra.mxu0 0.0
  %392 = vmatprep.subr.mxu0 0.0
  %393 = vmatpush1.msra.mxu0 0.0
  %394 = vmatprep.mubr.f32.mxu0 0.0
  %395 = vmatmul.mubr.f32.gmra.mrb[0].mxu0 %v328
  %v396 = vpop.f32.mrb[0].mxu0
  %v397 = vadd.f32 0.0, %v396
  %v398 = vpop.f32.mrb[0].mxu0
  %399 = vdwg.mxu0
  %v400 = vadd.f32 %v325, %v397
  %v401 = vxor.u32 %v400, 2147483648
  %v402 = vmul.f32 %v401, 1.442695
  %v403 = vpow.pop %v402
  %v404 = vadd.f32 %v403, 1.0
  %v405 = vrcp.pop %v404
  %v406 = vmul.f32 1.0, %v405
  %v407 = vtanh.pop %v400
  %v408 = vmul.f32 %v406, 0.0
  %410 = vrot.lane.b32.xlu0 %v407, 64
  %v411 = vpop.permute.xlu0 %410
  %v413 = vmul.f32 %v406, %v411
  %415 = vrot.lane.b32.xlu0 %v413, 32
  %v416 = vpop.permute.xlu0 %415
  %v418 = vadd.f32 %v408, %v416
  %v419 = vtanh.pop %v418
  %421 = vrot.lane.b32.xlu0 %v419, 64
  %v422 = vpop.permute.xlu0 %421
  %v424 = vmul.f32 %v406, %v422
  %v425 = vld [vmem:[%s1] sm:$0xff]
  %vm426 = vcmp.gt.f32.partialorder %v425, 0.0
  %428 = vrot.lane.b32.xlu0 %v424, 32
  %v429 = vpop.permute.xlu0 %428
  %v431 = vsel %vm426, %v429, 0.0
  %433 = vrot.lane.b32.xlu0 %v418, 96
  %v434 = vpop.permute.xlu0 %433
  %v436 = vsel %vm426, %v434, 0.0
  %s437 = scalar_lea.vmem [#allocation2], 8
  %v438 = vld [vmem:[%s437] sm:$0xff]
  %v440 = vsel %vm326, %v431, 0
  %442 = vmatprep.subr.mxu0 0.0
  %443 = vmatpush1.msra.mxu0 %v317
  %444 = vmatprep.subr.mxu0 0.0
  %445 = vmatpush1.msra.mxu0 %v318
  %446 = vmatprep.subr.mxu0 0.0
  %447 = vmatpush1.msra.mxu0 %v319
  %448 = vmatprep.subr.mxu0 0.0
  %449 = vmatpush1.msra.mxu0 %v320
  %450 = vmatprep.subr.mxu0 0.0
  %451 = vmatpush1.msra.mxu0 0.0
  %452 = vmatprep.subr.mxu0 0.0
  %453 = vmatpush1.msra.mxu0 0.0
  %454 = vmatprep.subr.mxu0 0.0
  %455 = vmatpush1.msra.mxu0 0.0
  %456 = vmatprep.subr.mxu0 0.0
  %457 = vmatpush1.msra.mxu0 0.0
  %458 = vmatprep.subr.mxu0 0.0
  %459 = vmatpush1.msra.mxu0 0.0
  %460 = vmatprep.subr.mxu0 0.0
  %461 = vmatpush1.msra.mxu0 0.0
  %462 = vmatprep.subr.mxu0 0.0
  %463 = vmatpush1.msra.mxu0 0.0
  %464 = vmatprep.subr.mxu0 0.0
  %465 = vmatpush1.msra.mxu0 0.0
  %466 = vmatprep.subr.mxu0 0.0
  %467 = vmatpush1.msra.mxu0 0.0
  %468 = vmatprep.subr.mxu0 0.0
  %469 = vmatpush1.msra.mxu0 0.0
  %470 = vmatprep.subr.mxu0 0.0
  %471 = vmatpush1.msra.mxu0 0.0
  %472 = vmatprep.subr.mxu0 0.0
  %473 = vmatpush1.msra.mxu0 0.0
  %474 = vmatprep.subr.mxu0 0.0
  %475 = vmatpush1.msra.mxu0 0.0
  %476 = vmatprep.subr.mxu0 0.0
  %477 = vmatpush1.msra.mxu0 0.0
  %478 = vmatprep.subr.mxu0 0.0
  %479 = vmatpush1.msra.mxu0 0.0
  %480 = vmatprep.subr.mxu0 0.0
  %481 = vmatpush1.msra.mxu0 0.0
  %482 = vmatprep.subr.mxu0 0.0
  %483 = vmatpush1.msra.mxu0 0.0
  %484 = vmatprep.subr.mxu0 0.0
  %485 = vmatpush1.msra.mxu0 0.0
  %486 = vmatprep.subr.mxu0 0.0
  %487 = vmatpush1.msra.mxu0 0.0
  %488 = vmatprep.subr.mxu0 0.0
  %489 = vmatpush1.msra.mxu0 0.0
  %490 = vmatprep.subr.mxu0 0.0
  %491 = vmatpush1.msra.mxu0 0.0
  %492 = vmatprep.subr.mxu0 0.0
  %493 = vmatpush1.msra.mxu0 0.0
  %494 = vmatprep.subr.mxu0 0.0
  %495 = vmatpush1.msra.mxu0 0.0
  %496 = vmatprep.subr.mxu0 0.0
  %497 = vmatpush1.msra.mxu0 0.0
  %498 = vmatprep.subr.mxu0 0.0
  %499 = vmatpush1.msra.mxu0 0.0
  %500 = vmatprep.subr.mxu0 0.0
  %501 = vmatpush1.msra.mxu0 0.0
  %502 = vmatprep.subr.mxu0 0.0
  %503 = vmatpush1.msra.mxu0 0.0
  %504 = vmatprep.subr.mxu0 0.0
  %505 = vmatpush1.msra.mxu0 0.0
  %506 = vmatprep.mubr.f32.mxu0 0.0
  %507 = vmatmul.mubr.f32.gmra.mrb[0].mxu0 %v440
  %v508 = vpop.f32.mrb[0].mxu0
  %v509 = vadd.f32 0.0, %v508
  %v510 = vpop.f32.mrb[0].mxu0
  %511 = vdwg.mxu0
  %v512 = vadd.f32 %v438, %v509
  %v513 = vxor.u32 %v512, 2147483648
  %v514 = vmul.f32 %v513, 1.442695
  %v515 = vpow.pop %v514
  %v516 = vadd.f32 %v515, 1.0
  %v517 = vrcp.pop %v516
  %v518 = vmul.f32 1.0, %v517
  %v519 = vtanh.pop %v512
  %521 = vrot.lane.b32.xlu0 %v436, 32
  %v522 = vpop.permute.xlu0 %521
  %v524 = vmul.f32 %v518, %v522
  %526 = vrot.lane.b32.xlu0 %v519, 64
  %v527 = vpop.permute.xlu0 %526
  %v529 = vmul.f32 %v518, %v527
  %531 = vrot.lane.b32.xlu0 %v529, 32
  %v532 = vpop.permute.xlu0 %531
  %v534 = vadd.f32 %v524, %v532
  %v535 = vtanh.pop %v534
  %537 = vrot.lane.b32.xlu0 %v535, 64
  %v538 = vpop.permute.xlu0 %537
  %v540 = vmul.f32 %v518, %v538
  %s541 = scalar_lea.vmem %s1, 8
  %v542 = vld [vmem:[%s541] sm:$0xff]
  %vm543 = vcmp.gt.f32.partialorder %v542, 0.0
  %545 = vrot.lane.b32.xlu0 %v540, 32
  %v546 = vpop.permute.xlu0 %545
  %v548 = vsel %vm543, %v546, %v431
  %550 = vrot.lane.b32.xlu0 %v534, 96
  %v551 = vpop.permute.xlu0 %550
  %v553 = vsel %vm543, %v551, %v436
  %s554 = scalar_lea.vmem [#allocation2], 16
  %v555 = vld [vmem:[%s554] sm:$0xff]
  %v557 = vsel %vm326, %v548, 0
  %559 = vmatprep.subr.mxu0 0.0
  %560 = vmatpush1.msra.mxu0 %v317
  %561 = vmatprep.subr.mxu0 0.0
  %562 = vmatpush1.msra.mxu0 %v318
  %563 = vmatprep.subr.mxu0 0.0
  %564 = vmatpush1.msra.mxu0 %v319
  %565 = vmatprep.subr.mxu0 0.0
  %566 = vmatpush1.msra.mxu0 %v320
  %567 = vmatprep.subr.mxu0 0.0
  %568 = vmatpush1.msra.mxu0 0.0
  %569 = vmatprep.subr.mxu0 0.0
  %570 = vmatpush1.msra.mxu0 0.0
  %571 = vmatprep.subr.mxu0 0.0
  %572 = vmatpush1.msra.mxu0 0.0
  %573 = vmatprep.subr.mxu0 0.0
  %574 = vmatpush1.msra.mxu0 0.0
  %575 = vmatprep.subr.mxu0 0.0
  %576 = vmatpush1.msra.mxu0 0.0
  %577 = vmatprep.subr.mxu0 0.0
  %578 = vmatpush1.msra.mxu0 0.0
  %579 = vmatprep.subr.mxu0 0.0
  %580 = vmatpush1.msra.mxu0 0.0
  %581 = vmatprep.subr.mxu0 0.0
  %582 = vmatpush1.msra.mxu0 0.0
  %583 = vmatprep.subr.mxu0 0.0
  %584 = vmatpush1.msra.mxu0 0.0
  %585 = vmatprep.subr.mxu0 0.0
  %586 = vmatpush1.msra.mxu0 0.0
  %587 = vmatprep.subr.mxu0 0.0
  %588 = vmatpush1.msra.mxu0 0.0
  %589 = vmatprep.subr.mxu0 0.0
  %590 = vmatpush1.msra.mxu0 0.0
  %591 = vmatprep.subr.mxu0 0.0
  %592 = vmatpush1.msra.mxu0 0.0
  %593 = vmatprep.subr.mxu0 0.0
  %594 = vmatpush1.msra.mxu0 0.0
  %595 = vmatprep.subr.mxu0 0.0
  %596 = vmatpush1.msra.mxu0 0.0
  %597 = vmatprep.subr.mxu0 0.0
  %598 = vmatpush1.msra.mxu0 0.0
  %599 = vmatprep.subr.mxu0 0.0
  %600 = vmatpush1.msra.mxu0 0.0
  %601 = vmatprep.subr.mxu0 0.0
  %602 = vmatpush1.msra.mxu0 0.0
  %603 = vmatprep.subr.mxu0 0.0
  %604 = vmatpush1.msra.mxu0 0.0
  %605 = vmatprep.subr.mxu0 0.0
  %606 = vmatpush1.msra.mxu0 0.0
  %607 = vmatprep.subr.mxu0 0.0
  %608 = vmatpush1.msra.mxu0 0.0
  %609 = vmatprep.subr.mxu0 0.0
  %610 = vmatpush1.msra.mxu0 0.0
  %611 = vmatprep.subr.mxu0 0.0
  %612 = vmatpush1.msra.mxu0 0.0
  %613 = vmatprep.subr.mxu0 0.0
  %614 = vmatpush1.msra.mxu0 0.0
  %615 = vmatprep.subr.mxu0 0.0
  %616 = vmatpush1.msra.mxu0 0.0
  %617 = vmatprep.subr.mxu0 0.0
  %618 = vmatpush1.msra.mxu0 0.0
  %619 = vmatprep.subr.mxu0 0.0
  %620 = vmatpush1.msra.mxu0 0.0
  %621 = vmatprep.subr.mxu0 0.0
  %622 = vmatpush1.msra.mxu0 0.0
  %623 = vmatprep.mubr.f32.mxu0 0.0
  %624 = vmatmul.mubr.f32.gmra.mrb[0].mxu0 %v557
  %v625 = vpop.f32.mrb[0].mxu0
  %v626 = vadd.f32 0.0, %v625
  %v627 = vpop.f32.mrb[0].mxu0
  %628 = vdwg.mxu0
  %v629 = vadd.f32 %v555, %v626
  %v630 = vxor.u32 %v629, 2147483648
  %v631 = vmul.f32 %v630, 1.442695
  %v632 = vpow.pop %v631
  %v633 = vadd.f32 %v632, 1.0
  %v634 = vrcp.pop %v633
  %v635 = vmul.f32 1.0, %v634
  %v636 = vtanh.pop %v629
  %638 = vrot.lane.b32.xlu0 %v553, 32
  %v639 = vpop.permute.xlu0 %638
  %v641 = vmul.f32 %v635, %v639
  %643 = vrot.lane.b32.xlu0 %v636, 64
  %v644 = vpop.permute.xlu0 %643
  %v646 = vmul.f32 %v635, %v644
  %648 = vrot.lane.b32.xlu0 %v646, 32
  %v649 = vpop.permute.xlu0 %648
  %v651 = vadd.f32 %v641, %v649
  %v652 = vtanh.pop %v651
  %654 = vrot.lane.b32.xlu0 %v652, 64
  %v655 = vpop.permute.xlu0 %654
  %v657 = vmul.f32 %v635, %v655
  %s658 = scalar_lea.vmem %s1, 16
  %v659 = vld [vmem:[%s658] sm:$0xff]
  %vm660 = vcmp.gt.f32.partialorder %v659, 0.0
  %662 = vrot.lane.b32.xlu0 %v657, 32
  %v663 = vpop.permute.xlu0 %662
  %v665 = vsel %vm660, %v663, %v548
  %667 = vrot.lane.b32.xlu0 %v651, 96
  %v668 = vpop.permute.xlu0 %667
  %v670 = vsel %vm660, %v668, %v553
  %s671 = scalar_lea.vmem [#allocation2], 24
  %v672 = vld [vmem:[%s671] sm:$0xff]
  %v674 = vsel %vm326, %v665, 0
  %676 = vmatprep.subr.mxu0 0.0
  %677 = vmatpush1.msra.mxu0 %v317
  %678 = vmatprep.subr.mxu0 0.0
  %679 = vmatpush1.msra.mxu0 %v318
  %680 = vmatprep.subr.mxu0 0.0
  %681 = vmatpush1.msra.mxu0 %v319
  %682 = vmatprep.subr.mxu0 0.0
  %683 = vmatpush1.msra.mxu0 %v320
  %684 = vmatprep.subr.mxu0 0.0
  %685 = vmatpush1.msra.mxu0 0.0
  %686 = vmatprep.subr.mxu0 0.0
  %687 = vmatpush1.msra.mxu0 0.0
  %688 = vmatprep.subr.mxu0 0.0
  %689 = vmatpush1.msra.mxu0 0.0
  %690 = vmatprep.subr.mxu0 0.0
  %691 = vmatpush1.msra.mxu0 0.0
  %692 = vmatprep.subr.mxu0 0.0
  %693 = vmatpush1.msra.mxu0 0.0
  %694 = vmatprep.subr.mxu0 0.0
  %695 = vmatpush1.msra.mxu0 0.0
  %696 = vmatprep.subr.mxu0 0.0
  %697 = vmatpush1.msra.mxu0 0.0
  %698 = vmatprep.subr.mxu0 0.0
  %699 = vmatpush1.msra.mxu0 0.0
  %700 = vmatprep.subr.mxu0 0.0
  %701 = vmatpush1.msra.mxu0 0.0
  %702 = vmatprep.subr.mxu0 0.0
  %703 = vmatpush1.msra.mxu0 0.0
  %704 = vmatprep.subr.mxu0 0.0
  %705 = vmatpush1.msra.mxu0 0.0
  %706 = vmatprep.subr.mxu0 0.0
  %707 = vmatpush1.msra.mxu0 0.0
  %708 = vmatprep.subr.mxu0 0.0
  %709 = vmatpush1.msra.mxu0 0.0
  %710 = vmatprep.subr.mxu0 0.0
  %711 = vmatpush1.msra.mxu0 0.0
  %712 = vmatprep.subr.mxu0 0.0
  %713 = vmatpush1.msra.mxu0 0.0
  %714 = vmatprep.subr.mxu0 0.0
  %715 = vmatpush1.msra.mxu0 0.0
  %716 = vmatprep.subr.mxu0 0.0
  %717 = vmatpush1.msra.mxu0 0.0
  %718 = vmatprep.subr.mxu0 0.0
  %719 = vmatpush1.msra.mxu0 0.0
  %720 = vmatprep.subr.mxu0 0.0
  %721 = vmatpush1.msra.mxu0 0.0
  %722 = vmatprep.subr.mxu0 0.0
  %723 = vmatpush1.msra.mxu0 0.0
  %724 = vmatprep.subr.mxu0 0.0
  %725 = vmatpush1.msra.mxu0 0.0
  %726 = vmatprep.subr.mxu0 0.0
  %727 = vmatpush1.msra.mxu0 0.0
  %728 = vmatprep.subr.mxu0 0.0
  %729 = vmatpush1.msra.mxu0 0.0
  %730 = vmatprep.subr.mxu0 0.0
  %731 = vmatpush1.msra.mxu0 0.0
  %732 = vmatprep.subr.mxu0 0.0
  %733 = vmatpush1.msra.mxu0 0.0
  %734 = vmatprep.subr.mxu0 0.0
  %735 = vmatpush1.msra.mxu0 0.0
  %736 = vmatprep.subr.mxu0 0.0
  %737 = vmatpush1.msra.mxu0 0.0
  %738 = vmatprep.subr.mxu0 0.0
  %739 = vmatpush1.msra.mxu0 0.0
  %740 = vmatprep.mubr.f32.mxu0 0.0
  %741 = vmatmul.mubr.f32.gmra.mrb[0].mxu0 %v674
  %v742 = vpop.f32.mrb[0].mxu0
  %v743 = vadd.f32 0.0, %v742
  %v744 = vpop.f32.mrb[0].mxu0
  %745 = vdwg.mxu0
  %v746 = vadd.f32 %v672, %v743
  %v747 = vxor.u32 %v746, 2147483648
  %v748 = vmul.f32 %v747, 1.442695
  %v749 = vpow.pop %v748
  %v750 = vadd.f32 %v749, 1.0
  %v751 = vrcp.pop %v750
  %v752 = vmul.f32 1.0, %v751
  %v753 = vtanh.pop %v746
  %755 = vrot.lane.b32.xlu0 %v670, 32
  %v756 = vpop.permute.xlu0 %755
  %v758 = vmul.f32 %v752, %v756
  %760 = vrot.lane.b32.xlu0 %v753, 64
  %v761 = vpop.permute.xlu0 %760
  %v763 = vmul.f32 %v752, %v761
  %765 = vrot.lane.b32.xlu0 %v763, 32
  %v766 = vpop.permute.xlu0 %765
  %v768 = vadd.f32 %v758, %v766
  %v769 = vtanh.pop %v768
  %771 = vrot.lane.b32.xlu0 %v769, 64
  %v772 = vpop.permute.xlu0 %771
  %v774 = vmul.f32 %v752, %v772
  %s775 = scalar_lea.vmem %s1, 24
  %v776 = vld [vmem:[%s775] sm:$0xff]
  %vm777 = vcmp.gt.f32.partialorder %v776, 0.0
  %779 = vrot.lane.b32.xlu0 %v774, 32
  %v780 = vpop.permute.xlu0 %779
  %v782 = vsel %vm777, %v780, %v665
  %784 = vrot.lane.b32.xlu0 %v768, 96
  %v785 = vpop.permute.xlu0 %784
  %v787 = vsel %vm777, %v785, %v670
  %s788 = scalar_lea.vmem [#allocation2], 32
  %v789 = vld [vmem:[%s788] sm:$0xff]
  %v791 = vsel %vm326, %v782, 0
  %793 = vmatprep.subr.mxu0 0.0
  %794 = vmatpush1.msra.mxu0 %v317
  %795 = vmatprep.subr.mxu0 0.0
  %796 = vmatpush1.msra.mxu0 %v318
  %797 = vmatprep.subr.mxu0 0.0
  %798 = vmatpush1.msra.mxu0 %v319
  %799 = vmatprep.subr.mxu0 0.0
  %800 = vmatpush1.msra.mxu0 %v320
  %801 = vmatprep.subr.mxu0 0.0
  %802 = vmatpush1.msra.mxu0 0.0
  %803 = vmatprep.subr.mxu0 0.0
  %804 = vmatpush1.msra.mxu0 0.0
  %805 = vmatprep.subr.mxu0 0.0
  %806 = vmatpush1.msra.mxu0 0.0
  %807 = vmatprep.subr.mxu0 0.0
  %808 = vmatpush1.msra.mxu0 0.0
  %809 = vmatprep.subr.mxu0 0.0
  %810 = vmatpush1.msra.mxu0 0.0
  %811 = vmatprep.subr.mxu0 0.0
  %812 = vmatpush1.msra.mxu0 0.0
  %813 = vmatprep.subr.mxu0 0.0
  %814 = vmatpush1.msra.mxu0 0.0
  %815 = vmatprep.subr.mxu0 0.0
  %816 = vmatpush1.msra.mxu0 0.0
  %817 = vmatprep.subr.mxu0 0.0
  %818 = vmatpush1.msra.mxu0 0.0
  %819 = vmatprep.subr.mxu0 0.0
  %820 = vmatpush1.msra.mxu0 0.0
  %821 = vmatprep.subr.mxu0 0.0
  %822 = vmatpush1.msra.mxu0 0.0
  %823 = vmatprep.subr.mxu0 0.0
  %824 = vmatpush1.msra.mxu0 0.0
  %825 = vmatprep.subr.mxu0 0.0
  %826 = vmatpush1.msra.mxu0 0.0
  %827 = vmatprep.subr.mxu0 0.0
  %828 = vmatpush1.msra.mxu0 0.0
  %829 = vmatprep.subr.mxu0 0.0
  %830 = vmatpush1.msra.mxu0 0.0
  %831 = vmatprep.subr.mxu0 0.0
  %832 = vmatpush1.msra.mxu0 0.0
  %833 = vmatprep.subr.mxu0 0.0
  %834 = vmatpush1.msra.mxu0 0.0
  %835 = vmatprep.subr.mxu0 0.0
  %836 = vmatpush1.msra.mxu0 0.0
  %837 = vmatprep.subr.mxu0 0.0
  %838 = vmatpush1.msra.mxu0 0.0
  %839 = vmatprep.subr.mxu0 0.0
  %840 = vmatpush1.msra.mxu0 0.0
  %841 = vmatprep.subr.mxu0 0.0
  %842 = vmatpush1.msra.mxu0 0.0
  %843 = vmatprep.subr.mxu0 0.0
  %844 = vmatpush1.msra.mxu0 0.0
  %845 = vmatprep.subr.mxu0 0.0
  %846 = vmatpush1.msra.mxu0 0.0
  %847 = vmatprep.subr.mxu0 0.0
  %848 = vmatpush1.msra.mxu0 0.0
  %849 = vmatprep.subr.mxu0 0.0
  %850 = vmatpush1.msra.mxu0 0.0
  %851 = vmatprep.subr.mxu0 0.0
  %852 = vmatpush1.msra.mxu0 0.0
  %853 = vmatprep.subr.mxu0 0.0
  %854 = vmatpush1.msra.mxu0 0.0
  %855 = vmatprep.subr.mxu0 0.0
  %856 = vmatpush1.msra.mxu0 0.0
  %857 = vmatprep.mubr.f32.mxu0 0.0
  %858 = vmatmul.mubr.f32.gmra.mrb[0].mxu0 %v791
  %v859 = vpop.f32.mrb[0].mxu0
  %v860 = vadd.f32 0.0, %v859
  %v861 = vpop.f32.mrb[0].mxu0
  %862 = vdwg.mxu0
  %v863 = vadd.f32 %v789, %v860
  %v864 = vxor.u32 %v863, 2147483648
  %v865 = vmul.f32 %v864, 1.442695
  %v866 = vpow.pop %v865
  %v867 = vadd.f32 %v866, 1.0
  %v868 = vrcp.pop %v867
  %v869 = vmul.f32 1.0, %v868
  %v870 = vtanh.pop %v863
  %872 = vrot.lane.b32.xlu0 %v787, 32
  %v873 = vpop.permute.xlu0 %872
  %v875 = vmul.f32 %v869, %v873
  %877 = vrot.lane.b32.xlu0 %v870, 64
  %v878 = vpop.permute.xlu0 %877
  %v880 = vmul.f32 %v869, %v878
  %882 = vrot.lane.b32.xlu0 %v880, 32
  %v883 = vpop.permute.xlu0 %882
  %v885 = vadd.f32 %v875, %v883
  %v886 = vtanh.pop %v885
  %888 = vrot.lane.b32.xlu0 %v886, 64
  %v889 = vpop.permute.xlu0 %888
  %v891 = vmul.f32 %v869, %v889
  %s892 = scalar_lea.vmem %s1, 32
  %v893 = vld [vmem:[%s892] sm:$0xff]
  %vm894 = vcmp.gt.f32.partialorder %v893, 0.0
  %896 = vrot.lane.b32.xlu0 %v891, 32
  %v897 = vpop.permute.xlu0 %896
  %v899 = vsel %vm894, %v897, %v782
  %901 = vrot.lane.b32.xlu0 %v885, 96
  %v902 = vpop.permute.xlu0 %901
  %v904 = vsel %vm894, %v902, %v787
  %s905 = scalar_lea.vmem [#allocation2], 40
  %v906 = vld [vmem:[%s905] sm:$0xff]
  %v908 = vsel %vm326, %v899, 0
  %910 = vmatprep.subr.mxu0 0.0
  %911 = vmatpush1.msra.mxu0 %v317
  %912 = vmatprep.subr.mxu0 0.0
  %913 = vmatpush1.msra.mxu0 %v318
  %914 = vmatprep.subr.mxu0 0.0
  %915 = vmatpush1.msra.mxu0 %v319
  %916 = vmatprep.subr.mxu0 0.0
  %917 = vmatpush1.msra.mxu0 %v320
  %918 = vmatprep.subr.mxu0 0.0
  %919 = vmatpush1.msra.mxu0 0.0
  %920 = vmatprep.subr.mxu0 0.0
  %921 = vmatpush1.msra.mxu0 0.0
  %922 = vmatprep.subr.mxu0 0.0
  %923 = vmatpush1.msra.mxu0 0.0
  %924 = vmatprep.subr.mxu0 0.0
  %925 = vmatpush1.msra.mxu0 0.0
  %926 = vmatprep.subr.mxu0 0.0
  %927 = vmatpush1.msra.mxu0 0.0
  %928 = vmatprep.subr.mxu0 0.0
  %929 = vmatpush1.msra.mxu0 0.0
  %930 = vmatprep.subr.mxu0 0.0
  %931 = vmatpush1.msra.mxu0 0.0
  %932 = vmatprep.subr.mxu0 0.0
  %933 = vmatpush1.msra.mxu0 0.0
  %934 = vmatprep.subr.mxu0 0.0
  %935 = vmatpush1.msra.mxu0 0.0
  %936 = vmatprep.subr.mxu0 0.0
  %937 = vmatpush1.msra.mxu0 0.0
  %938 = vmatprep.subr.mxu0 0.0
  %939 = vmatpush1.msra.mxu0 0.0
  %940 = vmatprep.subr.mxu0 0.0
  %941 = vmatpush1.msra.mxu0 0.0
  %942 = vmatprep.subr.mxu0 0.0
  %943 = vmatpush1.msra.mxu0 0.0
  %944 = vmatprep.subr.mxu0 0.0
  %945 = vmatpush1.msra.mxu0 0.0
  %946 = vmatprep.subr.mxu0 0.0
  %947 = vmatpush1.msra.mxu0 0.0
  %948 = vmatprep.subr.mxu0 0.0
  %949 = vmatpush1.msra.mxu0 0.0
  %950 = vmatprep.subr.mxu0 0.0
  %951 = vmatpush1.msra.mxu0 0.0
  %952 = vmatprep.subr.mxu0 0.0
  %953 = vmatpush1.msra.mxu0 0.0
  %954 = vmatprep.subr.mxu0 0.0
  %955 = vmatpush1.msra.mxu0 0.0
  %956 = vmatprep.subr.mxu0 0.0
  %957 = vmatpush1.msra.mxu0 0.0
  %958 = vmatprep.subr.mxu0 0.0
  %959 = vmatpush1.msra.mxu0 0.0
  %960 = vmatprep.subr.mxu0 0.0
  %961 = vmatpush1.msra.mxu0 0.0
  %962 = vmatprep.subr.mxu0 0.0
  %963 = vmatpush1.msra.mxu0 0.0
  %964 = vmatprep.subr.mxu0 0.0
  %965 = vmatpush1.msra.mxu0 0.0
  %966 = vmatprep.subr.mxu0 0.0
  %967 = vmatpush1.msra.mxu0 0.0
  %968 = vmatprep.subr.mxu0 0.0
  %969 = vmatpush1.msra.mxu0 0.0
  %970 = vmatprep.subr.mxu0 0.0
  %971 = vmatpush1.msra.mxu0 0.0
  %972 = vmatprep.subr.mxu0 0.0
  %973 = vmatpush1.msra.mxu0 0.0
  %974 = vmatprep.mubr.f32.mxu0 0.0
  %975 = vmatmul.mubr.f32.gmra.mrb[0].mxu0 %v908
  %v976 = vpop.f32.mrb[0].mxu0
  %v977 = vadd.f32 0.0, %v976
  %v978 = vpop.f32.mrb[0].mxu0
  %979 = vdwg.mxu0
  %v980 = vadd.f32 %v906, %v977
  %v981 = vxor.u32 %v980, 2147483648
  %v982 = vmul.f32 %v981, 1.442695
  %v983 = vpow.pop %v982
  %v984 = vadd.f32 %v983, 1.0
  %v985 = vrcp.pop %v984
  %v986 = vmul.f32 1.0, %v985
  %v987 = vtanh.pop %v980
  %989 = vrot.lane.b32.xlu0 %v904, 32
  %v990 = vpop.permute.xlu0 %989
  %v992 = vmul.f32 %v986, %v990
  %994 = vrot.lane.b32.xlu0 %v987, 64
  %v995 = vpop.permute.xlu0 %994
  %v997 = vmul.f32 %v986, %v995
  %999 = vrot.lane.b32.xlu0 %v997, 32
  %v1000 = vpop.permute.xlu0 %999
  %v1002 = vadd.f32 %v992, %v1000
  %v1003 = vtanh.pop %v1002
  %1005 = vrot.lane.b32.xlu0 %v1003, 64
  %v1006 = vpop.permute.xlu0 %1005
  %v1008 = vmul.f32 %v986, %v1006
  %s1009 = scalar_lea.vmem %s1, 40
  %v1010 = vld [vmem:[%s1009] sm:$0xff]
  %vm1011 = vcmp.gt.f32.partialorder %v1010, 0.0
  %1013 = vrot.lane.b32.xlu0 %v1008, 32
  %v1014 = vpop.permute.xlu0 %1013
  %v1016 = vsel %vm1011, %v1014, %v899
  %1018 = vrot.lane.b32.xlu0 %v1002, 96
  %v1019 = vpop.permute.xlu0 %1018
  %v1021 = vsel %vm1011, %v1019, %v904
  %s1022 = scalar_lea.vmem [#allocation2], 48
  %v1023 = vld [vmem:[%s1022] sm:$0xff]
  %v1025 = vsel %vm326, %v1016, 0
  %1027 = vmatprep.subr.mxu0 0.0
  %1028 = vmatpush1.msra.mxu0 %v317
  %1029 = vmatprep.subr.mxu0 0.0
  %1030 = vmatpush1.msra.mxu0 %v318
  %1031 = vmatprep.subr.mxu0 0.0
  %1032 = vmatpush1.msra.mxu0 %v319
  %1033 = vmatprep.subr.mxu0 0.0
  %1034 = vmatpush1.msra.mxu0 %v320
  %1035 = vmatprep.subr.mxu0 0.0
  %1036 = vmatpush1.msra.mxu0 0.0
  %1037 = vmatprep.subr.mxu0 0.0
  %1038 = vmatpush1.msra.mxu0 0.0
  %1039 = vmatprep.subr.mxu0 0.0
  %1040 = vmatpush1.msra.mxu0 0.0
  %1041 = vmatprep.subr.mxu0 0.0
  %1042 = vmatpush1.msra.mxu0 0.0
  %1043 = vmatprep.subr.mxu0 0.0
  %1044 = vmatpush1.msra.mxu0 0.0
  %1045 = vmatprep.subr.mxu0 0.0
  %1046 = vmatpush1.msra.mxu0 0.0
  %1047 = vmatprep.subr.mxu0 0.0
  %1048 = vmatpush1.msra.mxu0 0.0
  %1049 = vmatprep.subr.mxu0 0.0
  %1050 = vmatpush1.msra.mxu0 0.0
  %1051 = vmatprep.subr.mxu0 0.0
  %1052 = vmatpush1.msra.mxu0 0.0
  %1053 = vmatprep.subr.mxu0 0.0
  %1054 = vmatpush1.msra.mxu0 0.0
  %1055 = vmatprep.subr.mxu0 0.0
  %1056 = vmatpush1.msra.mxu0 0.0
  %1057 = vmatprep.subr.mxu0 0.0
  %1058 = vmatpush1.msra.mxu0 0.0
  %1059 = vmatprep.subr.mxu0 0.0
  %1060 = vmatpush1.msra.mxu0 0.0
  %1061 = vmatprep.subr.mxu0 0.0
  %1062 = vmatpush1.msra.mxu0 0.0
  %1063 = vmatprep.subr.mxu0 0.0
  %1064 = vmatpush1.msra.mxu0 0.0
  %1065 = vmatprep.subr.mxu0 0.0
  %1066 = vmatpush1.msra.mxu0 0.0
  %1067 = vmatprep.subr.mxu0 0.0
  %1068 = vmatpush1.msra.mxu0 0.0
  %1069 = vmatprep.subr.mxu0 0.0
  %1070 = vmatpush1.msra.mxu0 0.0
  %1071 = vmatprep.subr.mxu0 0.0
  %1072 = vmatpush1.msra.mxu0 0.0
  %1073 = vmatprep.subr.mxu0 0.0
  %1074 = vmatpush1.msra.mxu0 0.0
  %1075 = vmatprep.subr.mxu0 0.0
  %1076 = vmatpush1.msra.mxu0 0.0
  %1077 = vmatprep.subr.mxu0 0.0
  %1078 = vmatpush1.msra.mxu0 0.0
  %1079 = vmatprep.subr.mxu0 0.0
  %1080 = vmatpush1.msra.mxu0 0.0
  %1081 = vmatprep.subr.mxu0 0.0
  %1082 = vmatpush1.msra.mxu0 0.0
  %1083 = vmatprep.subr.mxu0 0.0
  %1084 = vmatpush1.msra.mxu0 0.0
  %1085 = vmatprep.subr.mxu0 0.0
  %1086 = vmatpush1.msra.mxu0 0.0
  %1087 = vmatprep.subr.mxu0 0.0
  %1088 = vmatpush1.msra.mxu0 0.0
  %1089 = vmatprep.subr.mxu0 0.0
  %1090 = vmatpush1.msra.mxu0 0.0
  %1091 = vmatprep.mubr.f32.mxu0 0.0
  %1092 = vmatmul.mubr.f32.gmra.mrb[0].mxu0 %v1025
  %v1093 = vpop.f32.mrb[0].mxu0
  %v1094 = vadd.f32 0.0, %v1093
  %v1095 = vpop.f32.mrb[0].mxu0
  %1096 = vdwg.mxu0
  %v1097 = vadd.f32 %v1023, %v1094
  %v1098 = vxor.u32 %v1097, 2147483648
  %v1099 = vmul.f32 %v1098, 1.442695
  %v1100 = vpow.pop %v1099
  %v1101 = vadd.f32 %v1100, 1.0
  %v1102 = vrcp.pop %v1101
  %v1103 = vmul.f32 1.0, %v1102
  %v1104 = vtanh.pop %v1097
  %1106 = vrot.lane.b32.xlu0 %v1021, 32
  %v1107 = vpop.permute.xlu0 %1106
  %v1109 = vmul.f32 %v1103, %v1107
  %1111 = vrot.lane.b32.xlu0 %v1104, 64
  %v1112 = vpop.permute.xlu0 %1111
  %v1114 = vmul.f32 %v1103, %v1112
  %1116 = vrot.lane.b32.xlu0 %v1114, 32
  %v1117 = vpop.permute.xlu0 %1116
  %v1119 = vadd.f32 %v1109, %v1117
  %v1120 = vtanh.pop %v1119
  %1122 = vrot.lane.b32.xlu0 %v1120, 64
  %v1123 = vpop.permute.xlu0 %1122
  %v1125 = vmul.f32 %v1103, %v1123
  %s1126 = scalar_lea.vmem %s1, 48
  %v1127 = vld [vmem:[%s1126] sm:$0xff]
  %vm1128 = vcmp.gt.f32.partialorder %v1127, 0.0
  %1130 = vrot.lane.b32.xlu0 %v1125, 32
  %v1131 = vpop.permute.xlu0 %1130
  %v1133 = vsel %vm1128, %v1131, %v1016
  %1135 = vrot.lane.b32.xlu0 %v1119, 96
  %v1136 = vpop.permute.xlu0 %1135
  %v1138 = vsel %vm1128, %v1136, %v1021
  %s1139 = scalar_lea.vmem [#allocation2], 56
  %v1140 = vld [vmem:[%s1139] sm:$0xff]
  %v1142 = vsel %vm326, %v1133, 0
  %1144 = vmatprep.subr.mxu0 0.0
  %1145 = vmatpush1.msra.mxu0 %v317
  %1146 = vmatprep.subr.mxu0 0.0
  %1147 = vmatpush1.msra.mxu0 %v318
  %1148 = vmatprep.subr.mxu0 0.0
  %1149 = vmatpush1.msra.mxu0 %v319
  %1150 = vmatprep.subr.mxu0 0.0
  %1151 = vmatpush1.msra.mxu0 %v320
  %1152 = vmatprep.subr.mxu0 0.0
  %1153 = vmatpush1.msra.mxu0 0.0
  %1154 = vmatprep.subr.mxu0 0.0
  %1155 = vmatpush1.msra.mxu0 0.0
  %1156 = vmatprep.subr.mxu0 0.0
  %1157 = vmatpush1.msra.mxu0 0.0
  %1158 = vmatprep.subr.mxu0 0.0
  %1159 = vmatpush1.msra.mxu0 0.0
  %1160 = vmatprep.subr.mxu0 0.0
  %1161 = vmatpush1.msra.mxu0 0.0
  %1162 = vmatprep.subr.mxu0 0.0
  %1163 = vmatpush1.msra.mxu0 0.0
  %1164 = vmatprep.subr.mxu0 0.0
  %1165 = vmatpush1.msra.mxu0 0.0
  %1166 = vmatprep.subr.mxu0 0.0
  %1167 = vmatpush1.msra.mxu0 0.0
  %1168 = vmatprep.subr.mxu0 0.0
  %1169 = vmatpush1.msra.mxu0 0.0
  %1170 = vmatprep.subr.mxu0 0.0
  %1171 = vmatpush1.msra.mxu0 0.0
  %1172 = vmatprep.subr.mxu0 0.0
  %1173 = vmatpush1.msra.mxu0 0.0
  %1174 = vmatprep.subr.mxu0 0.0
  %1175 = vmatpush1.msra.mxu0 0.0
  %1176 = vmatprep.subr.mxu0 0.0
  %1177 = vmatpush1.msra.mxu0 0.0
  %1178 = vmatprep.subr.mxu0 0.0
  %1179 = vmatpush1.msra.mxu0 0.0
  %1180 = vmatprep.subr.mxu0 0.0
  %1181 = vmatpush1.msra.mxu0 0.0
  %1182 = vmatprep.subr.mxu0 0.0
  %1183 = vmatpush1.msra.mxu0 0.0
  %1184 = vmatprep.subr.mxu0 0.0
  %1185 = vmatpush1.msra.mxu0 0.0
  %1186 = vmatprep.subr.mxu0 0.0
  %1187 = vmatpush1.msra.mxu0 0.0
  %1188 = vmatprep.subr.mxu0 0.0
  %1189 = vmatpush1.msra.mxu0 0.0
  %1190 = vmatprep.subr.mxu0 0.0
  %1191 = vmatpush1.msra.mxu0 0.0
  %1192 = vmatprep.subr.mxu0 0.0
  %1193 = vmatpush1.msra.mxu0 0.0
  %1194 = vmatprep.subr.mxu0 0.0
  %1195 = vmatpush1.msra.mxu0 0.0
  %1196 = vmatprep.subr.mxu0 0.0
  %1197 = vmatpush1.msra.mxu0 0.0
  %1198 = vmatprep.subr.mxu0 0.0
  %1199 = vmatpush1.msra.mxu0 0.0
  %1200 = vmatprep.subr.mxu0 0.0
  %1201 = vmatpush1.msra.mxu0 0.0
  %1202 = vmatprep.subr.mxu0 0.0
  %1203 = vmatpush1.msra.mxu0 0.0
  %1204 = vmatprep.subr.mxu0 0.0
  %1205 = vmatpush1.msra.mxu0 0.0
  %1206 = vmatprep.subr.mxu0 0.0
  %1207 = vmatpush1.msra.mxu0 0.0
  %1208 = vmatprep.mubr.f32.mxu0 0.0
  %1209 = vmatmul.mubr.f32.gmra.mrb[0].mxu0 %v1142
  %v1210 = vpop.f32.mrb[0].mxu0
  %v1211 = vadd.f32 0.0, %v1210
  %v1212 = vpop.f32.mrb[0].mxu0
  %1213 = vdwg.mxu0
  %v1214 = vadd.f32 %v1140, %v1211
  %v1215 = vxor.u32 %v1214, 2147483648
  %v1216 = vmul.f32 %v1215, 1.442695
  %v1217 = vpow.pop %v1216
  %v1218 = vadd.f32 %v1217, 1.0
  %v1219 = vrcp.pop %v1218
  %v1220 = vmul.f32 1.0, %v1219
  %v1221 = vtanh.pop %v1214
  %1223 = vrot.lane.b32.xlu0 %v1138, 32
  %v1224 = vpop.permute.xlu0 %1223
  %v1226 = vmul.f32 %v1220, %v1224
  %1228 = vrot.lane.b32.xlu0 %v1221, 64
  %v1229 = vpop.permute.xlu0 %1228
  %v1231 = vmul.f32 %v1220, %v1229
  %1233 = vrot.lane.b32.xlu0 %v1231, 32
  %v1234 = vpop.permute.xlu0 %1233
  %v1236 = vadd.f32 %v1226, %v1234
  %v1237 = vtanh.pop %v1236
  %1239 = vrot.lane.b32.xlu0 %v1237, 64
  %v1240 = vpop.permute.xlu0 %1239
  %v1242 = vmul.f32 %v1220, %v1240
  %s1243 = scalar_lea.vmem %s1, 56
  %v1244 = vld [vmem:[%s1243] sm:$0xff]
  %vm1245 = vcmp.gt.f32.partialorder %v1244, 0.0
  %1247 = vrot.lane.b32.xlu0 %v1242, 32
  %v1248 = vpop.permute.xlu0 %1247
  %v1250 = vsel %vm1245, %v1248, %v1133
  %s1251 = scalar_lea.vmem [#allocation3], 56
  %v1252 = vld [vmem:[%s1251] sm:$0xff]
  %1253 = vmatprep.subr.mxu0 0.0
  %1254 = vmatpush1.msra.mxu0 %v321
  %1255 = vmatprep.subr.mxu0 0.0
  %1256 = vmatpush1.msra.mxu0 %v322
  %1257 = vmatprep.subr.mxu0 0.0
  %1258 = vmatpush1.msra.mxu0 %v323
  %1259 = vmatprep.subr.mxu0 0.0
  %1260 = vmatpush1.msra.mxu0 %v324
  %1261 = vmatprep.subr.mxu0 0.0
  %1262 = vmatpush1.msra.mxu0 0.0
  %1263 = vmatprep.subr.mxu0 0.0
  %1264 = vmatpush1.msra.mxu0 0.0
  %1265 = vmatprep.subr.mxu0 0.0
  %1266 = vmatpush1.msra.mxu0 0.0
  %1267 = vmatprep.subr.mxu0 0.0
  %1268 = vmatpush1.msra.mxu0 0.0
  %1269 = vmatprep.subr.mxu0 0.0
  %1270 = vmatpush1.msra.mxu0 0.0
  %1271 = vmatprep.subr.mxu0 0.0
  %1272 = vmatpush1.msra.mxu0 0.0
  %1273 = vmatprep.subr.mxu0 0.0
  %1274 = vmatpush1.msra.mxu0 0.0
  %1275 = vmatprep.subr.mxu0 0.0
  %1276 = vmatpush1.msra.mxu0 0.0
  %1277 = vmatprep.subr.mxu0 0.0
  %1278 = vmatpush1.msra.mxu0 0.0
  %1279 = vmatprep.subr.mxu0 0.0
  %1280 = vmatpush1.msra.mxu0 0.0
  %1281 = vmatprep.subr.mxu0 0.0
  %1282 = vmatpush1.msra.mxu0 0.0
  %1283 = vmatprep.subr.mxu0 0.0
  %1284 = vmatpush1.msra.mxu0 0.0
  %1285 = vmatprep.subr.mxu0 0.0
  %1286 = vmatpush1.msra.mxu0 0.0
  %1287 = vmatprep.subr.mxu0 0.0
  %1288 = vmatpush1.msra.mxu0 0.0
  %1289 = vmatprep.subr.mxu0 0.0
  %1290 = vmatpush1.msra.mxu0 0.0
  %1291 = vmatprep.subr.mxu0 0.0
  %1292 = vmatpush1.msra.mxu0 0.0
  %1293 = vmatprep.subr.mxu0 0.0
  %1294 = vmatpush1.msra.mxu0 0.0
  %1295 = vmatprep.subr.mxu0 0.0
  %1296 = vmatpush1.msra.mxu0 0.0
  %1297 = vmatprep.subr.mxu0 0.0
  %1298 = vmatpush1.msra.mxu0 0.0
  %1299 = vmatprep.subr.mxu0 0.0
  %1300 = vmatpush1.msra.mxu0 0.0
  %1301 = vmatprep.subr.mxu0 0.0
  %1302 = vmatpush1.msra.mxu0 0.0
  %1303 = vmatprep.subr.mxu0 0.0
  %1304 = vmatpush1.msra.mxu0 0.0
  %1305 = vmatprep.subr.mxu0 0.0
  %1306 = vmatpush1.msra.mxu0 0.0
  %1307 = vmatprep.subr.mxu0 0.0
  %1308 = vmatpush1.msra.mxu0 0.0
  %1309 = vmatprep.subr.mxu0 0.0
  %1310 = vmatpush1.msra.mxu0 0.0
  %1311 = vmatprep.subr.mxu0 0.0
  %1312 = vmatpush1.msra.mxu0 0.0
  %1313 = vmatprep.subr.mxu0 0.0
  %1314 = vmatpush1.msra.mxu0 0.0
  %1315 = vmatprep.subr.mxu0 0.0
  %1316 = vmatpush1.msra.mxu0 0.0
  %1317 = vmatprep.mubr.f32.mxu0 0.0
  %1318 = vmatmul.mubr.f32.gmra.mrb[0].mxu0 %v328
  %v1319 = vpop.f32.mrb[0].mxu0
  %v1320 = vadd.f32 0.0, %v1319
  %v1321 = vpop.f32.mrb[0].mxu0
  %1322 = vdwg.mxu0
  %v1323 = vadd.f32 %v1252, %v1320
  %v1324 = vxor.u32 %v1323, 2147483648
  %v1325 = vmul.f32 %v1324, 1.442695
  %v1326 = vpow.pop %v1325
  %v1327 = vadd.f32 %v1326, 1.0
  %v1328 = vrcp.pop %v1327
  %v1329 = vmul.f32 1.0, %v1328
  %v1330 = vtanh.pop %v1323
  %v1331 = vmul.f32 %v1329, 0.0
  %1333 = vrot.lane.b32.xlu0 %v1330, 64
  %v1334 = vpop.permute.xlu0 %1333
  %v1336 = vmul.f32 %v1329, %v1334
  %1338 = vrot.lane.b32.xlu0 %v1336, 32
  %v1339 = vpop.permute.xlu0 %1338
  %v1341 = vadd.f32 %v1331, %v1339
  %v1342 = vtanh.pop %v1341
  %1344 = vrot.lane.b32.xlu0 %v1342, 64
  %v1345 = vpop.permute.xlu0 %1344
  %v1347 = vmul.f32 %v1329, %v1345
  %1349 = vrot.lane.b32.xlu0 %v1347, 32
  %v1350 = vpop.permute.xlu0 %1349
  %v1352 = vsel %vm1245, %v1350, 0.0
  %1354 = vrot.lane.b32.xlu0 %v1341, 96
  %v1355 = vpop.permute.xlu0 %1354
  %v1357 = vsel %vm1245, %v1355, 0.0
  %s1358 = scalar_lea.vmem [#allocation3], 48
  %v1359 = vld [vmem:[%s1358] sm:$0xff]
  %v1361 = vsel %vm326, %v1352, 0
  %1363 = vmatprep.subr.mxu0 0.0
  %1364 = vmatpush1.msra.mxu0 %v321
  %1365 = vmatprep.subr.mxu0 0.0
  %1366 = vmatpush1.msra.mxu0 %v322
  %1367 = vmatprep.subr.mxu0 0.0
  %1368 = vmatpush1.msra.mxu0 %v323
  %1369 = vmatprep.subr.mxu0 0.0
  %1370 = vmatpush1.msra.mxu0 %v324
  %1371 = vmatprep.subr.mxu0 0.0
  %1372 = vmatpush1.msra.mxu0 0.0
  %1373 = vmatprep.subr.mxu0 0.0
  %1374 = vmatpush1.msra.mxu0 0.0
  %1375 = vmatprep.subr.mxu0 0.0
  %1376 = vmatpush1.msra.mxu0 0.0
  %1377 = vmatprep.subr.mxu0 0.0
  %1378 = vmatpush1.msra.mxu0 0.0
  %1379 = vmatprep.subr.mxu0 0.0
  %1380 = vmatpush1.msra.mxu0 0.0
  %1381 = vmatprep.subr.mxu0 0.0
  %1382 = vmatpush1.msra.mxu0 0.0
  %1383 = vmatprep.subr.mxu0 0.0
  %1384 = vmatpush1.msra.mxu0 0.0
  %1385 = vmatprep.subr.mxu0 0.0
  %1386 = vmatpush1.msra.mxu0 0.0
  %1387 = vmatprep.subr.mxu0 0.0
  %1388 = vmatpush1.msra.mxu0 0.0
  %1389 = vmatprep.subr.mxu0 0.0
  %1390 = vmatpush1.msra.mxu0 0.0
  %1391 = vmatprep.subr.mxu0 0.0
  %1392 = vmatpush1.msra.mxu0 0.0
  %1393 = vmatprep.subr.mxu0 0.0
  %1394 = vmatpush1.msra.mxu0 0.0
  %1395 = vmatprep.subr.mxu0 0.0
  %1396 = vmatpush1.msra.mxu0 0.0
  %1397 = vmatprep.subr.mxu0 0.0
  %1398 = vmatpush1.msra.mxu0 0.0
  %1399 = vmatprep.subr.mxu0 0.0
  %1400 = vmatpush1.msra.mxu0 0.0
  %1401 = vmatprep.subr.mxu0 0.0
  %1402 = vmatpush1.msra.mxu0 0.0
  %1403 = vmatprep.subr.mxu0 0.0
  %1404 = vmatpush1.msra.mxu0 0.0
  %1405 = vmatprep.subr.mxu0 0.0
  %1406 = vmatpush1.msra.mxu0 0.0
  %1407 = vmatprep.subr.mxu0 0.0
  %1408 = vmatpush1.msra.mxu0 0.0
  %1409 = vmatprep.subr.mxu0 0.0
  %1410 = vmatpush1.msra.mxu0 0.0
  %1411 = vmatprep.subr.mxu0 0.0
  %1412 = vmatpush1.msra.mxu0 0.0
  %1413 = vmatprep.subr.mxu0 0.0
  %1414 = vmatpush1.msra.mxu0 0.0
  %1415 = vmatprep.subr.mxu0 0.0
  %1416 = vmatpush1.msra.mxu0 0.0
  %1417 = vmatprep.subr.mxu0 0.0
  %1418 = vmatpush1.msra.mxu0 0.0
  %1419 = vmatprep.subr.mxu0 0.0
  %1420 = vmatpush1.msra.mxu0 0.0
  %1421 = vmatprep.subr.mxu0 0.0
  %1422 = vmatpush1.msra.mxu0 0.0
  %1423 = vmatprep.subr.mxu0 0.0
  %1424 = vmatpush1.msra.mxu0 0.0
  %1425 = vmatprep.subr.mxu0 0.0
  %1426 = vmatpush1.msra.mxu0 0.0
  %1427 = vmatprep.mubr.f32.mxu0 0.0
  %1428 = vmatmul.mubr.f32.gmra.mrb[0].mxu0 %v1361
  %v1429 = vpop.f32.mrb[0].mxu0
  %v1430 = vadd.f32 0.0, %v1429
  %v1431 = vpop.f32.mrb[0].mxu0
  %1432 = vdwg.mxu0
  %v1433 = vadd.f32 %v1359, %v1430
  %v1434 = vxor.u32 %v1433, 2147483648
  %v1435 = vmul.f32 %v1434, 1.442695
  %v1436 = vpow.pop %v1435
  %v1437 = vadd.f32 %v1436, 1.0
  %v1438 = vrcp.pop %v1437
  %v1439 = vmul.f32 1.0, %v1438
  %v1440 = vtanh.pop %v1433
  %1442 = vrot.lane.b32.xlu0 %v1357, 32
  %v1443 = vpop.permute.xlu0 %1442
  %v1445 = vmul.f32 %v1439, %v1443
  %1447 = vrot.lane.b32.xlu0 %v1440, 64
  %v1448 = vpop.permute.xlu0 %1447
  %v1450 = vmul.f32 %v1439, %v1448
  %1452 = vrot.lane.b32.xlu0 %v1450, 32
  %v1453 = vpop.permute.xlu0 %1452
  %v1455 = vadd.f32 %v1445, %v1453
  %v1456 = vtanh.pop %v1455
  %1458 = vrot.lane.b32.xlu0 %v1456, 64
  %v1459 = vpop.permute.xlu0 %1458
  %v1461 = vmul.f32 %v1439, %v1459
  %1463 = vrot.lane.b32.xlu0 %v1461, 32
  %v1464 = vpop.permute.xlu0 %1463
  %v1466 = vsel %vm1128, %v1464, %v1352
  %1468 = vrot.lane.b32.xlu0 %v1455, 96
  %v1469 = vpop.permute.xlu0 %1468
  %v1471 = vsel %vm1128, %v1469, %v1357
  %s1472 = scalar_lea.vmem [#allocation3], 40
  %v1473 = vld [vmem:[%s1472] sm:$0xff]
  %v1475 = vsel %vm326, %v1466, 0
  %1477 = vmatprep.subr.mxu0 0.0
  %1478 = vmatpush1.msra.mxu0 %v321
  %1479 = vmatprep.subr.mxu0 0.0
  %1480 = vmatpush1.msra.mxu0 %v322
  %1481 = vmatprep.subr.mxu0 0.0
  %1482 = vmatpush1.msra.mxu0 %v323
  %1483 = vmatprep.subr.mxu0 0.0
  %1484 = vmatpush1.msra.mxu0 %v324
  %1485 = vmatprep.subr.mxu0 0.0
  %1486 = vmatpush1.msra.mxu0 0.0
  %1487 = vmatprep.subr.mxu0 0.0
  %1488 = vmatpush1.msra.mxu0 0.0
  %1489 = vmatprep.subr.mxu0 0.0
  %1490 = vmatpush1.msra.mxu0 0.0
  %1491 = vmatprep.subr.mxu0 0.0
  %1492 = vmatpush1.msra.mxu0 0.0
  %1493 = vmatprep.subr.mxu0 0.0
  %1494 = vmatpush1.msra.mxu0 0.0
  %1495 = vmatprep.subr.mxu0 0.0
  %1496 = vmatpush1.msra.mxu0 0.0
  %1497 = vmatprep.subr.mxu0 0.0
  %1498 = vmatpush1.msra.mxu0 0.0
  %1499 = vmatprep.subr.mxu0 0.0
  %1500 = vmatpush1.msra.mxu0 0.0
  %1501 = vmatprep.subr.mxu0 0.0
  %1502 = vmatpush1.msra.mxu0 0.0
  %1503 = vmatprep.subr.mxu0 0.0
  %1504 = vmatpush1.msra.mxu0 0.0
  %1505 = vmatprep.subr.mxu0 0.0
  %1506 = vmatpush1.msra.mxu0 0.0
  %1507 = vmatprep.subr.mxu0 0.0
  %1508 = vmatpush1.msra.mxu0 0.0
  %1509 = vmatprep.subr.mxu0 0.0
  %1510 = vmatpush1.msra.mxu0 0.0
  %1511 = vmatprep.subr.mxu0 0.0
  %1512 = vmatpush1.msra.mxu0 0.0
  %1513 = vmatprep.subr.mxu0 0.0
  %1514 = vmatpush1.msra.mxu0 0.0
  %1515 = vmatprep.subr.mxu0 0.0
  %1516 = vmatpush1.msra.mxu0 0.0
  %1517 = vmatprep.subr.mxu0 0.0
  %1518 = vmatpush1.msra.mxu0 0.0
  %1519 = vmatprep.subr.mxu0 0.0
  %1520 = vmatpush1.msra.mxu0 0.0
  %1521 = vmatprep.subr.mxu0 0.0
  %1522 = vmatpush1.msra.mxu0 0.0
  %1523 = vmatprep.subr.mxu0 0.0
  %1524 = vmatpush1.msra.mxu0 0.0
  %1525 = vmatprep.subr.mxu0 0.0
  %1526 = vmatpush1.msra.mxu0 0.0
  %1527 = vmatprep.subr.mxu0 0.0
  %1528 = vmatpush1.msra.mxu0 0.0
  %1529 = vmatprep.subr.mxu0 0.0
  %1530 = vmatpush1.msra.mxu0 0.0
  %1531 = vmatprep.subr.mxu0 0.0
  %1532 = vmatpush1.msra.mxu0 0.0
  %1533 = vmatprep.subr.mxu0 0.0
  %1534 = vmatpush1.msra.mxu0 0.0
  %1535 = vmatprep.subr.mxu0 0.0
  %1536 = vmatpush1.msra.mxu0 0.0
  %1537 = vmatprep.subr.mxu0 0.0
  %1538 = vmatpush1.msra.mxu0 0.0
  %1539 = vmatprep.subr.mxu0 0.0
  %1540 = vmatpush1.msra.mxu0 0.0
  %1541 = vmatprep.mubr.f32.mxu0 0.0
  %1542 = vmatmul.mubr.f32.gmra.mrb[0].mxu0 %v1475
  %v1543 = vpop.f32.mrb[0].mxu0
  %v1544 = vadd.f32 0.0, %v1543
  %v1545 = vpop.f32.mrb[0].mxu0
  %1546 = vdwg.mxu0
  %v1547 = vadd.f32 %v1473, %v1544
  %v1548 = vxor.u32 %v1547, 2147483648
  %v1549 = vmul.f32 %v1548, 1.442695
  %v1550 = vpow.pop %v1549
  %v1551 = vadd.f32 %v1550, 1.0
  %v1552 = vrcp.pop %v1551
  %v1553 = vmul.f32 1.0, %v1552
  %v1554 = vtanh.pop %v1547
  %1556 = vrot.lane.b32.xlu0 %v1471, 32
  %v1557 = vpop.permute.xlu0 %1556
  %v1559 = vmul.f32 %v1553, %v1557
  %1561 = vrot.lane.b32.xlu0 %v1554, 64
  %v1562 = vpop.permute.xlu0 %1561
  %v1564 = vmul.f32 %v1553, %v1562
  %1566 = vrot.lane.b32.xlu0 %v1564, 32
  %v1567 = vpop.permute.xlu0 %1566
  %v1569 = vadd.f32 %v1559, %v1567
  %v1570 = vtanh.pop %v1569
  %1572 = vrot.lane.b32.xlu0 %v1570, 64
  %v1573 = vpop.permute.xlu0 %1572
  %v1575 = vmul.f32 %v1553, %v1573
  %1577 = vrot.lane.b32.xlu0 %v1575, 32
  %v1578 = vpop.permute.xlu0 %1577
  %v1580 = vsel %vm1011, %v1578, %v1466
  %1582 = vrot.lane.b32.xlu0 %v1569, 96
  %v1583 = vpop.permute.xlu0 %1582
  %v1585 = vsel %vm1011, %v1583, %v1471
  %s1586 = scalar_lea.vmem [#allocation3], 32
  %v1587 = vld [vmem:[%s1586] sm:$0xff]
  %v1589 = vsel %vm326, %v1580, 0
  %1591 = vmatprep.subr.mxu0 0.0
  %1592 = vmatpush1.msra.mxu0 %v321
  %1593 = vmatprep.subr.mxu0 0.0
  %1594 = vmatpush1.msra.mxu0 %v322
  %1595 = vmatprep.subr.mxu0 0.0
  %1596 = vmatpush1.msra.mxu0 %v323
  %1597 = vmatprep.subr.mxu0 0.0
  %1598 = vmatpush1.msra.mxu0 %v324
  %1599 = vmatprep.subr.mxu0 0.0
  %1600 = vmatpush1.msra.mxu0 0.0
  %1601 = vmatprep.subr.mxu0 0.0
  %1602 = vmatpush1.msra.mxu0 0.0
  %1603 = vmatprep.subr.mxu0 0.0
  %1604 = vmatpush1.msra.mxu0 0.0
  %1605 = vmatprep.subr.mxu0 0.0
  %1606 = vmatpush1.msra.mxu0 0.0
  %1607 = vmatprep.subr.mxu0 0.0
  %1608 = vmatpush1.msra.mxu0 0.0
  %1609 = vmatprep.subr.mxu0 0.0
  %1610 = vmatpush1.msra.mxu0 0.0
  %1611 = vmatprep.subr.mxu0 0.0
  %1612 = vmatpush1.msra.mxu0 0.0
  %1613 = vmatprep.subr.mxu0 0.0
  %1614 = vmatpush1.msra.mxu0 0.0
  %1615 = vmatprep.subr.mxu0 0.0
  %1616 = vmatpush1.msra.mxu0 0.0
  %1617 = vmatprep.subr.mxu0 0.0
  %1618 = vmatpush1.msra.mxu0 0.0
  %1619 = vmatprep.subr.mxu0 0.0
  %1620 = vmatpush1.msra.mxu0 0.0
  %1621 = vmatprep.subr.mxu0 0.0
  %1622 = vmatpush1.msra.mxu0 0.0
  %1623 = vmatprep.subr.mxu0 0.0
  %1624 = vmatpush1.msra.mxu0 0.0
  %1625 = vmatprep.subr.mxu0 0.0
  %1626 = vmatpush1.msra.mxu0 0.0
  %1627 = vmatprep.subr.mxu0 0.0
  %1628 = vmatpush1.msra.mxu0 0.0
  %1629 = vmatprep.subr.mxu0 0.0
  %1630 = vmatpush1.msra.mxu0 0.0
  %1631 = vmatprep.subr.mxu0 0.0
  %1632 = vmatpush1.msra.mxu0 0.0
  %1633 = vmatprep.subr.mxu0 0.0
  %1634 = vmatpush1.msra.mxu0 0.0
  %1635 = vmatprep.subr.mxu0 0.0
  %1636 = vmatpush1.msra.mxu0 0.0
  %1637 = vmatprep.subr.mxu0 0.0
  %1638 = vmatpush1.msra.mxu0 0.0
  %1639 = vmatprep.subr.mxu0 0.0
  %1640 = vmatpush1.msra.mxu0 0.0
  %1641 = vmatprep.subr.mxu0 0.0
  %1642 = vmatpush1.msra.mxu0 0.0
  %1643 = vmatprep.subr.mxu0 0.0
  %1644 = vmatpush1.msra.mxu0 0.0
  %1645 = vmatprep.subr.mxu0 0.0
  %1646 = vmatpush1.msra.mxu0 0.0
  %1647 = vmatprep.subr.mxu0 0.0
  %1648 = vmatpush1.msra.mxu0 0.0
  %1649 = vmatprep.subr.mxu0 0.0
  %1650 = vmatpush1.msra.mxu0 0.0
  %1651 = vmatprep.subr.mxu0 0.0
  %1652 = vmatpush1.msra.mxu0 0.0
  %1653 = vmatprep.subr.mxu0 0.0
  %1654 = vmatpush1.msra.mxu0 0.0
  %1655 = vmatprep.mubr.f32.mxu0 0.0
  %1656 = vmatmul.mubr.f32.gmra.mrb[0].mxu0 %v1589
  %v1657 = vpop.f32.mrb[0].mxu0
  %v1658 = vadd.f32 0.0, %v1657
  %v1659 = vpop.f32.mrb[0].mxu0
  %1660 = vdwg.mxu0
  %v1661 = vadd.f32 %v1587, %v1658
  %v1662 = vxor.u32 %v1661, 2147483648
  %v1663 = vmul.f32 %v1662, 1.442695
  %v1664 = vpow.pop %v1663
  %v1665 = vadd.f32 %v1664, 1.0
  %v1666 = vrcp.pop %v1665
  %v1667 = vmul.f32 1.0, %v1666
  %v1668 = vtanh.pop %v1661
  %1670 = vrot.lane.b32.xlu0 %v1585, 32
  %v1671 = vpop.permute.xlu0 %1670
  %v1673 = vmul.f32 %v1667, %v1671
  %1675 = vrot.lane.b32.xlu0 %v1668, 64
  %v1676 = vpop.permute.xlu0 %1675
  %v1678 = vmul.f32 %v1667, %v1676
  %1680 = vrot.lane.b32.xlu0 %v1678, 32
  %v1681 = vpop.permute.xlu0 %1680
  %v1683 = vadd.f32 %v1673, %v1681
  %v1684 = vtanh.pop %v1683
  %1686 = vrot.lane.b32.xlu0 %v1684, 64
  %v1687 = vpop.permute.xlu0 %1686
  %v1689 = vmul.f32 %v1667, %v1687
  %1691 = vrot.lane.b32.xlu0 %v1689, 32
  %v1692 = vpop.permute.xlu0 %1691
  %v1694 = vsel %vm894, %v1692, %v1580
  %1696 = vrot.lane.b32.xlu0 %v1683, 96
  %v1697 = vpop.permute.xlu0 %1696
  %v1699 = vsel %vm894, %v1697, %v1585
  %s1700 = scalar_lea.vmem [#allocation3], 24
  %v1701 = vld [vmem:[%s1700] sm:$0xff]
  %v1703 = vsel %vm326, %v1694, 0
  %1705 = vmatprep.subr.mxu0 0.0
  %1706 = vmatpush1.msra.mxu0 %v321
  %1707 = vmatprep.subr.mxu0 0.0
  %1708 = vmatpush1.msra.mxu0 %v322
  %1709 = vmatprep.subr.mxu0 0.0
  %1710 = vmatpush1.msra.mxu0 %v323
  %1711 = vmatprep.subr.mxu0 0.0
  %1712 = vmatpush1.msra.mxu0 %v324
  %1713 = vmatprep.subr.mxu0 0.0
  %1714 = vmatpush1.msra.mxu0 0.0
  %1715 = vmatprep.subr.mxu0 0.0
  %1716 = vmatpush1.msra.mxu0 0.0
  %1717 = vmatprep.subr.mxu0 0.0
  %1718 = vmatpush1.msra.mxu0 0.0
  %1719 = vmatprep.subr.mxu0 0.0
  %1720 = vmatpush1.msra.mxu0 0.0
  %1721 = vmatprep.subr.mxu0 0.0
  %1722 = vmatpush1.msra.mxu0 0.0
  %1723 = vmatprep.subr.mxu0 0.0
  %1724 = vmatpush1.msra.mxu0 0.0
  %1725 = vmatprep.subr.mxu0 0.0
  %1726 = vmatpush1.msra.mxu0 0.0
  %1727 = vmatprep.subr.mxu0 0.0
  %1728 = vmatpush1.msra.mxu0 0.0
  %1729 = vmatprep.subr.mxu0 0.0
  %1730 = vmatpush1.msra.mxu0 0.0
  %1731 = vmatprep.subr.mxu0 0.0
  %1732 = vmatpush1.msra.mxu0 0.0
  %1733 = vmatprep.subr.mxu0 0.0
  %1734 = vmatpush1.msra.mxu0 0.0
  %1735 = vmatprep.subr.mxu0 0.0
  %1736 = vmatpush1.msra.mxu0 0.0
  %1737 = vmatprep.subr.mxu0 0.0
  %1738 = vmatpush1.msra.mxu0 0.0
  %1739 = vmatprep.subr.mxu0 0.0
  %1740 = vmatpush1.msra.mxu0 0.0
  %1741 = vmatprep.subr.mxu0 0.0
  %1742 = vmatpush1.msra.mxu0 0.0
  %1743 = vmatprep.subr.mxu0 0.0
  %1744 = vmatpush1.msra.mxu0 0.0
  %1745 = vmatprep.subr.mxu0 0.0
  %1746 = vmatpush1.msra.mxu0 0.0
  %1747 = vmatprep.subr.mxu0 0.0
  %1748 = vmatpush1.msra.mxu0 0.0
  %1749 = vmatprep.subr.mxu0 0.0
  %1750 = vmatpush1.msra.mxu0 0.0
  %1751 = vmatprep.subr.mxu0 0.0
  %1752 = vmatpush1.msra.mxu0 0.0
  %1753 = vmatprep.subr.mxu0 0.0
  %1754 = vmatpush1.msra.mxu0 0.0
  %1755 = vmatprep.subr.mxu0 0.0
  %1756 = vmatpush1.msra.mxu0 0.0
  %1757 = vmatprep.subr.mxu0 0.0
  %1758 = vmatpush1.msra.mxu0 0.0
  %1759 = vmatprep.subr.mxu0 0.0
  %1760 = vmatpush1.msra.mxu0 0.0
  %1761 = vmatprep.subr.mxu0 0.0
  %1762 = vmatpush1.msra.mxu0 0.0
  %1763 = vmatprep.subr.mxu0 0.0
  %1764 = vmatpush1.msra.mxu0 0.0
  %1765 = vmatprep.subr.mxu0 0.0
  %1766 = vmatpush1.msra.mxu0 0.0
  %1767 = vmatprep.subr.mxu0 0.0
  %1768 = vmatpush1.msra.mxu0 0.0
  %1769 = vmatprep.mubr.f32.mxu0 0.0
  %1770 = vmatmul.mubr.f32.gmra.mrb[0].mxu0 %v1703
  %v1771 = vpop.f32.mrb[0].mxu0
  %v1772 = vadd.f32 0.0, %v1771
  %v1773 = vpop.f32.mrb[0].mxu0
  %1774 = vdwg.mxu0
  %v1775 = vadd.f32 %v1701, %v1772
  %v1776 = vxor.u32 %v1775, 2147483648
  %v1777 = vmul.f32 %v1776, 1.442695
  %v1778 = vpow.pop %v1777
  %v1779 = vadd.f32 %v1778, 1.0
  %v1780 = vrcp.pop %v1779
  %v1781 = vmul.f32 1.0, %v1780
  %v1782 = vtanh.pop %v1775
  %1784 = vrot.lane.b32.xlu0 %v1699, 32
  %v1785 = vpop.permute.xlu0 %1784
  %v1787 = vmul.f32 %v1781, %v1785
  %1789 = vrot.lane.b32.xlu0 %v1782, 64
  %v1790 = vpop.permute.xlu0 %1789
  %v1792 = vmul.f32 %v1781, %v1790
  %1794 = vrot.lane.b32.xlu0 %v1792, 32
  %v1795 = vpop.permute.xlu0 %1794
  %v1797 = vadd.f32 %v1787, %v1795
  %v1798 = vtanh.pop %v1797
  %1800 = vrot.lane.b32.xlu0 %v1798, 64
  %v1801 = vpop.permute.xlu0 %1800
  %v1803 = vmul.f32 %v1781, %v1801
  %1805 = vrot.lane.b32.xlu0 %v1803, 32
  %v1806 = vpop.permute.xlu0 %1805
  %v1808 = vsel %vm777, %v1806, %v1694
  %1810 = vrot.lane.b32.xlu0 %v1797, 96
  %v1811 = vpop.permute.xlu0 %1810
  %v1813 = vsel %vm777, %v1811, %v1699
  %s1814 = scalar_lea.vmem [#allocation3], 16
  %v1815 = vld [vmem:[%s1814] sm:$0xff]
  %v1817 = vsel %vm326, %v1808, 0
  %1819 = vmatprep.subr.mxu0 0.0
  %1820 = vmatpush1.msra.mxu0 %v321
  %1821 = vmatprep.subr.mxu0 0.0
  %1822 = vmatpush1.msra.mxu0 %v322
  %1823 = vmatprep.subr.mxu0 0.0
  %1824 = vmatpush1.msra.mxu0 %v323
  %1825 = vmatprep.subr.mxu0 0.0
  %1826 = vmatpush1.msra.mxu0 %v324
  %1827 = vmatprep.subr.mxu0 0.0
  %1828 = vmatpush1.msra.mxu0 0.0
  %1829 = vmatprep.subr.mxu0 0.0
  %1830 = vmatpush1.msra.mxu0 0.0
  %1831 = vmatprep.subr.mxu0 0.0
  %1832 = vmatpush1.msra.mxu0 0.0
  %1833 = vmatprep.subr.mxu0 0.0
  %1834 = vmatpush1.msra.mxu0 0.0
  %1835 = vmatprep.subr.mxu0 0.0
  %1836 = vmatpush1.msra.mxu0 0.0
  %1837 = vmatprep.subr.mxu0 0.0
  %1838 = vmatpush1.msra.mxu0 0.0
  %1839 = vmatprep.subr.mxu0 0.0
  %1840 = vmatpush1.msra.mxu0 0.0
  %1841 = vmatprep.subr.mxu0 0.0
  %1842 = vmatpush1.msra.mxu0 0.0
  %1843 = vmatprep.subr.mxu0 0.0
  %1844 = vmatpush1.msra.mxu0 0.0
  %1845 = vmatprep.subr.mxu0 0.0
  %1846 = vmatpush1.msra.mxu0 0.0
  %1847 = vmatprep.subr.mxu0 0.0
  %1848 = vmatpush1.msra.mxu0 0.0
  %1849 = vmatprep.subr.mxu0 0.0
  %1850 = vmatpush1.msra.mxu0 0.0
  %1851 = vmatprep.subr.mxu0 0.0
  %1852 = vmatpush1.msra.mxu0 0.0
  %1853 = vmatprep.subr.mxu0 0.0
  %1854 = vmatpush1.msra.mxu0 0.0
  %1855 = vmatprep.subr.mxu0 0.0
  %1856 = vmatpush1.msra.mxu0 0.0
  %1857 = vmatprep.subr.mxu0 0.0
  %1858 = vmatpush1.msra.mxu0 0.0
  %1859 = vmatprep.subr.mxu0 0.0
  %1860 = vmatpush1.msra.mxu0 0.0
  %1861 = vmatprep.subr.mxu0 0.0
  %1862 = vmatpush1.msra.mxu0 0.0
  %1863 = vmatprep.subr.mxu0 0.0
  %1864 = vmatpush1.msra.mxu0 0.0
  %1865 = vmatprep.subr.mxu0 0.0
  %1866 = vmatpush1.msra.mxu0 0.0
  %1867 = vmatprep.subr.mxu0 0.0
  %1868 = vmatpush1.msra.mxu0 0.0
  %1869 = vmatprep.subr.mxu0 0.0
  %1870 = vmatpush1.msra.mxu0 0.0
  %1871 = vmatprep.subr.mxu0 0.0
  %1872 = vmatpush1.msra.mxu0 0.0
  %1873 = vmatprep.subr.mxu0 0.0
  %1874 = vmatpush1.msra.mxu0 0.0
  %1875 = vmatprep.subr.mxu0 0.0
  %1876 = vmatpush1.msra.mxu0 0.0
  %1877 = vmatprep.subr.mxu0 0.0
  %1878 = vmatpush1.msra.mxu0 0.0
  %1879 = vmatprep.subr.mxu0 0.0
  %1880 = vmatpush1.msra.mxu0 0.0
  %1881 = vmatprep.subr.mxu0 0.0
  %1882 = vmatpush1.msra.mxu0 0.0
  %1883 = vmatprep.mubr.f32.mxu0 0.0
  %1884 = vmatmul.mubr.f32.gmra.mrb[0].mxu0 %v1817
  %v1885 = vpop.f32.mrb[0].mxu0
  %v1886 = vadd.f32 0.0, %v1885
  %v1887 = vpop.f32.mrb[0].mxu0
  %1888 = vdwg.mxu0
  %v1889 = vadd.f32 %v1815, %v1886
  %v1890 = vxor.u32 %v1889, 2147483648
  %v1891 = vmul.f32 %v1890, 1.442695
  %v1892 = vpow.pop %v1891
  %v1893 = vadd.f32 %v1892, 1.0
  %v1894 = vrcp.pop %v1893
  %v1895 = vmul.f32 1.0, %v1894
  %v1896 = vtanh.pop %v1889
  %1898 = vrot.lane.b32.xlu0 %v1813, 32
  %v1899 = vpop.permute.xlu0 %1898
  %v1901 = vmul.f32 %v1895, %v1899
  %1903 = vrot.lane.b32.xlu0 %v1896, 64
  %v1904 = vpop.permute.xlu0 %1903
  %v1906 = vmul.f32 %v1895, %v1904
  %1908 = vrot.lane.b32.xlu0 %v1906, 32
  %v1909 = vpop.permute.xlu0 %1908
  %v1911 = vadd.f32 %v1901, %v1909
  %v1912 = vtanh.pop %v1911
  %1914 = vrot.lane.b32.xlu0 %v1912, 64
  %v1915 = vpop.permute.xlu0 %1914
  %v1917 = vmul.f32 %v1895, %v1915
  %1919 = vrot.lane.b32.xlu0 %v1917, 32
  %v1920 = vpop.permute.xlu0 %1919
  %v1922 = vsel %vm660, %v1920, %v1808
  %1924 = vrot.lane.b32.xlu0 %v1911, 96
  %v1925 = vpop.permute.xlu0 %1924
  %v1927 = vsel %vm660, %v1925, %v1813
  %s1928 = scalar_lea.vmem [#allocation3], 8
  %v1929 = vld [vmem:[%s1928] sm:$0xff]
  %v1931 = vsel %vm326, %v1922, 0
  %1933 = vmatprep.subr.mxu0 0.0
  %1934 = vmatpush1.msra.mxu0 %v321
  %1935 = vmatprep.subr.mxu0 0.0
  %1936 = vmatpush1.msra.mxu0 %v322
  %1937 = vmatprep.subr.mxu0 0.0
  %1938 = vmatpush1.msra.mxu0 %v323
  %1939 = vmatprep.subr.mxu0 0.0
  %1940 = vmatpush1.msra.mxu0 %v324
  %1941 = vmatprep.subr.mxu0 0.0
  %1942 = vmatpush1.msra.mxu0 0.0
  %1943 = vmatprep.subr.mxu0 0.0
  %1944 = vmatpush1.msra.mxu0 0.0
  %1945 = vmatprep.subr.mxu0 0.0
  %1946 = vmatpush1.msra.mxu0 0.0
  %1947 = vmatprep.subr.mxu0 0.0
  %1948 = vmatpush1.msra.mxu0 0.0
  %1949 = vmatprep.subr.mxu0 0.0
  %1950 = vmatpush1.msra.mxu0 0.0
  %1951 = vmatprep.subr.mxu0 0.0
  %1952 = vmatpush1.msra.mxu0 0.0
  %1953 = vmatprep.subr.mxu0 0.0
  %1954 = vmatpush1.msra.mxu0 0.0
  %1955 = vmatprep.subr.mxu0 0.0
  %1956 = vmatpush1.msra.mxu0 0.0
  %1957 = vmatprep.subr.mxu0 0.0
  %1958 = vmatpush1.msra.mxu0 0.0
  %1959 = vmatprep.subr.mxu0 0.0
  %1960 = vmatpush1.msra.mxu0 0.0
  %1961 = vmatprep.subr.mxu0 0.0
  %1962 = vmatpush1.msra.mxu0 0.0
  %1963 = vmatprep.subr.mxu0 0.0
  %1964 = vmatpush1.msra.mxu0 0.0
  %1965 = vmatprep.subr.mxu0 0.0
  %1966 = vmatpush1.msra.mxu0 0.0
  %1967 = vmatprep.subr.mxu0 0.0
  %1968 = vmatpush1.msra.mxu0 0.0
  %1969 = vmatprep.subr.mxu0 0.0
  %1970 = vmatpush1.msra.mxu0 0.0
  %1971 = vmatprep.subr.mxu0 0.0
  %1972 = vmatpush1.msra.mxu0 0.0
  %1973 = vmatprep.subr.mxu0 0.0
  %1974 = vmatpush1.msra.mxu0 0.0
  %1975 = vmatprep.subr.mxu0 0.0
  %1976 = vmatpush1.msra.mxu0 0.0
  %1977 = vmatprep.subr.mxu0 0.0
  %1978 = vmatpush1.msra.mxu0 0.0
  %1979 = vmatprep.subr.mxu0 0.0
  %1980 = vmatpush1.msra.mxu0 0.0
  %1981 = vmatprep.subr.mxu0 0.0
  %1982 = vmatpush1.msra.mxu0 0.0
  %1983 = vmatprep.subr.mxu0 0.0
  %1984 = vmatpush1.msra.mxu0 0.0
  %1985 = vmatprep.subr.mxu0 0.0
  %1986 = vmatpush1.msra.mxu0 0.0
  %1987 = vmatprep.subr.mxu0 0.0
  %1988 = vmatpush1.msra.mxu0 0.0
  %1989 = vmatprep.subr.mxu0 0.0
  %1990 = vmatpush1.msra.mxu0 0.0
  %1991 = vmatprep.subr.mxu0 0.0
  %1992 = vmatpush1.msra.mxu0 0.0
  %1993 = vmatprep.subr.mxu0 0.0
  %1994 = vmatpush1.msra.mxu0 0.0
  %1995 = vmatprep.subr.mxu0 0.0
  %1996 = vmatpush1.msra.mxu0 0.0
  %1997 = vmatprep.mubr.f32.mxu0 0.0
  %1998 = vmatmul.mubr.f32.gmra.mrb[0].mxu0 %v1931
  %v1999 = vpop.f32.mrb[0].mxu0
  %v2000 = vadd.f32 0.0, %v1999
  %v2001 = vpop.f32.mrb[0].mxu0
  %2002 = vdwg.mxu0
  %v2003 = vadd.f32 %v1929, %v2000
  %v2004 = vxor.u32 %v2003, 2147483648
  %v2005 = vmul.f32 %v2004, 1.442695
  %v2006 = vpow.pop %v2005
  %v2007 = vadd.f32 %v2006, 1.0
  %v2008 = vrcp.pop %v2007
  %v2009 = vmul.f32 1.0, %v2008
  %v2010 = vtanh.pop %v2003
  %2012 = vrot.lane.b32.xlu0 %v1927, 32
  %v2013 = vpop.permute.xlu0 %2012
  %v2015 = vmul.f32 %v2009, %v2013
  %2017 = vrot.lane.b32.xlu0 %v2010, 64
  %v2018 = vpop.permute.xlu0 %2017
  %v2020 = vmul.f32 %v2009, %v2018
  %2022 = vrot.lane.b32.xlu0 %v2020, 32
  %v2023 = vpop.permute.xlu0 %2022
  %v2025 = vadd.f32 %v2015, %v2023
  %v2026 = vtanh.pop %v2025
  %2028 = vrot.lane.b32.xlu0 %v2026, 64
  %v2029 = vpop.permute.xlu0 %2028
  %v2031 = vmul.f32 %v2009, %v2029
  %2033 = vrot.lane.b32.xlu0 %v2031, 32
  %v2034 = vpop.permute.xlu0 %2033
  %v2036 = vsel %vm543, %v2034, %v1922
  %2038 = vrot.lane.b32.xlu0 %v2025, 96
  %v2039 = vpop.permute.xlu0 %2038
  %v2041 = vsel %vm543, %v2039, %v1927
  %v2042 = vld [vmem:[#allocation3] sm:$0xff]
  %v2044 = vsel %vm326, %v2036, 0
  %2046 = vmatprep.subr.mxu0 0.0
  %2047 = vmatpush1.msra.mxu0 %v321
  %2048 = vmatprep.subr.mxu0 0.0
  %2049 = vmatpush1.msra.mxu0 %v322
  %2050 = vmatprep.subr.mxu0 0.0
  %2051 = vmatpush1.msra.mxu0 %v323
  %2052 = vmatprep.subr.mxu0 0.0
  %2053 = vmatpush1.msra.mxu0 %v324
  %2054 = vmatprep.subr.mxu0 0.0
  %2055 = vmatpush1.msra.mxu0 0.0
  %2056 = vmatprep.subr.mxu0 0.0
  %2057 = vmatpush1.msra.mxu0 0.0
  %2058 = vmatprep.subr.mxu0 0.0
  %2059 = vmatpush1.msra.mxu0 0.0
  %2060 = vmatprep.subr.mxu0 0.0
  %2061 = vmatpush1.msra.mxu0 0.0
  %2062 = vmatprep.subr.mxu0 0.0
  %2063 = vmatpush1.msra.mxu0 0.0
  %2064 = vmatprep.subr.mxu0 0.0
  %2065 = vmatpush1.msra.mxu0 0.0
  %2066 = vmatprep.subr.mxu0 0.0
  %2067 = vmatpush1.msra.mxu0 0.0
  %2068 = vmatprep.subr.mxu0 0.0
  %2069 = vmatpush1.msra.mxu0 0.0
  %2070 = vmatprep.subr.mxu0 0.0
  %2071 = vmatpush1.msra.mxu0 0.0
  %2072 = vmatprep.subr.mxu0 0.0
  %2073 = vmatpush1.msra.mxu0 0.0
  %2074 = vmatprep.subr.mxu0 0.0
  %2075 = vmatpush1.msra.mxu0 0.0
  %2076 = vmatprep.subr.mxu0 0.0
  %2077 = vmatpush1.msra.mxu0 0.0
  %2078 = vmatprep.subr.mxu0 0.0
  %2079 = vmatpush1.msra.mxu0 0.0
  %2080 = vmatprep.subr.mxu0 0.0
  %2081 = vmatpush1.msra.mxu0 0.0
  %2082 = vmatprep.subr.mxu0 0.0
  %2083 = vmatpush1.msra.mxu0 0.0
  %2084 = vmatprep.subr.mxu0 0.0
  %2085 = vmatpush1.msra.mxu0 0.0
  %2086 = vmatprep.subr.mxu0 0.0
  %2087 = vmatpush1.msra.mxu0 0.0
  %2088 = vmatprep.subr.mxu0 0.0
  %2089 = vmatpush1.msra.mxu0 0.0
  %2090 = vmatprep.subr.mxu0 0.0
  %2091 = vmatpush1.msra.mxu0 0.0
  %2092 = vmatprep.subr.mxu0 0.0
  %2093 = vmatpush1.msra.mxu0 0.0
  %2094 = vmatprep.subr.mxu0 0.0
  %2095 = vmatpush1.msra.mxu0 0.0
  %2096 = vmatprep.subr.mxu0 0.0
  %2097 = vmatpush1.msra.mxu0 0.0
  %2098 = vmatprep.subr.mxu0 0.0
  %2099 = vmatpush1.msra.mxu0 0.0
  %2100 = vmatprep.subr.mxu0 0.0
  %2101 = vmatpush1.msra.mxu0 0.0
  %2102 = vmatprep.subr.mxu0 0.0
  %2103 = vmatpush1.msra.mxu0 0.0
  %2104 = vmatprep.subr.mxu0 0.0
  %2105 = vmatpush1.msra.mxu0 0.0
  %2106 = vmatprep.subr.mxu0 0.0
  %2107 = vmatpush1.msra.mxu0 0.0
  %2108 = vmatprep.subr.mxu0 0.0
  %2109 = vmatpush1.msra.mxu0 0.0
  %2110 = vmatprep.mubr.f32.mxu0 0.0
  %2111 = vmatmul.mubr.f32.gmra.mrb[0].mxu0 %v2044
  %v2112 = vpop.f32.mrb[0].mxu0
  %v2113 = vadd.f32 0.0, %v2112
  %v2114 = vpop.f32.mrb[0].mxu0
  %2115 = vdwg.mxu0
  %v2116 = vadd.f32 %v2042, %v2113
  %v2117 = vxor.u32 %v2116, 2147483648
  %v2118 = vmul.f32 %v2117, 1.442695
  %v2119 = vpow.pop %v2118
  %v2120 = vadd.f32 %v2119, 1.0
  %v2121 = vrcp.pop %v2120
  %v2122 = vmul.f32 1.0, %v2121
  %v2123 = vtanh.pop %v2116
  %2125 = vrot.lane.b32.xlu0 %v2041, 32
  %v2126 = vpop.permute.xlu0 %2125
  %v2128 = vmul.f32 %v2122, %v2126
  %2130 = vrot.lane.b32.xlu0 %v2123, 64
  %v2131 = vpop.permute.xlu0 %2130
  %v2133 = vmul.f32 %v2122, %v2131
  %2135 = vrot.lane.b32.xlu0 %v2133, 32
  %v2136 = vpop.permute.xlu0 %2135
  %v2138 = vadd.f32 %v2128, %v2136
  %v2139 = vtanh.pop %v2138
  %2141 = vrot.lane.b32.xlu0 %v2139, 64
  %v2142 = vpop.permute.xlu0 %2141
  %v2144 = vmul.f32 %v2122, %v2142
  %2146 = vrot.lane.b32.xlu0 %v2144, 32
  %v2147 = vpop.permute.xlu0 %2146
  %v2149 = vsel %vm426, %v2147, %v2036
  %v2150 = vld [vmem:[%s8] sm:$0xff]
  %v2151 = vld [vmem:[%s8 + $0x8] sm:$0xff]
  %v2152 = vld [vmem:[%s8 + $0x10] sm:$0xff]
  %v2153 = vld [vmem:[%s8 + $0x18] sm:$0xff]
  %v2154 = vld [vmem:[%s8 + $0x20] sm:$0xff]
  %v2155 = vld [vmem:[%s8 + $0x28] sm:$0xff]
  %v2156 = vld [vmem:[%s8 + $0x30] sm:$0xff]
  %v2157 = vld [vmem:[%s8 + $0x38] sm:$0xff]
  %v2159 = vsel %vm326, %v2149, 0
  %2161 = vmatprep.subr.mxu0 0.0
  %2162 = vmatpush1.msra.mxu0 %v2154
  %2163 = vmatprep.subr.mxu0 0.0
  %2164 = vmatpush1.msra.mxu0 %v2155
  %2165 = vmatprep.subr.mxu0 0.0
  %2166 = vmatpush1.msra.mxu0 %v2156
  %2167 = vmatprep.subr.mxu0 0.0
  %2168 = vmatpush1.msra.mxu0 %v2157
  %2169 = vmatprep.subr.mxu0 0.0
  %2170 = vmatpush1.msra.mxu0 0.0
  %2171 = vmatprep.subr.mxu0 0.0
  %2172 = vmatpush1.msra.mxu0 0.0
  %2173 = vmatprep.subr.mxu0 0.0
  %2174 = vmatpush1.msra.mxu0 0.0
  %2175 = vmatprep.subr.mxu0 0.0
  %2176 = vmatpush1.msra.mxu0 0.0
  %2177 = vmatprep.subr.mxu0 0.0
  %2178 = vmatpush1.msra.mxu0 0.0
  %2179 = vmatprep.subr.mxu0 0.0
  %2180 = vmatpush1.msra.mxu0 0.0
  %2181 = vmatprep.subr.mxu0 0.0
  %2182 = vmatpush1.msra.mxu0 0.0
  %2183 = vmatprep.subr.mxu0 0.0
  %2184 = vmatpush1.msra.mxu0 0.0
  %2185 = vmatprep.subr.mxu0 0.0
  %2186 = vmatpush1.msra.mxu0 0.0
  %2187 = vmatprep.subr.mxu0 0.0
  %2188 = vmatpush1.msra.mxu0 0.0
  %2189 = vmatprep.subr.mxu0 0.0
  %2190 = vmatpush1.msra.mxu0 0.0
  %2191 = vmatprep.subr.mxu0 0.0
  %2192 = vmatpush1.msra.mxu0 0.0
  %2193 = vmatprep.subr.mxu0 0.0
  %2194 = vmatpush1.msra.mxu0 0.0
  %2195 = vmatprep.subr.mxu0 0.0
  %2196 = vmatpush1.msra.mxu0 0.0
  %2197 = vmatprep.subr.mxu0 0.0
  %2198 = vmatpush1.msra.mxu0 0.0
  %2199 = vmatprep.subr.mxu0 0.0
  %2200 = vmatpush1.msra.mxu0 0.0
  %2201 = vmatprep.subr.mxu0 0.0
  %2202 = vmatpush1.msra.mxu0 0.0
  %2203 = vmatprep.subr.mxu0 0.0
  %2204 = vmatpush1.msra.mxu0 0.0
  %2205 = vmatprep.subr.mxu0 0.0
  %2206 = vmatpush1.msra.mxu0 0.0
  %2207 = vmatprep.subr.mxu0 0.0
  %2208 = vmatpush1.msra.mxu0 0.0
  %2209 = vmatprep.subr.mxu0 0.0
  %2210 = vmatpush1.msra.mxu0 0.0
  %2211 = vmatprep.subr.mxu0 0.0
  %2212 = vmatpush1.msra.mxu0 0.0
  %2213 = vmatprep.subr.mxu0 0.0
  %2214 = vmatpush1.msra.mxu0 0.0
  %2215 = vmatprep.subr.mxu0 0.0
  %2216 = vmatpush1.msra.mxu0 0.0
  %2217 = vmatprep.subr.mxu0 0.0
  %2218 = vmatpush1.msra.mxu0 0.0
  %2219 = vmatprep.subr.mxu0 0.0
  %2220 = vmatpush1.msra.mxu0 0.0
  %2221 = vmatprep.subr.mxu0 0.0
  %2222 = vmatpush1.msra.mxu0 0.0
  %2223 = vmatprep.subr.mxu0 0.0
  %2224 = vmatpush1.msra.mxu0 0.0
  %2225 = vmatprep.mubr.f32.mxu0 0.0
  %2226 = vmatmul.mubr.f32.gmra.mrb[0].mxu0 %v2159
  %v2227 = vpop.f32.mrb[0].mxu0
  %v2228 = vadd.f32 0.0, %v2227
  %v2229 = vpop.f32.mrb[0].mxu0
  %2230 = vdwg.mxu0
  %v2232 = vsel %vm326, %v1250, 0
  %2234 = vmatprep.subr.mxu0 0.0
  %2235 = vmatpush1.msra.mxu0 %v2150
  %2236 = vmatprep.subr.mxu0 0.0
  %2237 = vmatpush1.msra.mxu0 %v2151
  %2238 = vmatprep.subr.mxu0 0.0
  %2239 = vmatpush1.msra.mxu0 %v2152
  %2240 = vmatprep.subr.mxu0 0.0
  %2241 = vmatpush1.msra.mxu0 %v2153
  %2242 = vmatprep.subr.mxu0 0.0
  %2243 = vmatpush1.msra.mxu0 0.0
  %2244 = vmatprep.subr.mxu0 0.0
  %2245 = vmatpush1.msra.mxu0 0.0
  %2246 = vmatprep.subr.mxu0 0.0
  %2247 = vmatpush1.msra.mxu0 0.0
  %2248 = vmatprep.subr.mxu0 0.0
  %2249 = vmatpush1.msra.mxu0 0.0
  %2250 = vmatprep.subr.mxu0 0.0
  %2251 = vmatpush1.msra.mxu0 0.0
  %2252 = vmatprep.subr.mxu0 0.0
  %2253 = vmatpush1.msra.mxu0 0.0
  %2254 = vmatprep.subr.mxu0 0.0
  %2255 = vmatpush1.msra.mxu0 0.0
  %2256 = vmatprep.subr.mxu0 0.0
  %2257 = vmatpush1.msra.mxu0 0.0
  %2258 = vmatprep.subr.mxu0 0.0
  %2259 = vmatpush1.msra.mxu0 0.0
  %2260 = vmatprep.subr.mxu0 0.0
  %2261 = vmatpush1.msra.mxu0 0.0
  %2262 = vmatprep.subr.mxu0 0.0
  %2263 = vmatpush1.msra.mxu0 0.0
  %2264 = vmatprep.subr.mxu0 0.0
  %2265 = vmatpush1.msra.mxu0 0.0
  %2266 = vmatprep.subr.mxu0 0.0
  %2267 = vmatpush1.msra.mxu0 0.0
  %2268 = vmatprep.subr.mxu0 0.0
  %2269 = vmatpush1.msra.mxu0 0.0
  %2270 = vmatprep.subr.mxu0 0.0
  %2271 = vmatpush1.msra.mxu0 0.0
  %2272 = vmatprep.subr.mxu0 0.0
  %2273 = vmatpush1.msra.mxu0 0.0
  %2274 = vmatprep.subr.mxu0 0.0
  %2275 = vmatpush1.msra.mxu0 0.0
  %2276 = vmatprep.subr.mxu0 0.0
  %2277 = vmatpush1.msra.mxu0 0.0
  %2278 = vmatprep.subr.mxu0 0.0
  %2279 = vmatpush1.msra.mxu0 0.0
  %2280 = vmatprep.subr.mxu0 0.0
  %2281 = vmatpush1.msra.mxu0 0.0
  %2282 = vmatprep.subr.mxu0 0.0
  %2283 = vmatpush1.msra.mxu0 0.0
  %2284 = vmatprep.subr.mxu0 0.0
  %2285 = vmatpush1.msra.mxu0 0.0
  %2286 = vmatprep.subr.mxu0 0.0
  %2287 = vmatpush1.msra.mxu0 0.0
  %2288 = vmatprep.subr.mxu0 0.0
  %2289 = vmatpush1.msra.mxu0 0.0
  %2290 = vmatprep.subr.mxu0 0.0
  %2291 = vmatpush1.msra.mxu0 0.0
  %2292 = vmatprep.subr.mxu0 0.0
  %2293 = vmatpush1.msra.mxu0 0.0
  %2294 = vmatprep.subr.mxu0 0.0
  %2295 = vmatpush1.msra.mxu0 0.0
  %2296 = vmatprep.subr.mxu0 0.0
  %2297 = vmatpush1.msra.mxu0 0.0
  %2298 = vmatprep.mubr.f32.mxu0 0.0
  %2299 = vmatmul.mubr.f32.gmra.mrb[0].mxu0 %v2232
  %v2300 = vpop.f32.mrb[0].mxu0
  %v2301 = vadd.f32 %v2228, %v2300
  %v2302 = vpop.f32.mrb[0].mxu0
  %2303 = vdwg.mxu0
  %v2304 = vld [vmem:[%s9] sm:$0x1]
  %v2306 = vlaneseq
  %v2307 = vshrl.u32 %v2306, 7
  %v2308 = vsub.s32 0, %v2307
  %v2309 = vrot.slane %v2304, %v2308
  %v2311 = vadd.f32 %v2301, %v2309
  %v2312 = vlaneseq
  %v2313 = vand.u32 %v2312, 127
  %vm2314 = vcmp.lt.s32.totalorder %v2313, 16
  %v2315 = vmul.f32 %v2311, 0.5
  %v2316 = vmul.f32 %v2315, 1.442695
  %v2317 = vpow.pop %v2316
  %v2318 = vsel %vm2314, %v2311, %v2317
  %2319 = vst.msk [vmem:[%s10] sm:$0xff] %vm326, %v2318
  // Predicated region
  $region42: #{_lambda_.1} parent=0 // pred_check
    _
  $region43: #{_lambda_.1} parent=0 // pred_check_branch
    %2321 = sbr.rel (0) target = $region45
  $region44: #{_lambda_.1} parent=0 // pred_region
    _
  $region45: #{_lambda_.1} parent=0 // pred_fallthru
    _
  // Predicated region
  $region46: #{_lambda_.1} parent=0 // pred_check
    _
  $region47: #{_lambda_.1} parent=0 // pred_check_branch
    %2323 = sbr.rel (0) target = $region49
  $region48: #{_lambda_.1} parent=0 // pred_region
    _
  $region49: #{_lambda_.1} parent=0 // pred_fallthru
    _

</llo_original>
